<compile_context>
chip_gen: v7x
topology: tpu7x:2x2x1
jax: 0.10.0
libtpu: 0.0.40
codegen_flags: <defaults>
</compile_context>

<pallas_src>
import jax
import jax.numpy as jnp
import numpy as np
from jax import lax
from jax.experimental import pallas as pl
from jax.experimental.pallas import tpu as pltpu

LN_EPS = 1e-5  # torch.nn.LayerNorm default


# --------------------------------------------------------------------------- #
# Kernel
# --------------------------------------------------------------------------- #
def sentence_hopfield_kernel(
        x_ref,          # (TB, L)  float32   -- encoded token ids (as floats)
        w_in_ref,       # (L,  D)  bfloat16  -- input_proj weight (transposed)
        wq_ref,         # (D,  D)  bfloat16  -- Hopfield query projection
        k_ref,          # (N,  D)  float32   -- precomputed keys   LN(lookup)@wk+bk
        v_ref,          # (N,  D)  float32   -- precomputed values LN(target)@wv+bv
        vecs_ref,       # (4,  D)  float32   -- [b_in; ln_state_g; ln_state_b; bq]
        w_fused_ref,    # (D,  L)  bfloat16  -- wo @ w_out
        b_fused_ref,    # (1,  L)  float32   -- bo @ w_out + b_out
        out_ref,        # (TB, L)  float32
        ids_ref):       # (TB, L)  int32
    f32 = jnp.float32
    bf16 = jnp.bfloat16

    b_in = vecs_ref[0:1, :]
    ln_g = vecs_ref[1:2, :]
    ln_b = vecs_ref[2:3, :]
    bq = vecs_ref[3:4, :]

    # ---- input_proj: Linear(max_seq_length -> hidden_dim) ------------------
    x = x_ref[...].astype(bf16)                        # token ids: exact in bf16
    h = jnp.dot(x, w_in_ref[...], preferred_element_type=f32) + b_in      # (TB, D)

    # ---- Hopfield: affine LayerNorm on the state pattern (query) -----------
    mu = jnp.mean(h, axis=-1, keepdims=True)
    var = jnp.mean(jnp.square(h - mu), axis=-1, keepdims=True)
    q_in = (h - mu) * lax.rsqrt(var + LN_EPS) * ln_g + ln_b               # (TB, D)

    # ---- query projection ---------------------------------------------------
    q = jnp.dot(q_in.astype(bf16), wq_ref[...], preferred_element_type=f32) + bq

    # ---- attention over the stored patterns (N is tiny & static) -----------
    d = q.shape[-1]
    scaling = 1.0 / jnp.sqrt(f32(d))
    scores = lax.dot_general(q * scaling, k_ref[...],
                             dimension_numbers=(((1,), (1,)), ((), ())),
                             preferred_element_type=f32)                  # (TB, N)
    scores = scores - jnp.max(scores, axis=-1, keepdims=True)
    p = jnp.exp(scores)                                                   # (TB, N)
    inv_denom = pl.reciprocal(jnp.sum(p, axis=-1, keepdims=True), approx=True)

    # z = softmax(scores) @ v  -- done as N broadcast-mul-adds on the VPU
    n_patterns = v_ref.shape[0]
    z = p[:, 0:1] * v_ref[0:1, :]
    for n in range(1, n_patterns):
        z = z + p[:, n:n + 1] * v_ref[n:n + 1, :]
    z = z * inv_denom                                                     # (TB, D)

    # ---- fused (Hopfield out_proj  ∘  output_proj) --------------------------
    out = jnp.dot(z.astype(bf16), w_fused_ref[...],
                  preferred_element_type=f32) + b_fused_ref[...]          # (TB, L)

    out_ref[...] = out
    ids_ref[...] = jnp.round(out).astype(jnp.int32)   # torch.round(...).long()


# --------------------------------------------------------------------------- #
# Wrapper
# --------------------------------------------------------------------------- #
def prepare_inference_params(params):
    """Hoist all input-independent work out of the kernel (done once)."""
    hp = lax.Precision.HIGHEST

    def ln(z, g, b):
        mu = z.mean(-1, keepdims=True)
        var = ((z - mu) ** 2).mean(-1, keepdims=True)
        return (z - mu) * lax.rsqrt(var + LN_EPS) * g + b

    k = jnp.dot(ln(params["lookup_weights"], params["ln_stored_g"], params["ln_stored_b"]),
                params["wk"], precision=hp) + params["bk"]
    v = jnp.dot(ln(params["target_weights"], params["ln_proj_g"], params["ln_proj_b"]),
                params["wv"], precision=hp) + params["bv"]
    w_fused = jnp.dot(params["wo"], params["w_out"], precision=hp)
    b_fused = jnp.dot(params["bo"], params["w_out"], precision=hp) + params["b_out"]
    vecs = jnp.concatenate(
        [params["b_in"], params["ln_state_g"], params["ln_state_b"], params["bq"]],
        axis=0)                                                            # (4, D)

    return {
        "w_in": params["w_in"].astype(jnp.bfloat16),
        "wq": params["wq"].astype(jnp.bfloat16),
        "k": k.astype(jnp.float32),
        "v": v.astype(jnp.float32),
        "vecs": vecs.astype(jnp.float32),
        "w_fused": w_fused.astype(jnp.bfloat16),
        "b_fused": b_fused.astype(jnp.float32),
    }


def sentence_hopfield_forward(x, inf, *, batch_tile=256):
    B, L = x.shape
    D = inf["w_in"].shape[1]
    N = inf["k"].shape[0]

    if B <= batch_tile:
        TB, B_pad = B, B
        x_pad = x
    else:
        TB = batch_tile
        B_pad = pl.cdiv(B, TB) * TB
        x_pad = jnp.pad(x, ((0, B_pad - B), (0, 0))) if B_pad != B else x

    grid = (B_pad // TB,)
    const = lambda i: (0, 0)          # weights stay VMEM-resident across the grid

    out, ids = pl.pallas_call(
        sentence_hopfield_kernel,
        out_shape=(jax.ShapeDtypeStruct((B_pad, L), jnp.float32),
                   jax.ShapeDtypeStruct((B_pad, L), jnp.int32)),
        grid=grid,
        in_specs=[
            pl.BlockSpec((TB, L), lambda i: (i, 0)),   # x
            pl.BlockSpec((L, D), const),               # w_in (bf16)
            pl.BlockSpec((D, D), const),               # wq   (bf16)
            pl.BlockSpec((N, D), const),               # k
            pl.BlockSpec((N, D), const),               # v
            pl.BlockSpec((4, D), const),               # packed (1,D) vectors
            pl.BlockSpec((D, L), const),               # fused output weight (bf16)
            pl.BlockSpec((1, L), const),               # fused output bias
        ],
        out_specs=(pl.BlockSpec((TB, L), lambda i: (i, 0)),
                   pl.BlockSpec((TB, L), lambda i: (i, 0))),
        compiler_params=pltpu.CompilerParams(
            dimension_semantics=("parallel",)),        # v7x: split batch over 2 TCs
    )(x_pad, inf["w_in"], inf["wq"], inf["k"], inf["v"],
      inf["vecs"], inf["w_fused"], inf["b_fused"])

    if B_pad != B:
        out, ids = out[:B], ids[:B]
    return out, ids


# --------------------------------------------------------------------------- #
# Parameter init + pure-JAX reference (original, unfused math)
# --------------------------------------------------------------------------- #
def init_params(key, max_seq_length, hidden_dim, num_patterns):
    ks = jax.random.split(key, 16)
    s = 0.02

    def nrm(k, shape, scale=s):
        return (scale * jax.random.normal(k, shape)).astype(jnp.float32)

    D, L, N = hidden_dim, max_seq_length, num_patterns
    params = {
        "w_in": nrm(ks[0], (L, D)),
        "b_in": nrm(ks[1], (1, D)),
        "ln_stored_g": (1.0 + 0.1 * jax.random.normal(ks[2], (1, D))).astype(jnp.float32),
        "ln_stored_b": nrm(ks[3], (1, D), 0.1),
        "ln_state_g": (1.0 + 0.1 * jax.random.normal(ks[4], (1, D))).astype(jnp.float32),
        "ln_state_b": nrm(ks[5], (1, D), 0.1),
        "ln_proj_g": (1.0 + 0.1 * jax.random.normal(ks[6], (1, D))).astype(jnp.float32),
        "ln_proj_b": nrm(ks[7], (1, D), 0.1),
        "lookup_weights": nrm(ks[8], (N, D), 1.0),
        "target_weights": nrm(ks[9], (N, D), 1.0),
        "wq": nrm(ks[10], (D, D)),
        "bq": nrm(ks[11], (1, D)),
        "wk": nrm(ks[12], (D, D)),
        "bk": nrm(ks[13], (1, D)),
        "wv": nrm(ks[14], (D, D)),
        "bv": nrm(ks[15], (1, D)),
    }
    ks2 = jax.random.split(jax.random.fold_in(key, 123), 4)
    params.update({
        "wo": nrm(ks2[0], (D, D)),
        "bo": nrm(ks2[1], (1, D)),
        "w_out": nrm(ks2[2], (D, L)),
        "b_out": nrm(ks2[3], (1, L)),
    })
    return params


def reference_forward(x, p):
    """Pure-JAX f32 reference of the original (unfused, unquantized) math."""
    hp = lax.Precision.HIGHEST

    def ln(z, g, b):
        mu = z.mean(-1, keepdims=True)
        var = ((z - mu) ** 2).mean(-1, keepdims=True)
        return (z - mu) / jnp.sqrt(var + LN_EPS) * g + b

    h = jnp.dot(x, p["w_in"], precision=hp) + p["b_in"]
    q_in = ln(h, p["ln_state_g"], p["ln_state_b"])
    k_in = ln(p["lookup_weights"], p["ln_stored_g"], p["ln_stored_b"])
    v_in = ln(p["target_weights"], p["ln_proj_g"], p["ln_proj_b"])
    q = jnp.dot(q_in, p["wq"], precision=hp) + p["bq"]
    k = jnp.dot(k_in, p["wk"], precision=hp) + p["bk"]
    v = jnp.dot(v_in, p["wv"], precision=hp) + p["bv"]
    scores = jnp.dot(q, k.T, precision=hp) / jnp.sqrt(jnp.float32(q.shape[-1]))
    attn = jax.nn.softmax(scores, axis=-1)
    z = jnp.dot(attn, v, precision=hp)
    r = jnp.dot(z, p["wo"], precision=hp) + p["bo"]
    return jnp.dot(r, p["w_out"], precision=hp) + p["b_out"]


# --------------------------------------------------------------------------- #
# Demo / correctness check
# --------------------------------------------------------------------------- #
if __name__ == "__main__":
    # (max_seq_length, hidden_dim, num_patterns) kept small; batch is many
    # sentences per call so the MXU M-dimension is actually filled.
    MAX_SEQ_LEN, HIDDEN_DIM, NUM_PATTERNS, BATCH = 128, 128, 4, 512

    key = jax.random.PRNGKey(0)
    k_params, k_x = jax.random.split(key)
    params = init_params(k_params, MAX_SEQ_LEN, HIDDEN_DIM, NUM_PATTERNS)

    # encoded token ids (as floats), like Digitize(text, padding=L).encode()
    x = jax.random.randint(k_x, (BATCH, MAX_SEQ_LEN), 0, 100).astype(jnp.float32)

    inf = prepare_inference_params(params)
    out, ids = sentence_hopfield_forward(x, inf, batch_tile=256)
    out, ids = jax.block_until_ready((out, ids))

    ref = reference_forward(x, params)
    np.testing.assert_allclose(np.asarray(out), np.asarray(ref), rtol=2e-2, atol=5e-3)
    assert ids.shape == (BATCH, MAX_SEQ_LEN) and ids.dtype == jnp.int32

    print("KERNEL_OK")
</pallas_src>

<mosaic_0001>
module attributes {stable_mosaic.version = 11 : i64} {
  func.func @sentence_hopfield_kernel(%arg0: i32, %arg1: memref<256x128xf32, #tpu.memory_space<vmem>>, %arg2: memref<128x128xbf16, #tpu.memory_space<vmem>>, %arg3: memref<128x128xbf16, #tpu.memory_space<vmem>>, %arg4: memref<4x128xf32, #tpu.memory_space<vmem>>, %arg5: memref<4x128xf32, #tpu.memory_space<vmem>>, %arg6: memref<4x128xf32, #tpu.memory_space<vmem>>, %arg7: memref<128x128xbf16, #tpu.memory_space<vmem>>, %arg8: memref<1x128xf32, #tpu.memory_space<vmem>>, %arg9: memref<256x128xf32, #tpu.memory_space<vmem>>, %arg10: memref<256x128xi32, #tpu.memory_space<vmem>>) attributes {dimension_semantics = [#tpu.dimension_semantics<parallel>], iteration_bounds = array<i64: 2>, scalar_prefetch = 0 : i64, scratch_operands = 0 : i64, tpu.core_type = #tpu.core_type<tc>, window_params = [{transform_indices = @transform_0, window_bounds = array<i64: 256, 128>}, {pipeline_mode = #tpu.pipeline_mode<synchronous>, transform_indices = @transform_1, window_bounds = array<i64: 128, 128>}, {pipeline_mode = #tpu.pipeline_mode<synchronous>, transform_indices = @transform_2, window_bounds = array<i64: 128, 128>}, {pipeline_mode = #tpu.pipeline_mode<synchronous>, transform_indices = @transform_3, window_bounds = array<i64: 4, 128>}, {pipeline_mode = #tpu.pipeline_mode<synchronous>, transform_indices = @transform_4, window_bounds = array<i64: 4, 128>}, {pipeline_mode = #tpu.pipeline_mode<synchronous>, transform_indices = @transform_5, window_bounds = array<i64: 4, 128>}, {pipeline_mode = #tpu.pipeline_mode<synchronous>, transform_indices = @transform_6, window_bounds = array<i64: 128, 128>}, {pipeline_mode = #tpu.pipeline_mode<synchronous>, transform_indices = @transform_7, window_bounds = array<i64: 1, 128>}, {transform_indices = @transform_8, window_bounds = array<i64: 256, 128>}, {transform_indices = @transform_9, window_bounds = array<i64: 256, 128>}]} {
    %c0 = arith.constant 0 : index
    %c0_0 = arith.constant 0 : index
    %0 = vector.load %arg6[%c0, %c0_0] : memref<4x128xf32, #tpu.memory_space<vmem>>, vector<1x128xf32>
    %c1 = arith.constant 1 : index
    %c0_1 = arith.constant 0 : index
    %1 = vector.load %arg6[%c1, %c0_1] : memref<4x128xf32, #tpu.memory_space<vmem>>, vector<1x128xf32>
    %c2 = arith.constant 2 : index
    %c0_2 = arith.constant 0 : index
    %2 = vector.load %arg6[%c2, %c0_2] : memref<4x128xf32, #tpu.memory_space<vmem>>, vector<1x128xf32>
    %c3 = arith.constant 3 : index
    %c0_3 = arith.constant 0 : index
    %3 = vector.load %arg6[%c3, %c0_3] : memref<4x128xf32, #tpu.memory_space<vmem>>, vector<1x128xf32>
    %c0_4 = arith.constant 0 : index
    %c0_5 = arith.constant 0 : index
    %4 = vector.load %arg1[%c0_4, %c0_5] : memref<256x128xf32, #tpu.memory_space<vmem>>, vector<256x128xf32>
    %5 = arith.truncf %4 : vector<256x128xf32> to vector<256x128xbf16>
    %c0_6 = arith.constant 0 : index
    %c0_7 = arith.constant 0 : index
    %6 = vector.load %arg2[%c0_6, %c0_7] : memref<128x128xbf16, #tpu.memory_space<vmem>>, vector<128x128xbf16>
    %cst = arith.constant dense<0.000000e+00> : vector<256x128xf32>
    %7 = tpu.matmul %5, %6, %cst {dimension_numbers = #tpu.dot_dimension_numbers<[1], [0], [0], [1], [0, 0, 1, 1], [], []>} : vector<256x128xbf16>, vector<128x128xbf16>, vector<256x128xf32> -> vector<256x128xf32>
    %8 = vector.broadcast %0 : vector<1x128xf32> to vector<256x128xf32>
    %9 = arith.addf %7, %8 : vector<256x128xf32>
    %cst_8 = arith.constant dense<0.000000e+00> : vector<256xf32>
    %10 = vector.multi_reduction <add>, %9, %cst_8 [1] : vector<256x128xf32> to vector<256xf32>
    %11 = vector.shape_cast %10 : vector<256xf32> to vector<256x1xf32>
    %cst_9 = arith.constant 1.280000e+02 : f32
    %12 = vector.broadcast %cst_9 : f32 to vector<256x1xf32>
    %13 = arith.divf %11, %12 : vector<256x1xf32>
    %14 = vector.broadcast %13 : vector<256x1xf32> to vector<256x128xf32>
    %15 = arith.subf %9, %14 : vector<256x128xf32>
    %16 = arith.mulf %15, %15 : vector<256x128xf32>
    %cst_10 = arith.constant dense<0.000000e+00> : vector<256xf32>
    %17 = vector.multi_reduction <add>, %16, %cst_10 [1] : vector<256x128xf32> to vector<256xf32>
    %18 = vector.shape_cast %17 : vector<256xf32> to vector<256x1xf32>
    %cst_11 = arith.constant 1.280000e+02 : f32
    %19 = vector.broadcast %cst_11 : f32 to vector<256x1xf32>
    %20 = arith.divf %18, %19 : vector<256x1xf32>
    %21 = vector.broadcast %13 : vector<256x1xf32> to vector<256x128xf32>
    %22 = arith.subf %9, %21 : vector<256x128xf32>
    %cst_12 = arith.constant 9.99999974E-6 : f32
    %23 = vector.broadcast %cst_12 : f32 to vector<256x1xf32>
    %24 = arith.addf %20, %23 : vector<256x1xf32>
    %25 = math.rsqrt %24 : vector<256x1xf32>
    %26 = vector.broadcast %25 : vector<256x1xf32> to vector<256x128xf32>
    %27 = arith.mulf %22, %26 : vector<256x128xf32>
    %28 = vector.broadcast %1 : vector<1x128xf32> to vector<256x128xf32>
    %29 = arith.mulf %27, %28 : vector<256x128xf32>
    %30 = vector.broadcast %2 : vector<1x128xf32> to vector<256x128xf32>
    %31 = arith.addf %29, %30 : vector<256x128xf32>
    %32 = arith.truncf %31 : vector<256x128xf32> to vector<256x128xbf16>
    %c0_13 = arith.constant 0 : index
    %c0_14 = arith.constant 0 : index
    %33 = vector.load %arg3[%c0_13, %c0_14] : memref<128x128xbf16, #tpu.memory_space<vmem>>, vector<128x128xbf16>
    %cst_15 = arith.constant dense<0.000000e+00> : vector<256x128xf32>
    %34 = tpu.matmul %32, %33, %cst_15 {dimension_numbers = #tpu.dot_dimension_numbers<[1], [0], [0], [1], [0, 0, 1, 1], [], []>} : vector<256x128xbf16>, vector<128x128xbf16>, vector<256x128xf32> -> vector<256x128xf32>
    %35 = vector.broadcast %3 : vector<1x128xf32> to vector<256x128xf32>
    %36 = arith.addf %34, %35 : vector<256x128xf32>
    %cst_16 = arith.constant 1.280000e+02 : f32
    %37 = math.sqrt %cst_16 : f32
    %cst_17 = arith.constant 1.000000e+00 : f32
    %38 = arith.divf %cst_17, %37 : f32
    %39 = vector.broadcast %38 : f32 to vector<256x128xf32>
    %40 = arith.mulf %36, %39 : vector<256x128xf32>
    %c0_18 = arith.constant 0 : index
    %c0_19 = arith.constant 0 : index
    %41 = vector.load %arg4[%c0_18, %c0_19] : memref<4x128xf32, #tpu.memory_space<vmem>>, vector<4x128xf32>
    %cst_20 = arith.constant dense<0.000000e+00> : vector<256x4xf32>
    %42 = tpu.matmul %40, %41, %cst_20 {dimension_numbers = #tpu.dot_dimension_numbers<[1], [1], [0], [0], [0, 0, 1, 0], [], []>} : vector<256x128xf32>, vector<4x128xf32>, vector<256x4xf32> -> vector<256x4xf32>
    %cst_21 = arith.constant dense<0xFF800000> : vector<256xf32>
    %43 = vector.multi_reduction <maximumf>, %42, %cst_21 [1] : vector<256x4xf32> to vector<256xf32>
    %44 = vector.shape_cast %43 : vector<256xf32> to vector<256x1xf32>
    %45 = vector.broadcast %44 : vector<256x1xf32> to vector<256x4xf32>
    %46 = arith.subf %42, %45 : vector<256x4xf32>
    %47 = math.exp %46 : vector<256x4xf32>
    %cst_22 = arith.constant dense<0.000000e+00> : vector<256xf32>
    %48 = vector.multi_reduction <add>, %47, %cst_22 [1] : vector<256x4xf32> to vector<256xf32>
    %49 = vector.shape_cast %48 : vector<256xf32> to vector<256x1xf32>
    %50 = tpu.reciprocal %49 {approx = true} : vector<256x1xf32> -> vector<256x1xf32>
    %51 = vector.extract_strided_slice %47 {offsets = [0, 0], sizes = [256, 1], strides = [1, 1]} : vector<256x4xf32> to vector<256x1xf32>
    %c0_23 = arith.constant 0 : index
    %c0_24 = arith.constant 0 : index
    %52 = vector.load %arg5[%c0_23, %c0_24] : memref<4x128xf32, #tpu.memory_space<vmem>>, vector<1x128xf32>
    %53 = vector.broadcast %51 : vector<256x1xf32> to vector<256x128xf32>
    %54 = vector.broadcast %52 : vector<1x128xf32> to vector<256x128xf32>
    %55 = arith.mulf %53, %54 : vector<256x128xf32>
    %56 = vector.extract_strided_slice %47 {offsets = [0, 1], sizes = [256, 1], strides = [1, 1]} : vector<256x4xf32> to vector<256x1xf32>
    %c1_25 = arith.constant 1 : index
    %c0_26 = arith.constant 0 : index
    %57 = vector.load %arg5[%c1_25, %c0_26] : memref<4x128xf32, #tpu.memory_space<vmem>>, vector<1x128xf32>
    %58 = vector.broadcast %56 : vector<256x1xf32> to vector<256x128xf32>
    %59 = vector.broadcast %57 : vector<1x128xf32> to vector<256x128xf32>
    %60 = arith.mulf %58, %59 : vector<256x128xf32>
    %61 = arith.addf %55, %60 : vector<256x128xf32>
    %62 = vector.extract_strided_slice %47 {offsets = [0, 2], sizes = [256, 1], strides = [1, 1]} : vector<256x4xf32> to vector<256x1xf32>
    %c2_27 = arith.constant 2 : index
    %c0_28 = arith.constant 0 : index
    %63 = vector.load %arg5[%c2_27, %c0_28] : memref<4x128xf32, #tpu.memory_space<vmem>>, vector<1x128xf32>
    %64 = vector.broadcast %62 : vector<256x1xf32> to vector<256x128xf32>
    %65 = vector.broadcast %63 : vector<1x128xf32> to vector<256x128xf32>
    %66 = arith.mulf %64, %65 : vector<256x128xf32>
    %67 = arith.addf %61, %66 : vector<256x128xf32>
    %68 = vector.extract_strided_slice %47 {offsets = [0, 3], sizes = [256, 1], strides = [1, 1]} : vector<256x4xf32> to vector<256x1xf32>
    %c3_29 = arith.constant 3 : index
    %c0_30 = arith.constant 0 : index
    %69 = vector.load %arg5[%c3_29, %c0_30] : memref<4x128xf32, #tpu.memory_space<vmem>>, vector<1x128xf32>
    %70 = vector.broadcast %68 : vector<256x1xf32> to vector<256x128xf32>
    %71 = vector.broadcast %69 : vector<1x128xf32> to vector<256x128xf32>
    %72 = arith.mulf %70, %71 : vector<256x128xf32>
    %73 = arith.addf %67, %72 : vector<256x128xf32>
    %74 = vector.broadcast %50 : vector<256x1xf32> to vector<256x128xf32>
    %75 = arith.mulf %73, %74 : vector<256x128xf32>
    %76 = arith.truncf %75 : vector<256x128xf32> to vector<256x128xbf16>
    %c0_31 = arith.constant 0 : index
    %c0_32 = arith.constant 0 : index
    %77 = vector.load %arg7[%c0_31, %c0_32] : memref<128x128xbf16, #tpu.memory_space<vmem>>, vector<128x128xbf16>
    %cst_33 = arith.constant dense<0.000000e+00> : vector<256x128xf32>
    %78 = tpu.matmul %76, %77, %cst_33 {dimension_numbers = #tpu.dot_dimension_numbers<[1], [0], [0], [1], [0, 0, 1, 1], [], []>} : vector<256x128xbf16>, vector<128x128xbf16>, vector<256x128xf32> -> vector<256x128xf32>
    %c0_34 = arith.constant 0 : index
    %c0_35 = arith.constant 0 : index
    %79 = vector.load %arg8[%c0_34, %c0_35] : memref<1x128xf32, #tpu.memory_space<vmem>>, vector<1x128xf32>
    %80 = vector.broadcast %79 : vector<1x128xf32> to vector<256x128xf32>
    %81 = arith.addf %78, %80 : vector<256x128xf32>
    %c0_36 = arith.constant 0 : index
    %c0_37 = arith.constant 0 : index
    %82 = vector.load %arg9[%c0_36, %c0_37] : memref<256x128xf32, #tpu.memory_space<vmem>>, vector<256x128xf32>
    tpu.vector_store %arg9[%c0_36, %c0_37], %81 {strides = array<i32>} : memref<256x128xf32, #tpu.memory_space<vmem>>, vector<256x128xf32>,
    %83 = math.roundeven %81 : vector<256x128xf32>
    %84 = arith.fptosi %83 : vector<256x128xf32> to vector<256x128xi32>
    %c0_38 = arith.constant 0 : index
    %c0_39 = arith.constant 0 : index
    %85 = vector.load %arg10[%c0_38, %c0_39] : memref<256x128xi32, #tpu.memory_space<vmem>>, vector<256x128xi32>
    tpu.vector_store %arg10[%c0_38, %c0_39], %84 {strides = array<i32>} : memref<256x128xi32, #tpu.memory_space<vmem>>, vector<256x128xi32>,
    return
  }
  func.func @transform_0(%arg0: i32) -> (i32, i32) {
    %c0_i32 = arith.constant 0 : i32
    %c0_i32_0 = arith.constant 0 : i32
    return %arg0, %c0_i32 : i32, i32
  }
  func.func @transform_1(%arg0: i32) -> (i32, i32) {
    %c0_i32 = arith.constant 0 : i32
    %c0_i32_0 = arith.constant 0 : i32
    %c0_i32_1 = arith.constant 0 : i32
    return %c0_i32, %c0_i32_0 : i32, i32
  }
  func.func @transform_2(%arg0: i32) -> (i32, i32) {
    %c0_i32 = arith.constant 0 : i32
    %c0_i32_0 = arith.constant 0 : i32
    %c0_i32_1 = arith.constant 0 : i32
    return %c0_i32, %c0_i32_0 : i32, i32
  }
  func.func @transform_3(%arg0: i32) -> (i32, i32) {
    %c0_i32 = arith.constant 0 : i32
    %c0_i32_0 = arith.constant 0 : i32
    %c0_i32_1 = arith.constant 0 : i32
    return %c0_i32, %c0_i32_0 : i32, i32
  }
  func.func @transform_4(%arg0: i32) -> (i32, i32) {
    %c0_i32 = arith.constant 0 : i32
    %c0_i32_0 = arith.constant 0 : i32
    %c0_i32_1 = arith.constant 0 : i32
    return %c0_i32, %c0_i32_0 : i32, i32
  }
  func.func @transform_5(%arg0: i32) -> (i32, i32) {
    %c0_i32 = arith.constant 0 : i32
    %c0_i32_0 = arith.constant 0 : i32
    %c0_i32_1 = arith.constant 0 : i32
    return %c0_i32, %c0_i32_0 : i32, i32
  }
  func.func @transform_6(%arg0: i32) -> (i32, i32) {
    %c0_i32 = arith.constant 0 : i32
    %c0_i32_0 = arith.constant 0 : i32
    %c0_i32_1 = arith.constant 0 : i32
    return %c0_i32, %c0_i32_0 : i32, i32
  }
  func.func @transform_7(%arg0: i32) -> (i32, i32) {
    %c0_i32 = arith.constant 0 : i32
    %c0_i32_0 = arith.constant 0 : i32
    %c0_i32_1 = arith.constant 0 : i32
    return %c0_i32, %c0_i32_0 : i32, i32
  }
  func.func @transform_8(%arg0: i32) -> (i32, i32) {
    %c0_i32 = arith.constant 0 : i32
    %c0_i32_0 = arith.constant 0 : i32
    return %arg0, %c0_i32 : i32, i32
  }
  func.func @transform_9(%arg0: i32) -> (i32, i32) {
    %c0_i32 = arith.constant 0 : i32
    %c0_i32_0 = arith.constant 0 : i32
    return %arg0, %c0_i32 : i32, i32
  }
}

</mosaic_0001>

<llo_original>
// kernel: tpu_custom_call.1
$region0: #{tpu_custom_call.1}
  #allocation0 [shape = 'u32[]', space=smem, size = 0x4, offset = 0x4, fixed_abs, tag = 'smem constant byte address 0x4 - core index']
  #allocation1 [shape = 'u32[144,128]{1,0:T(1,128)}', space=vmem, size = 0x12000, scoped, tag = 'internal scratch']
  %s0 = inlined_call_operand.hbm [shape: f32[512,128], index: 0, kind: input, shape index: {}]
  %s1 = inlined_call_operand.hbm [shape: bf16[128,128], index: 1, kind: input, shape index: {}]
  %s2 = inlined_call_operand.hbm [shape: bf16[128,128], index: 2, kind: input, shape index: {}]
  %s3 = inlined_call_operand.vmem [shape: f32[4,128], index: 3, kind: input, shape index: {}]
  %s4 = inlined_call_operand.vmem [shape: f32[4,128], index: 4, kind: input, shape index: {}]
  %s5 = inlined_call_operand.vmem [shape: f32[4,128], index: 5, kind: input, shape index: {}]
  %s6 = inlined_call_operand.hbm [shape: bf16[128,128], index: 6, kind: input, shape index: {}]
  %s7 = inlined_call_operand.vmem [shape: f32[1,128], index: 7, kind: input, shape index: {}]
  %s8 = inlined_call_operand.hbm [shape: f32[512,128], index: 8, kind: output, shape index: {0}]
  %s9 = inlined_call_operand.hbm [shape: s32[512,128], index: 9, kind: output, shape index: {1}]
  %10 = xla_tuple %s8, %s9
  %s11 = sld [smem:[#allocation0]]
  $region89: #{tpu_custom_call.1} parent=0
    _
  %s13 = ssub.s32 1, %s11
  %s14 = scalar_select 0, %s13, %s11
  $region1: #{tpu_custom_call.1} parent=0
    #allocation2 [shape = 'u8[262144]{0}', space=vmem, size = 0x40000, scoped, tag = 'input window, operand 0']
    #allocation3 [shape = 's32[2]{0}', space=sflag, size = 0x8, scoped, tag = 'scoped memory for tpu_custom_call.1']
    #allocation4 [shape = 's32[2]{0}', space=sflag, size = 0x8, scoped, tag = 'scoped memory for tpu_custom_call.1']
    #allocation5 [shape = 'u8[32768]{0}', space=vmem, size = 0x8000, scoped, tag = 'input window, operand 1, single buffered']
    #allocation6 [shape = 's32[1]{0}', space=sflag, size = 0x4, scoped, tag = 'scoped memory for tpu_custom_call.1']
    #allocation7 [shape = 'u8[32768]{0}', space=vmem, size = 0x8000, scoped, tag = 'input window, operand 2, single buffered']
    #allocation8 [shape = 'u8[32768]{0}', space=vmem, size = 0x8000, scoped, tag = 'input window, operand 6, single buffered']
    #allocation9 [shape = 's32[1]{0}', space=sflag, size = 0x4, scoped, tag = 'scoped memory for tpu_custom_call.1']
    #allocation10 [shape = 'u8[262144]{0}', space=vmem, size = 0x40000, scoped, tag = 'output window, operand 0']
    #allocation11 [shape = 'u8[262144]{0}', space=vmem, size = 0x40000, scoped, tag = 'output window, operand 1']
    #allocation12 [shape = 's32[2]{0}', space=sflag, size = 0x8, scoped, tag = 'scoped memory for tpu_custom_call.1']
    %15 = vsyncpa [#allocation3], 0
    %s16 = scalar_lea.sflag [#allocation3], 1
    %17 = vsyncpa %s16, 0
    %18 = vsyncpa [#allocation6], 0
    %19 = vsyncpa [#allocation9], 0
    %20 = vsyncpa [#allocation4], 0
    %s21 = scalar_lea.sflag [#allocation4], 1
    %22 = vsyncpa %s21, 0
    %23 = vsyncpa [#allocation12], 0
    %s24 = scalar_lea.sflag [#allocation12], 1
    %25 = vsyncpa %s24, 0
    loop: start=0, step=1, limit=4
    $region2: #{tpu_custom_call.1} parent=1 // loop_pre_header
      _
    $region3: #{tpu_custom_call.1} parent=1 // loop_header
      %s27 = sphi 0, %s31
      %p28 = scmp.ge.s32.totalorder %s27, 4
      %s37 = sphi 0, %s39
      %s40 = sphi 0, %s37
      %s41 = sphi 0, %s40
      %s57 = sphi 0, %s41
      %s61 = sphi 0, %s61
      %s63 = sphi 0, %s61
      %s64 = sphi 0, %s63
      %s78 = sphi 0, %s64
      %s82 = sphi 0, %s82
      %s84 = sphi 0, %s82
      %s85 = sphi 0, %s84
      %s99 = sphi 0, %s85
      %s103 = sphi 0, %s103
      %s105 = sphi 0, %s103
      %s106 = sphi 0, %s105
      %s120 = sphi 0, %s106
      %s124 = sphi 0, %s124
      %s126 = sphi 0, %s124
      %s127 = sphi 0, %s126
      %s141 = sphi 0, %s127
      %s145 = sphi 0, %s145
      %s147 = sphi 0, %s145
      %s148 = sphi 0, %s147
      %s162 = sphi 0, %s148
      %s166 = sphi 0, %s166
      %s168 = sphi 0, %s166
      %s169 = sphi 0, %s168
      %s183 = sphi 0, %s169
      %s187 = sphi 0, %s187
      %s189 = sphi 0, %s187
      %s190 = sphi 0, %s189
      %s204 = sphi 0, %s190
      %s210 = sphi 0, %s212
      %s213 = sphi 0, %s210
      %s214 = sphi 0, %s213
      %s230 = sphi 0, %s214
      %s236 = sphi 0, %s238
      %s239 = sphi 0, %s236
      %s240 = sphi 0, %s239
      %s256 = sphi 0, %s240
    $region4: #{tpu_custom_call.1} parent=1 // loop_header_branch
      %30 = sbr.rel (%p28) target = $region8
    $region5: #{tpu_custom_call.1} parent=1 // loop_body
      %s32 = ssub.s32 %s27, 1
      %s33 = ssub.s32 %s27, 2
      %s34 = sadd.s32 %s27, 1
      %s35 = ssub.s32 %s27, %s34
      %p36 = scmp.eq.s32.totalorder %s35, 0
      %s38 = sadd.s32 %s37, 1
      %s39 = scalar_select %p36, %s37, %s38
      %p42 = pneg %p36
      %p43 = scmp.eq.s32.totalorder %s27, 1
      %p44 = por %p42, %p43
      %p45 = scmp.ne.s32.totalorder %s37, %s40
      %p46 = scmp.eq.s32.totalorder %s27, 0
      %p47 = por %p45, %p46
      %p48 = scmp.ne.s32.totalorder %s37, %s40
      %p49 = scmp.eq.s32.totalorder %s32, 1
      %p50 = por %p48, %p49
      %p51 = scmp.ne.s32.totalorder %s40, %s41
      %p52 = scmp.eq.s32.totalorder %s32, 0
      %p53 = por %p51, %p52
      %p54 = scmp.ne.s32.totalorder %s40, %s41
      %p55 = scmp.eq.s32.totalorder %s33, 1
      %p56 = por %p54, %p55
      %p58 = scmp.ne.s32.totalorder %s41, %s57
      %p59 = scmp.eq.s32.totalorder %s33, 0
      %p60 = por %p58, %p59
      %s62 = sadd.s32 %s61, 1
      %p65 = scmp.eq.s32.totalorder %s27, 1
      %p66 = scmp.ne.s32.totalorder %s61, %s63
      %p67 = scmp.eq.s32.totalorder %s27, 0
      %p68 = por %p66, %p67
      %p69 = scmp.ne.s32.totalorder %s61, %s63
      %p70 = scmp.eq.s32.totalorder %s32, 1
      %p71 = por %p69, %p70
      %p72 = scmp.ne.s32.totalorder %s63, %s64
      %p73 = scmp.eq.s32.totalorder %s32, 0
      %p74 = por %p72, %p73
      %p75 = scmp.ne.s32.totalorder %s63, %s64
      %p76 = scmp.eq.s32.totalorder %s33, 1
      %p77 = por %p75, %p76
      %p79 = scmp.ne.s32.totalorder %s64, %s78
      %p80 = scmp.eq.s32.totalorder %s33, 0
      %p81 = por %p79, %p80
      %s83 = sadd.s32 %s82, 1
      %p86 = scmp.eq.s32.totalorder %s27, 1
      %p87 = scmp.ne.s32.totalorder %s82, %s84
      %p88 = scmp.eq.s32.totalorder %s27, 0
      %p89 = por %p87, %p88
      %p90 = scmp.ne.s32.totalorder %s82, %s84
      %p91 = scmp.eq.s32.totalorder %s32, 1
      %p92 = por %p90, %p91
      %p93 = scmp.ne.s32.totalorder %s84, %s85
      %p94 = scmp.eq.s32.totalorder %s32, 0
      %p95 = por %p93, %p94
      %p96 = scmp.ne.s32.totalorder %s84, %s85
      %p97 = scmp.eq.s32.totalorder %s33, 1
      %p98 = por %p96, %p97
      %p100 = scmp.ne.s32.totalorder %s85, %s99
      %p101 = scmp.eq.s32.totalorder %s33, 0
      %p102 = por %p100, %p101
      %s104 = sadd.s32 %s103, 1
      %p107 = scmp.eq.s32.totalorder %s27, 1
      %p108 = scmp.ne.s32.totalorder %s103, %s105
      %p109 = scmp.eq.s32.totalorder %s27, 0
      %p110 = por %p108, %p109
      %p111 = scmp.ne.s32.totalorder %s103, %s105
      %p112 = scmp.eq.s32.totalorder %s32, 1
      %p113 = por %p111, %p112
      %p114 = scmp.ne.s32.totalorder %s105, %s106
      %p115 = scmp.eq.s32.totalorder %s32, 0
      %p116 = por %p114, %p115
      %p117 = scmp.ne.s32.totalorder %s105, %s106
      %p118 = scmp.eq.s32.totalorder %s33, 1
      %p119 = por %p117, %p118
      %p121 = scmp.ne.s32.totalorder %s106, %s120
      %p122 = scmp.eq.s32.totalorder %s33, 0
      %p123 = por %p121, %p122
      %s125 = sadd.s32 %s124, 1
      %p128 = scmp.eq.s32.totalorder %s27, 1
      %p129 = scmp.ne.s32.totalorder %s124, %s126
      %p130 = scmp.eq.s32.totalorder %s27, 0
      %p131 = por %p129, %p130
      %p132 = scmp.ne.s32.totalorder %s124, %s126
      %p133 = scmp.eq.s32.totalorder %s32, 1
      %p134 = por %p132, %p133
      %p135 = scmp.ne.s32.totalorder %s126, %s127
      %p136 = scmp.eq.s32.totalorder %s32, 0
      %p137 = por %p135, %p136
      %p138 = scmp.ne.s32.totalorder %s126, %s127
      %p139 = scmp.eq.s32.totalorder %s33, 1
      %p140 = por %p138, %p139
      %p142 = scmp.ne.s32.totalorder %s127, %s141
      %p143 = scmp.eq.s32.totalorder %s33, 0
      %p144 = por %p142, %p143
      %s146 = sadd.s32 %s145, 1
      %p149 = scmp.eq.s32.totalorder %s27, 1
      %p150 = scmp.ne.s32.totalorder %s145, %s147
      %p151 = scmp.eq.s32.totalorder %s27, 0
      %p152 = por %p150, %p151
      %p153 = scmp.ne.s32.totalorder %s145, %s147
      %p154 = scmp.eq.s32.totalorder %s32, 1
      %p155 = por %p153, %p154
      %p156 = scmp.ne.s32.totalorder %s147, %s148
      %p157 = scmp.eq.s32.totalorder %s32, 0
      %p158 = por %p156, %p157
      %p159 = scmp.ne.s32.totalorder %s147, %s148
      %p160 = scmp.eq.s32.totalorder %s33, 1
      %p161 = por %p159, %p160
      %p163 = scmp.ne.s32.totalorder %s148, %s162
      %p164 = scmp.eq.s32.totalorder %s33, 0
      %p165 = por %p163, %p164
      %s167 = sadd.s32 %s166, 1
      %p170 = scmp.eq.s32.totalorder %s27, 1
      %p171 = scmp.ne.s32.totalorder %s166, %s168
      %p172 = scmp.eq.s32.totalorder %s27, 0
      %p173 = por %p171, %p172
      %p174 = scmp.ne.s32.totalorder %s166, %s168
      %p175 = scmp.eq.s32.totalorder %s32, 1
      %p176 = por %p174, %p175
      %p177 = scmp.ne.s32.totalorder %s168, %s169
      %p178 = scmp.eq.s32.totalorder %s32, 0
      %p179 = por %p177, %p178
      %p180 = scmp.ne.s32.totalorder %s168, %s169
      %p181 = scmp.eq.s32.totalorder %s33, 1
      %p182 = por %p180, %p181
      %p184 = scmp.ne.s32.totalorder %s169, %s183
      %p185 = scmp.eq.s32.totalorder %s33, 0
      %p186 = por %p184, %p185
      %s188 = sadd.s32 %s187, 1
      %p191 = scmp.eq.s32.totalorder %s27, 1
      %p192 = scmp.ne.s32.totalorder %s187, %s189
      %p193 = scmp.eq.s32.totalorder %s27, 0
      %p194 = por %p192, %p193
      %p195 = scmp.ne.s32.totalorder %s187, %s189
      %p196 = scmp.eq.s32.totalorder %s32, 1
      %p197 = por %p195, %p196
      %p198 = scmp.ne.s32.totalorder %s189, %s190
      %p199 = scmp.eq.s32.totalorder %s32, 0
      %p200 = por %p198, %p199
      %p201 = scmp.ne.s32.totalorder %s189, %s190
      %p202 = scmp.eq.s32.totalorder %s33, 1
      %p203 = por %p201, %p202
      %p205 = scmp.ne.s32.totalorder %s190, %s204
      %p206 = scmp.eq.s32.totalorder %s33, 0
      %p207 = por %p205, %p206
      %s208 = ssub.s32 %s27, %s34
      %p209 = scmp.eq.s32.totalorder %s208, 0
      %s211 = sadd.s32 %s210, 1
      %s212 = scalar_select %p209, %s210, %s211
      %p215 = pneg %p209
      %p216 = scmp.eq.s32.totalorder %s27, 1
      %p217 = por %p215, %p216
      %p218 = scmp.ne.s32.totalorder %s210, %s213
      %p219 = scmp.eq.s32.totalorder %s27, 0
      %p220 = por %p218, %p219
      %p221 = scmp.ne.s32.totalorder %s210, %s213
      %p222 = scmp.eq.s32.totalorder %s32, 1
      %p223 = por %p221, %p222
      %p224 = scmp.ne.s32.totalorder %s213, %s214
      %p225 = scmp.eq.s32.totalorder %s32, 0
      %p226 = por %p224, %p225
      %p227 = scmp.ne.s32.totalorder %s213, %s214
      %p228 = scmp.eq.s32.totalorder %s33, 1
      %p229 = por %p227, %p228
      %p231 = scmp.ne.s32.totalorder %s214, %s230
      %p232 = scmp.eq.s32.totalorder %s33, 0
      %p233 = por %p231, %p232
      %s234 = ssub.s32 %s27, %s34
      %p235 = scmp.eq.s32.totalorder %s234, 0
      %s237 = sadd.s32 %s236, 1
      %s238 = scalar_select %p235, %s236, %s237
      %p241 = pneg %p235
      %p242 = scmp.eq.s32.totalorder %s27, 1
      %p243 = por %p241, %p242
      %p244 = scmp.ne.s32.totalorder %s236, %s239
      %p245 = scmp.eq.s32.totalorder %s27, 0
      %p246 = por %p244, %p245
      %p247 = scmp.ne.s32.totalorder %s236, %s239
      %p248 = scmp.eq.s32.totalorder %s32, 1
      %p249 = por %p247, %p248
      %p250 = scmp.ne.s32.totalorder %s239, %s240
      %p251 = scmp.eq.s32.totalorder %s32, 0
      %p252 = por %p250, %p251
      %p253 = scmp.ne.s32.totalorder %s239, %s240
      %p254 = scmp.eq.s32.totalorder %s33, 1
      %p255 = por %p253, %p254
      %p257 = scmp.ne.s32.totalorder %s240, %s256
      %p258 = scmp.eq.s32.totalorder %s33, 0
      %p259 = por %p257, %p258
      %p260 = scmp.le.s32.totalorder 1, %s27
      %p261 = scmp.lt.s32.totalorder %s27, 3
      %p262 = pnand %p260, %p261
      %p263 = pneg %p262
      // Predicated region
      $region9: #{tpu_custom_call.1} parent=5 // pred_check
        _
      $region10: #{tpu_custom_call.1} parent=5 // pred_check_branch
        %265 = sbr.rel (%p262) target = $region12
      $region11: #{tpu_custom_call.1} parent=5 // pred_region
        %s266 = ssub.s32 %s27, 1
        // Predicated region
        $region13: #{tpu_custom_call.1} parent=11 // pred_check
          %p267 = pneg %p74
        $region14: #{tpu_custom_call.1} parent=11 // pred_check_branch
          %269 = sbr.rel (%p267) target = $region16
        $region15: #{tpu_custom_call.1} parent=11 // pred_region
          %s271 = ssub.s32 1024, 1024
          %272 = vsyncadd [#allocation6], %s271
          %s273 = sshll.u32 [#allocation5], 4
          %s274 = int_to_ptr.vmem [resolvable:$true] %s273
          %279 = dma.hbm_to_vmem [thread:$0]  %s1, 1024, %s274, [#allocation6], 64, 64, 4
        $region16: #{tpu_custom_call.1} parent=11 // pred_fallthru
          _
        // Predicated region
        $region17: #{tpu_custom_call.1} parent=11 // pred_check
          %p280 = pneg %p95
        $region18: #{tpu_custom_call.1} parent=11 // pred_check_branch
          %282 = sbr.rel (%p280) target = $region20
        $region19: #{tpu_custom_call.1} parent=11 // pred_region
          %s284 = ssub.s32 1024, 1024
          %285 = vsyncadd [#allocation6], %s284
          %s286 = sshll.u32 [#allocation7], 4
          %s287 = int_to_ptr.vmem [resolvable:$true] %s286
          %292 = dma.hbm_to_vmem [thread:$0]  %s2, 1024, %s287, [#allocation6], 64, 64, 4
        $region20: #{tpu_custom_call.1} parent=11 // pred_fallthru
          _
        // Predicated region
        $region21: #{tpu_custom_call.1} parent=11 // pred_check
          %p293 = pneg %p116
        $region22: #{tpu_custom_call.1} parent=11 // pred_check_branch
          %295 = sbr.rel (%p293) target = $region24
        $region23: #{tpu_custom_call.1} parent=11 // pred_region
          _
        $region24: #{tpu_custom_call.1} parent=11 // pred_fallthru
          _
        // Predicated region
        $region25: #{tpu_custom_call.1} parent=11 // pred_check
          %p296 = pneg %p137
        $region26: #{tpu_custom_call.1} parent=11 // pred_check_branch
          %298 = sbr.rel (%p296) target = $region28
        $region27: #{tpu_custom_call.1} parent=11 // pred_region
          _
        $region28: #{tpu_custom_call.1} parent=11 // pred_fallthru
          _
        // Predicated region
        $region29: #{tpu_custom_call.1} parent=11 // pred_check
          %p299 = pneg %p158
        $region30: #{tpu_custom_call.1} parent=11 // pred_check_branch
          %301 = sbr.rel (%p299) target = $region32
        $region31: #{tpu_custom_call.1} parent=11 // pred_region
          _
        $region32: #{tpu_custom_call.1} parent=11 // pred_fallthru
          _
        // Predicated region
        $region33: #{tpu_custom_call.1} parent=11 // pred_check
          %p302 = pneg %p179
        $region34: #{tpu_custom_call.1} parent=11 // pred_check_branch
          %304 = sbr.rel (%p302) target = $region36
        $region35: #{tpu_custom_call.1} parent=11 // pred_region
          %s306 = ssub.s32 1024, 1024
          %307 = vsyncadd [#allocation9], %s306
          %s308 = sshll.u32 [#allocation8], 4
          %s309 = int_to_ptr.vmem [resolvable:$true] %s308
          %314 = dma.hbm_to_vmem [thread:$0]  %s6, 1024, %s309, [#allocation9], 64, 64, 4
        $region36: #{tpu_custom_call.1} parent=11 // pred_fallthru
          _
        // Predicated region
        $region37: #{tpu_custom_call.1} parent=11 // pred_check
          %p315 = pneg %p200
        $region38: #{tpu_custom_call.1} parent=11 // pred_check_branch
          %317 = sbr.rel (%p315) target = $region40
        $region39: #{tpu_custom_call.1} parent=11 // pred_region
          _
        $region40: #{tpu_custom_call.1} parent=11 // pred_fallthru
          _
      $region12: #{tpu_custom_call.1} parent=5 // pred_fallthru
        _
      %p318 = scmp.lt.s32.totalorder %s27, 2
      // Predicated region
      $region41: #{tpu_custom_call.1} parent=5 // pred_check
        %p319 = pneg %p318
      $region42: #{tpu_custom_call.1} parent=5 // pred_check_branch
        %321 = sbr.rel (%p319) target = $region44
      $region43: #{tpu_custom_call.1} parent=5 // pred_region
        // Predicated region
        $region45: #{tpu_custom_call.1} parent=43 // pred_check
          %p322 = pneg %p47
        $region46: #{tpu_custom_call.1} parent=43 // pred_check_branch
          %324 = sbr.rel (%p322) target = $region48
        $region47: #{tpu_custom_call.1} parent=43 // pred_region
          %s325 = sand.u32 %s37, 1
          %s326 = scalar_lea.sflag [#allocation3], %s325
          %s327 = sand.u32 %s37, 1
          %s328 = smul.addr %s327, 256
          %s329 = scalar_lea.vmem [#allocation2], %s328
          %s330 = smul.u32 32, %s27
          %s332 = ssub.s32 4096, 4096
          %333 = vsyncadd %s326, %s332
          %s334 = smul.addr %s330, 128
          %s335 = scalar_lea.hbm %s0, %s334
          %s336 = sshll.u32 %s329, 4
          %s337 = int_to_ptr.vmem [resolvable:$true] %s336
          %342 = dma.hbm_to_vmem [thread:$0]  %s335, 4096, %s337, %s326, 128, 128, 8
        $region48: #{tpu_custom_call.1} parent=43 // pred_fallthru
          _
      $region44: #{tpu_custom_call.1} parent=5 // pred_fallthru
        _
      %p343 = scmp.le.s32.totalorder 1, %s27
      %p344 = scmp.lt.s32.totalorder %s27, 3
      %p345 = pnand %p343, %p344
      %p346 = pneg %p345
      // Predicated region
      $region49: #{tpu_custom_call.1} parent=5 // pred_check
        _
      $region50: #{tpu_custom_call.1} parent=5 // pred_check_branch
        %348 = sbr.rel (%p345) target = $region52
      $region51: #{tpu_custom_call.1} parent=5 // pred_region
        %s349 = ssub.s32 %s27, 1
        %s350 = sand.u32 %s40, 1
        %s351 = scalar_lea.sflag [#allocation3], %s350
        %s352 = sand.u32 %s40, 1
        %s353 = smul.addr %s352, 256
        %s354 = scalar_lea.vmem [#allocation2], %s353
        // Predicated region
        $region53: #{tpu_custom_call.1} parent=51 // pred_check
          %p355 = pneg %p53
        $region54: #{tpu_custom_call.1} parent=51 // pred_check_branch
          %357 = sbr.rel (%p355) target = $region56
        $region55: #{tpu_custom_call.1} parent=51 // pred_region
          %358 = dma.done %s351, 4096
        $region56: #{tpu_custom_call.1} parent=51 // pred_fallthru
          _
        // Predicated region
        $region57: #{tpu_custom_call.1} parent=51 // pred_check
          %p359 = pneg %p74
        $region58: #{tpu_custom_call.1} parent=51 // pred_check_branch
          %361 = sbr.rel (%p359) target = $region60
        $region59: #{tpu_custom_call.1} parent=51 // pred_region
          %362 = dma.done [#allocation6], 1024
        $region60: #{tpu_custom_call.1} parent=51 // pred_fallthru
          _
        // Predicated region
        $region61: #{tpu_custom_call.1} parent=51 // pred_check
          %p363 = pneg %p95
        $region62: #{tpu_custom_call.1} parent=51 // pred_check_branch
          %365 = sbr.rel (%p363) target = $region64
        $region63: #{tpu_custom_call.1} parent=51 // pred_region
          %366 = dma.done [#allocation6], 1024
        $region64: #{tpu_custom_call.1} parent=51 // pred_fallthru
          _
        // Predicated region
        $region65: #{tpu_custom_call.1} parent=51 // pred_check
          %p367 = pneg %p179
        $region66: #{tpu_custom_call.1} parent=51 // pred_check_branch
          %369 = sbr.rel (%p367) target = $region68
        $region67: #{tpu_custom_call.1} parent=51 // pred_region
          %370 = dma.done [#allocation9], 1024
        $region68: #{tpu_custom_call.1} parent=51 // pred_fallthru
          _
        %s371 = sand.u32 %s40, 1
        %s372 = scalar_lea.sflag [#allocation3], %s371
        %s373 = sand.u32 %s40, 1
        %s374 = smul.addr %s373, 256
        %s375 = scalar_lea.vmem [#allocation2], %s374
        %p376 = pneg %p53
        %p377 = pneg %p50
        %p378 = pneg %p74
        %p379 = pneg %p71
        %p380 = pneg %p95
        %p381 = pneg %p92
        %p382 = pneg %p116
        %p383 = pneg %p113
        %p384 = pneg %p137
        %p385 = pneg %p134
        %p386 = pneg %p158
        %p387 = pneg %p155
        %p388 = pneg %p179
        %p389 = pneg %p176
        %p390 = pneg %p200
        %p391 = pneg %p197
        %p392 = pneg %p226
        %p393 = pneg %p223
        %s394 = sand.u32 %s213, 1
        %s395 = scalar_lea.sflag [#allocation4], %s394
        %s396 = sand.u32 %s213, 1
        %s397 = smul.addr %s396, 256
        %s398 = scalar_lea.vmem [#allocation10], %s397
        %p399 = pneg %p252
        %p400 = pneg %p249
        %s401 = sand.u32 %s239, 1
        %s402 = scalar_lea.sflag [#allocation12], %s401
        %s403 = sand.u32 %s239, 1
        %s404 = smul.addr %s403, 256
        %s405 = scalar_lea.vmem [#allocation11], %s404
        %s406 = smul.u32 32, %s32
        %s407 = smul.u32 32, %s32
        %s408 = smul.u32 32, %s32
        %v410 = vld [vmem:[%s5] sm:$0x1]
        %v411 = vld [vmem:[%s5 + $0x1] sm:$0x1]
        %v412 = vld [vmem:[%s5 + $0x2] sm:$0x1]
        %v413 = vld [vmem:[%s5 + $0x3] sm:$0x1]
        %v414 = vld [vmem:[%s354] sm:$0xff]
        %v415 = vld [vmem:[%s354 + $0x8] sm:$0xff]
        %v416 = vld [vmem:[%s354 + $0x10] sm:$0xff]
        %v417 = vld [vmem:[%s354 + $0x18] sm:$0xff]
        %v418 = vld [vmem:[%s354 + $0x20] sm:$0xff]
        %v419 = vld [vmem:[%s354 + $0x28] sm:$0xff]
        %v420 = vld [vmem:[%s354 + $0x30] sm:$0xff]
        %v421 = vld [vmem:[%s354 + $0x38] sm:$0xff]
        %v422 = vld [vmem:[%s354 + $0x40] sm:$0xff]
        %v423 = vld [vmem:[%s354 + $0x48] sm:$0xff]
        %v424 = vld [vmem:[%s354 + $0x50] sm:$0xff]
        %v425 = vld [vmem:[%s354 + $0x58] sm:$0xff]
        %v426 = vld [vmem:[%s354 + $0x60] sm:$0xff]
        %v427 = vld [vmem:[%s354 + $0x68] sm:$0xff]
        %v428 = vld [vmem:[%s354 + $0x70] sm:$0xff]
        %v429 = vld [vmem:[%s354 + $0x78] sm:$0xff]
        %v430 = vld [vmem:[%s354 + $0x80] sm:$0xff]
        %v431 = vld [vmem:[%s354 + $0x88] sm:$0xff]
        %v432 = vld [vmem:[%s354 + $0x90] sm:$0xff]
        %v433 = vld [vmem:[%s354 + $0x98] sm:$0xff]
        %v434 = vld [vmem:[%s354 + $0xa0] sm:$0xff]
        %v435 = vld [vmem:[%s354 + $0xa8] sm:$0xff]
        %v436 = vld [vmem:[%s354 + $0xb0] sm:$0xff]
        %v437 = vld [vmem:[%s354 + $0xb8] sm:$0xff]
        %v438 = vld [vmem:[%s354 + $0xc0] sm:$0xff]
        %v439 = vld [vmem:[%s354 + $0xc8] sm:$0xff]
        %v440 = vld [vmem:[%s354 + $0xd0] sm:$0xff]
        %v441 = vld [vmem:[%s354 + $0xd8] sm:$0xff]
        %v442 = vld [vmem:[%s354 + $0xe0] sm:$0xff]
        %v443 = vld [vmem:[%s354 + $0xe8] sm:$0xff]
        %v444 = vld [vmem:[%s354 + $0xf0] sm:$0xff]
        %v445 = vld [vmem:[%s354 + $0xf8] sm:$0xff]
        %v446 = vpack.c.bf16 %v415, %v414
        %v447 = vpack.c.bf16 %v417, %v416
        %v448 = vpack.c.bf16 %v419, %v418
        %v449 = vpack.c.bf16 %v421, %v420
        %v450 = vpack.c.bf16 %v423, %v422
        %v451 = vpack.c.bf16 %v425, %v424
        %v452 = vpack.c.bf16 %v427, %v426
        %v453 = vpack.c.bf16 %v429, %v428
        %v454 = vpack.c.bf16 %v431, %v430
        %v455 = vpack.c.bf16 %v433, %v432
        %v456 = vpack.c.bf16 %v435, %v434
        %v457 = vpack.c.bf16 %v437, %v436
        %v458 = vpack.c.bf16 %v439, %v438
        %v459 = vpack.c.bf16 %v441, %v440
        %v460 = vpack.c.bf16 %v443, %v442
        %v461 = vpack.c.bf16 %v445, %v444
        %v462 = vld [vmem:[#allocation5] sm:$0xf]
        %v463 = vld [vmem:[#allocation5 + $0x4] sm:$0xf]
        %v464 = vld [vmem:[#allocation5 + $0x8] sm:$0xf]
        %v465 = vld [vmem:[#allocation5 + $0xc] sm:$0xf]
        %v466 = vld [vmem:[#allocation5 + $0x10] sm:$0xf]
        %v467 = vld [vmem:[#allocation5 + $0x14] sm:$0xf]
        %v468 = vld [vmem:[#allocation5 + $0x18] sm:$0xf]
        %v469 = vld [vmem:[#allocation5 + $0x1c] sm:$0xf]
        %v470 = vld [vmem:[#allocation5 + $0x20] sm:$0xf]
        %v471 = vld [vmem:[#allocation5 + $0x24] sm:$0xf]
        %v472 = vld [vmem:[#allocation5 + $0x28] sm:$0xf]
        %v473 = vld [vmem:[#allocation5 + $0x2c] sm:$0xf]
        %v474 = vld [vmem:[#allocation5 + $0x30] sm:$0xf]
        %v475 = vld [vmem:[#allocation5 + $0x34] sm:$0xf]
        %v476 = vld [vmem:[#allocation5 + $0x38] sm:$0xf]
        %v477 = vld [vmem:[#allocation5 + $0x3c] sm:$0xf]
        %v478 = vlaneseq
        %v479 = vshrl.u32 %v478, 7
        %v480 = vsub.s32 0, %v479
        %v481 = vrot.slane %v410, %v480
        %v498 = vunpack.c.l.b16 %v462
        %v499 = vunpack.c.l.b16 %v463
        %v500 = vunpack.c.l.b16 %v464
        %v501 = vunpack.c.l.b16 %v465
        %v502 = vunpack.c.l.b16 %v466
        %v503 = vunpack.c.l.b16 %v467
        %v504 = vunpack.c.l.b16 %v468
        %v505 = vunpack.c.l.b16 %v469
        %v506 = vunpack.c.l.b16 %v470
        %v507 = vunpack.c.l.b16 %v471
        %v508 = vunpack.c.l.b16 %v472
        %v509 = vunpack.c.l.b16 %v473
        %v510 = vunpack.c.l.b16 %v474
        %v511 = vunpack.c.l.b16 %v475
        %v512 = vunpack.c.l.b16 %v476
        %v513 = vunpack.c.l.b16 %v477
        %v514 = vpack.c.b16 %v499, %v498
        %v515 = vpack.c.b16 %v501, %v500
        %v516 = vpack.c.b16 %v503, %v502
        %v517 = vpack.c.b16 %v505, %v504
        %v518 = vpack.c.b16 %v507, %v506
        %v519 = vpack.c.b16 %v509, %v508
        %v520 = vpack.c.b16 %v511, %v510
        %v521 = vpack.c.b16 %v513, %v512
        %530 = vmatprep.subr.bf16.mxu0 0
        %531 = vmatpush1.bf16.msra.mxu0 %v514
        %532 = vmatprep.subr.bf16.mxu0 0
        %533 = vmatpush1.bf16.msra.mxu0 %v515
        %534 = vmatprep.subr.bf16.mxu0 0
        %535 = vmatpush1.bf16.msra.mxu0 %v516
        %536 = vmatprep.subr.bf16.mxu0 0
        %537 = vmatpush1.bf16.msra.mxu0 %v517
        %538 = vmatprep.subr.bf16.mxu0 0
        %539 = vmatpush1.bf16.msra.mxu0 %v518
        %540 = vmatprep.subr.bf16.mxu0 0
        %541 = vmatpush1.bf16.msra.mxu0 %v519
        %542 = vmatprep.subr.bf16.mxu0 0
        %543 = vmatpush1.bf16.msra.mxu0 %v520
        %544 = vmatprep.subr.bf16.mxu0 0
        %545 = vmatpush1.bf16.msra.mxu0 %v521
        %546 = vmatprep.subr.bf16.mxu0 0
        %547 = vmatpush1.bf16.msra.mxu0 0
        %548 = vmatprep.subr.bf16.mxu0 0
        %549 = vmatpush1.bf16.msra.mxu0 0
        %550 = vmatprep.subr.bf16.mxu0 0
        %551 = vmatpush1.bf16.msra.mxu0 0
        %552 = vmatprep.subr.bf16.mxu0 0
        %553 = vmatpush1.bf16.msra.mxu0 0
        %554 = vmatprep.subr.bf16.mxu0 0
        %555 = vmatpush1.bf16.msra.mxu0 0
        %556 = vmatprep.subr.bf16.mxu0 0
        %557 = vmatpush1.bf16.msra.mxu0 0
        %558 = vmatprep.subr.bf16.mxu0 0
        %559 = vmatpush1.bf16.msra.mxu0 0
        %560 = vmatprep.subr.bf16.mxu0 0
        %561 = vmatpush1.bf16.msra.mxu0 0
        %562 = vmatprep.mubr.bf16.mxu0 0
        %563 = vmatmul.mubr.bf16.gmra.mrb[0].mxu0 %v446
        %v564 = vpop.f32.mrb[0].mxu0
        %v565 = vadd.f32 %v481, %v564
        %v566 = vpop.f32.mrb[0].mxu0
        %v567 = vpop.f32.mrb[0].mxu0
        %v568 = vadd.f32 %v481, %v567
        %v569 = vpop.f32.mrb[0].mxu0
        %570 = vmatprep.mubr.bf16.mxu0 0
        %571 = vmatmul.mubr.bf16.gmra.mrb[0].mxu0 %v447
        %v572 = vpop.f32.mrb[0].mxu0
        %v573 = vadd.f32 %v481, %v572
        %v574 = vpop.f32.mrb[0].mxu0
        %v575 = vpop.f32.mrb[0].mxu0
        %v576 = vadd.f32 %v481, %v575
        %v577 = vpop.f32.mrb[0].mxu0
        %578 = vmatprep.mubr.bf16.mxu0 0
        %579 = vmatmul.mubr.bf16.gmra.mrb[0].mxu0 %v448
        %v580 = vpop.f32.mrb[0].mxu0
        %v581 = vadd.f32 %v481, %v580
        %v582 = vpop.f32.mrb[0].mxu0
        %v583 = vpop.f32.mrb[0].mxu0
        %v584 = vadd.f32 %v481, %v583
        %v585 = vpop.f32.mrb[0].mxu0
        %586 = vmatprep.mubr.bf16.mxu0 0
        %587 = vmatmul.mubr.bf16.gmra.mrb[0].mxu0 %v449
        %v588 = vpop.f32.mrb[0].mxu0
        %v589 = vadd.f32 %v481, %v588
        %v590 = vpop.f32.mrb[0].mxu0
        %v591 = vpop.f32.mrb[0].mxu0
        %v592 = vadd.f32 %v481, %v591
        %v593 = vpop.f32.mrb[0].mxu0
        %594 = vmatprep.mubr.bf16.mxu0 0
        %595 = vmatmul.mubr.bf16.gmra.mrb[0].mxu0 %v450
        %v596 = vpop.f32.mrb[0].mxu0
        %v597 = vadd.f32 %v481, %v596
        %v598 = vpop.f32.mrb[0].mxu0
        %v599 = vpop.f32.mrb[0].mxu0
        %v600 = vadd.f32 %v481, %v599
        %v601 = vpop.f32.mrb[0].mxu0
        %602 = vmatprep.mubr.bf16.mxu0 0
        %603 = vmatmul.mubr.bf16.gmra.mrb[0].mxu0 %v451
        %v604 = vpop.f32.mrb[0].mxu0
        %v605 = vadd.f32 %v481, %v604
        %v606 = vpop.f32.mrb[0].mxu0
        %v607 = vpop.f32.mrb[0].mxu0
        %v608 = vadd.f32 %v481, %v607
        %v609 = vpop.f32.mrb[0].mxu0
        %610 = vmatprep.mubr.bf16.mxu0 0
        %611 = vmatmul.mubr.bf16.gmra.mrb[0].mxu0 %v452
        %v612 = vpop.f32.mrb[0].mxu0
        %v613 = vadd.f32 %v481, %v612
        %v614 = vpop.f32.mrb[0].mxu0
        %v615 = vpop.f32.mrb[0].mxu0
        %v616 = vadd.f32 %v481, %v615
        %v617 = vpop.f32.mrb[0].mxu0
        %618 = vmatprep.mubr.bf16.mxu0 0
        %619 = vmatmul.mubr.bf16.gmra.mrb[0].mxu0 %v453
        %v620 = vpop.f32.mrb[0].mxu0
        %v621 = vadd.f32 %v481, %v620
        %v622 = vpop.f32.mrb[0].mxu0
        %v623 = vpop.f32.mrb[0].mxu0
        %v624 = vadd.f32 %v481, %v623
        %v625 = vpop.f32.mrb[0].mxu0
        %626 = vmatprep.mubr.bf16.mxu0 0
        %627 = vmatmul.mubr.bf16.gmra.mrb[0].mxu0 %v454
        %v628 = vpop.f32.mrb[0].mxu0
        %v629 = vadd.f32 %v481, %v628
        %v630 = vpop.f32.mrb[0].mxu0
        %v631 = vpop.f32.mrb[0].mxu0
        %v632 = vadd.f32 %v481, %v631
        %v633 = vpop.f32.mrb[0].mxu0
        %634 = vmatprep.mubr.bf16.mxu0 0
        %635 = vmatmul.mubr.bf16.gmra.mrb[0].mxu0 %v455
        %v636 = vpop.f32.mrb[0].mxu0
        %v637 = vadd.f32 %v481, %v636
        %v638 = vpop.f32.mrb[0].mxu0
        %v639 = vpop.f32.mrb[0].mxu0
        %v640 = vadd.f32 %v481, %v639
        %v641 = vpop.f32.mrb[0].mxu0
        %642 = vmatprep.mubr.bf16.mxu0 0
        %643 = vmatmul.mubr.bf16.gmra.mrb[0].mxu0 %v456
        %v644 = vpop.f32.mrb[0].mxu0
        %v645 = vadd.f32 %v481, %v644
        %v646 = vpop.f32.mrb[0].mxu0
        %v647 = vpop.f32.mrb[0].mxu0
        %v648 = vadd.f32 %v481, %v647
        %v649 = vpop.f32.mrb[0].mxu0
        %650 = vmatprep.mubr.bf16.mxu0 0
        %651 = vmatmul.mubr.bf16.gmra.mrb[0].mxu0 %v457
        %v652 = vpop.f32.mrb[0].mxu0
        %v653 = vadd.f32 %v481, %v652
        %v654 = vpop.f32.mrb[0].mxu0
        %v655 = vpop.f32.mrb[0].mxu0
        %v656 = vadd.f32 %v481, %v655
        %v657 = vpop.f32.mrb[0].mxu0
        %658 = vmatprep.mubr.bf16.mxu0 0
        %659 = vmatmul.mubr.bf16.gmra.mrb[0].mxu0 %v458
        %v660 = vpop.f32.mrb[0].mxu0
        %v661 = vadd.f32 %v481, %v660
        %v662 = vpop.f32.mrb[0].mxu0
        %v663 = vpop.f32.mrb[0].mxu0
        %v664 = vadd.f32 %v481, %v663
        %v665 = vpop.f32.mrb[0].mxu0
        %666 = vmatprep.mubr.bf16.mxu0 0
        %667 = vmatmul.mubr.bf16.gmra.mrb[0].mxu0 %v459
        %v668 = vpop.f32.mrb[0].mxu0
        %v669 = vadd.f32 %v481, %v668
        %v670 = vpop.f32.mrb[0].mxu0
        %v671 = vpop.f32.mrb[0].mxu0
        %v672 = vadd.f32 %v481, %v671
        %v673 = vpop.f32.mrb[0].mxu0
        %674 = vmatprep.mubr.bf16.mxu0 0
        %675 = vmatmul.mubr.bf16.gmra.mrb[0].mxu0 %v460
        %v676 = vpop.f32.mrb[0].mxu0
        %v677 = vadd.f32 %v481, %v676
        %v678 = vpop.f32.mrb[0].mxu0
        %v679 = vpop.f32.mrb[0].mxu0
        %v680 = vadd.f32 %v481, %v679
        %v681 = vpop.f32.mrb[0].mxu0
        %682 = vmatprep.mubr.bf16.mxu0 0
        %683 = vmatmul.mubr.bf16.gmra.mrb[0].mxu0 %v461
        %v684 = vpop.f32.mrb[0].mxu0
        %v685 = vadd.f32 %v481, %v684
        %v686 = vpop.f32.mrb[0].mxu0
        %v687 = vpop.f32.mrb[0].mxu0
        %v688 = vadd.f32 %v481, %v687
        %v689 = vpop.f32.mrb[0].mxu0
        %690 = vdwg.mxu0
        %691 = vadd.xlane.f32.xlu0 %v565
        %v692 = vpop.xlane.xlu0 %691
        %693 = vadd.xlane.f32.xlu0 %v568
        %v694 = vpop.xlane.xlu0 %693
        %695 = vadd.xlane.f32.xlu0 %v573
        %v696 = vpop.xlane.xlu0 %695
        %697 = vadd.xlane.f32.xlu0 %v576
        %v698 = vpop.xlane.xlu0 %697
        %699 = vadd.xlane.f32.xlu0 %v581
        %v700 = vpop.xlane.xlu0 %699
        %701 = vadd.xlane.f32.xlu0 %v584
        %v702 = vpop.xlane.xlu0 %701
        %703 = vadd.xlane.f32.xlu0 %v589
        %v704 = vpop.xlane.xlu0 %703
        %705 = vadd.xlane.f32.xlu0 %v592
        %v706 = vpop.xlane.xlu0 %705
        %707 = vadd.xlane.f32.xlu0 %v597
        %v708 = vpop.xlane.xlu0 %707
        %709 = vadd.xlane.f32.xlu0 %v600
        %v710 = vpop.xlane.xlu0 %709
        %711 = vadd.xlane.f32.xlu0 %v605
        %v712 = vpop.xlane.xlu0 %711
        %713 = vadd.xlane.f32.xlu0 %v608
        %v714 = vpop.xlane.xlu0 %713
        %715 = vadd.xlane.f32.xlu0 %v613
        %v716 = vpop.xlane.xlu0 %715
        %717 = vadd.xlane.f32.xlu0 %v616
        %v718 = vpop.xlane.xlu0 %717
        %719 = vadd.xlane.f32.xlu0 %v621
        %v720 = vpop.xlane.xlu0 %719
        %721 = vadd.xlane.f32.xlu0 %v624
        %v722 = vpop.xlane.xlu0 %721
        %723 = vadd.xlane.f32.xlu0 %v629
        %v724 = vpop.xlane.xlu0 %723
        %725 = vadd.xlane.f32.xlu0 %v632
        %v726 = vpop.xlane.xlu0 %725
        %727 = vadd.xlane.f32.xlu0 %v637
        %v728 = vpop.xlane.xlu0 %727
        %729 = vadd.xlane.f32.xlu0 %v640
        %v730 = vpop.xlane.xlu0 %729
        %731 = vadd.xlane.f32.xlu0 %v645
        %v732 = vpop.xlane.xlu0 %731
        %733 = vadd.xlane.f32.xlu0 %v648
        %v734 = vpop.xlane.xlu0 %733
        %735 = vadd.xlane.f32.xlu0 %v653
        %v736 = vpop.xlane.xlu0 %735
        %737 = vadd.xlane.f32.xlu0 %v656
        %v738 = vpop.xlane.xlu0 %737
        %739 = vadd.xlane.f32.xlu0 %v661
        %v740 = vpop.xlane.xlu0 %739
        %741 = vadd.xlane.f32.xlu0 %v664
        %v742 = vpop.xlane.xlu0 %741
        %743 = vadd.xlane.f32.xlu0 %v669
        %v744 = vpop.xlane.xlu0 %743
        %745 = vadd.xlane.f32.xlu0 %v672
        %v746 = vpop.xlane.xlu0 %745
        %747 = vadd.xlane.f32.xlu0 %v677
        %v748 = vpop.xlane.xlu0 %747
        %749 = vadd.xlane.f32.xlu0 %v680
        %v750 = vpop.xlane.xlu0 %749
        %751 = vadd.xlane.f32.xlu0 %v685
        %v752 = vpop.xlane.xlu0 %751
        %753 = vadd.xlane.f32.xlu0 %v688
        %v754 = vpop.xlane.xlu0 %753
        %v755 = vrcp.pop 128.0
        %v756 = vmul.f32 %v692, %v755
        %v757 = vmul.f32 %v694, %v755
        %v758 = vmul.f32 %v696, %v755
        %v759 = vmul.f32 %v698, %v755
        %v760 = vmul.f32 %v700, %v755
        %v761 = vmul.f32 %v702, %v755
        %v762 = vmul.f32 %v704, %v755
        %v763 = vmul.f32 %v706, %v755
        %v764 = vmul.f32 %v708, %v755
        %v765 = vmul.f32 %v710, %v755
        %v766 = vmul.f32 %v712, %v755
        %v767 = vmul.f32 %v714, %v755
        %v768 = vmul.f32 %v716, %v755
        %v769 = vmul.f32 %v718, %v755
        %v770 = vmul.f32 %v720, %v755
        %v771 = vmul.f32 %v722, %v755
        %v772 = vmul.f32 %v724, %v755
        %v773 = vmul.f32 %v726, %v755
        %v774 = vmul.f32 %v728, %v755
        %v775 = vmul.f32 %v730, %v755
        %v776 = vmul.f32 %v732, %v755
        %v777 = vmul.f32 %v734, %v755
        %v778 = vmul.f32 %v736, %v755
        %v779 = vmul.f32 %v738, %v755
        %v780 = vmul.f32 %v740, %v755
        %v781 = vmul.f32 %v742, %v755
        %v782 = vmul.f32 %v744, %v755
        %v783 = vmul.f32 %v746, %v755
        %v784 = vmul.f32 %v748, %v755
        %v785 = vmul.f32 %v750, %v755
        %v786 = vmul.f32 %v752, %v755
        %v787 = vmul.f32 %v754, %v755
        %v788 = vsub.f32 %v565, %v756
        %v789 = vsub.f32 %v568, %v757
        %v790 = vsub.f32 %v573, %v758
        %v791 = vsub.f32 %v576, %v759
        %v792 = vsub.f32 %v581, %v760
        %v793 = vsub.f32 %v584, %v761
        %v794 = vsub.f32 %v589, %v762
        %v795 = vsub.f32 %v592, %v763
        %v796 = vsub.f32 %v597, %v764
        %v797 = vsub.f32 %v600, %v765
        %v798 = vsub.f32 %v605, %v766
        %v799 = vsub.f32 %v608, %v767
        %v800 = vsub.f32 %v613, %v768
        %v801 = vsub.f32 %v616, %v769
        %v802 = vsub.f32 %v621, %v770
        %v803 = vsub.f32 %v624, %v771
        %v804 = vsub.f32 %v629, %v772
        %v805 = vsub.f32 %v632, %v773
        %v806 = vsub.f32 %v637, %v774
        %v807 = vsub.f32 %v640, %v775
        %v808 = vsub.f32 %v645, %v776
        %v809 = vsub.f32 %v648, %v777
        %v810 = vsub.f32 %v653, %v778
        %v811 = vsub.f32 %v656, %v779
        %v812 = vsub.f32 %v661, %v780
        %v813 = vsub.f32 %v664, %v781
        %v814 = vsub.f32 %v669, %v782
        %v815 = vsub.f32 %v672, %v783
        %v816 = vsub.f32 %v677, %v784
        %v817 = vsub.f32 %v680, %v785
        %v818 = vsub.f32 %v685, %v786
        %v819 = vsub.f32 %v688, %v787
        %v820 = vmul.f32 %v788, %v788
        %v821 = vmul.f32 %v789, %v789
        %v822 = vmul.f32 %v790, %v790
        %v823 = vmul.f32 %v791, %v791
        %v824 = vmul.f32 %v792, %v792
        %v825 = vmul.f32 %v793, %v793
        %v826 = vmul.f32 %v794, %v794
        %v827 = vmul.f32 %v795, %v795
        %v828 = vmul.f32 %v796, %v796
        %v829 = vmul.f32 %v797, %v797
        %v830 = vmul.f32 %v798, %v798
        %v831 = vmul.f32 %v799, %v799
        %v832 = vmul.f32 %v800, %v800
        %v833 = vmul.f32 %v801, %v801
        %v834 = vmul.f32 %v802, %v802
        %v835 = vmul.f32 %v803, %v803
        %v836 = vmul.f32 %v804, %v804
        %v837 = vmul.f32 %v805, %v805
        %v838 = vmul.f32 %v806, %v806
        %v839 = vmul.f32 %v807, %v807
        %v840 = vmul.f32 %v808, %v808
        %v841 = vmul.f32 %v809, %v809
        %v842 = vmul.f32 %v810, %v810
        %v843 = vmul.f32 %v811, %v811
        %v844 = vmul.f32 %v812, %v812
        %v845 = vmul.f32 %v813, %v813
        %v846 = vmul.f32 %v814, %v814
        %v847 = vmul.f32 %v815, %v815
        %v848 = vmul.f32 %v816, %v816
        %v849 = vmul.f32 %v817, %v817
        %v850 = vmul.f32 %v818, %v818
        %v851 = vmul.f32 %v819, %v819
        %852 = vadd.xlane.f32.xlu0 %v820
        %v853 = vpop.xlane.xlu0 %852
        %854 = vadd.xlane.f32.xlu0 %v821
        %v855 = vpop.xlane.xlu0 %854
        %856 = vadd.xlane.f32.xlu0 %v822
        %v857 = vpop.xlane.xlu0 %856
        %858 = vadd.xlane.f32.xlu0 %v823
        %v859 = vpop.xlane.xlu0 %858
        %860 = vadd.xlane.f32.xlu0 %v824
        %v861 = vpop.xlane.xlu0 %860
        %862 = vadd.xlane.f32.xlu0 %v825
        %v863 = vpop.xlane.xlu0 %862
        %864 = vadd.xlane.f32.xlu0 %v826
        %v865 = vpop.xlane.xlu0 %864
        %866 = vadd.xlane.f32.xlu0 %v827
        %v867 = vpop.xlane.xlu0 %866
        %868 = vadd.xlane.f32.xlu0 %v828
        %v869 = vpop.xlane.xlu0 %868
        %870 = vadd.xlane.f32.xlu0 %v829
        %v871 = vpop.xlane.xlu0 %870
        %872 = vadd.xlane.f32.xlu0 %v830
        %v873 = vpop.xlane.xlu0 %872
        %874 = vadd.xlane.f32.xlu0 %v831
        %v875 = vpop.xlane.xlu0 %874
        %876 = vadd.xlane.f32.xlu0 %v832
        %v877 = vpop.xlane.xlu0 %876
        %878 = vadd.xlane.f32.xlu0 %v833
        %v879 = vpop.xlane.xlu0 %878
        %880 = vadd.xlane.f32.xlu0 %v834
        %v881 = vpop.xlane.xlu0 %880
        %882 = vadd.xlane.f32.xlu0 %v835
        %v883 = vpop.xlane.xlu0 %882
        %884 = vadd.xlane.f32.xlu0 %v836
        %v885 = vpop.xlane.xlu0 %884
        %886 = vadd.xlane.f32.xlu0 %v837
        %v887 = vpop.xlane.xlu0 %886
        %888 = vadd.xlane.f32.xlu0 %v838
        %v889 = vpop.xlane.xlu0 %888
        %890 = vadd.xlane.f32.xlu0 %v839
        %v891 = vpop.xlane.xlu0 %890
        %892 = vadd.xlane.f32.xlu0 %v840
        %v893 = vpop.xlane.xlu0 %892
        %894 = vadd.xlane.f32.xlu0 %v841
        %v895 = vpop.xlane.xlu0 %894
        %896 = vadd.xlane.f32.xlu0 %v842
        %v897 = vpop.xlane.xlu0 %896
        %898 = vadd.xlane.f32.xlu0 %v843
        %v899 = vpop.xlane.xlu0 %898
        %900 = vadd.xlane.f32.xlu0 %v844
        %v901 = vpop.xlane.xlu0 %900
        %902 = vadd.xlane.f32.xlu0 %v845
        %v903 = vpop.xlane.xlu0 %902
        %904 = vadd.xlane.f32.xlu0 %v846
        %v905 = vpop.xlane.xlu0 %904
        %906 = vadd.xlane.f32.xlu0 %v847
        %v907 = vpop.xlane.xlu0 %906
        %908 = vadd.xlane.f32.xlu0 %v848
        %v909 = vpop.xlane.xlu0 %908
        %910 = vadd.xlane.f32.xlu0 %v849
        %v911 = vpop.xlane.xlu0 %910
        %912 = vadd.xlane.f32.xlu0 %v850
        %v913 = vpop.xlane.xlu0 %912
        %914 = vadd.xlane.f32.xlu0 %v851
        %v915 = vpop.xlane.xlu0 %914
        %v916 = vmul.f32 %v853, %v755
        %v917 = vmul.f32 %v855, %v755
        %v918 = vmul.f32 %v857, %v755
        %v919 = vmul.f32 %v859, %v755
        %v920 = vmul.f32 %v861, %v755
        %v921 = vmul.f32 %v863, %v755
        %v922 = vmul.f32 %v865, %v755
        %v923 = vmul.f32 %v867, %v755
        %v924 = vmul.f32 %v869, %v755
        %v925 = vmul.f32 %v871, %v755
        %v926 = vmul.f32 %v873, %v755
        %v927 = vmul.f32 %v875, %v755
        %v928 = vmul.f32 %v877, %v755
        %v929 = vmul.f32 %v879, %v755
        %v930 = vmul.f32 %v881, %v755
        %v931 = vmul.f32 %v883, %v755
        %v932 = vmul.f32 %v885, %v755
        %v933 = vmul.f32 %v887, %v755
        %v934 = vmul.f32 %v889, %v755
        %v935 = vmul.f32 %v891, %v755
        %v936 = vmul.f32 %v893, %v755
        %v937 = vmul.f32 %v895, %v755
        %v938 = vmul.f32 %v897, %v755
        %v939 = vmul.f32 %v899, %v755
        %v940 = vmul.f32 %v901, %v755
        %v941 = vmul.f32 %v903, %v755
        %v942 = vmul.f32 %v905, %v755
        %v943 = vmul.f32 %v907, %v755
        %v944 = vmul.f32 %v909, %v755
        %v945 = vmul.f32 %v911, %v755
        %v946 = vmul.f32 %v913, %v755
        %v947 = vmul.f32 %v915, %v755
        %v948 = vadd.f32 %v916, 1e-05
        %v949 = vadd.f32 %v917, 1e-05
        %v950 = vadd.f32 %v918, 1e-05
        %v951 = vadd.f32 %v919, 1e-05
        %v952 = vadd.f32 %v920, 1e-05
        %v953 = vadd.f32 %v921, 1e-05
        %v954 = vadd.f32 %v922, 1e-05
        %v955 = vadd.f32 %v923, 1e-05
        %v956 = vadd.f32 %v924, 1e-05
        %v957 = vadd.f32 %v925, 1e-05
        %v958 = vadd.f32 %v926, 1e-05
        %v959 = vadd.f32 %v927, 1e-05
        %v960 = vadd.f32 %v928, 1e-05
        %v961 = vadd.f32 %v929, 1e-05
        %v962 = vadd.f32 %v930, 1e-05
        %v963 = vadd.f32 %v931, 1e-05
        %v964 = vadd.f32 %v932, 1e-05
        %v965 = vadd.f32 %v933, 1e-05
        %v966 = vadd.f32 %v934, 1e-05
        %v967 = vadd.f32 %v935, 1e-05
        %v968 = vadd.f32 %v936, 1e-05
        %v969 = vadd.f32 %v937, 1e-05
        %v970 = vadd.f32 %v938, 1e-05
        %v971 = vadd.f32 %v939, 1e-05
        %v972 = vadd.f32 %v940, 1e-05
        %v973 = vadd.f32 %v941, 1e-05
        %v974 = vadd.f32 %v942, 1e-05
        %v975 = vadd.f32 %v943, 1e-05
        %v976 = vadd.f32 %v944, 1e-05
        %v977 = vadd.f32 %v945, 1e-05
        %v978 = vadd.f32 %v946, 1e-05
        %v979 = vadd.f32 %v947, 1e-05
        %v980 = vrsqrt.pop %v948
        %v981 = vrsqrt.pop %v949
        %v982 = vrsqrt.pop %v950
        %v983 = vrsqrt.pop %v951
        %v984 = vrsqrt.pop %v952
        %v985 = vrsqrt.pop %v953
        %v986 = vrsqrt.pop %v954
        %v987 = vrsqrt.pop %v955
        %v988 = vrsqrt.pop %v956
        %v989 = vrsqrt.pop %v957
        %v990 = vrsqrt.pop %v958
        %v991 = vrsqrt.pop %v959
        %v992 = vrsqrt.pop %v960
        %v993 = vrsqrt.pop %v961
        %v994 = vrsqrt.pop %v962
        %v995 = vrsqrt.pop %v963
        %v996 = vrsqrt.pop %v964
        %v997 = vrsqrt.pop %v965
        %v998 = vrsqrt.pop %v966
        %v999 = vrsqrt.pop %v967
        %v1000 = vrsqrt.pop %v968
        %v1001 = vrsqrt.pop %v969
        %v1002 = vrsqrt.pop %v970
        %v1003 = vrsqrt.pop %v971
        %v1004 = vrsqrt.pop %v972
        %v1005 = vrsqrt.pop %v973
        %v1006 = vrsqrt.pop %v974
        %v1007 = vrsqrt.pop %v975
        %v1008 = vrsqrt.pop %v976
        %v1009 = vrsqrt.pop %v977
        %v1010 = vrsqrt.pop %v978
        %v1011 = vrsqrt.pop %v979
        %v1012 = vmul.f32 %v788, %v980
        %v1013 = vmul.f32 %v789, %v981
        %v1014 = vmul.f32 %v790, %v982
        %v1015 = vmul.f32 %v791, %v983
        %v1016 = vmul.f32 %v792, %v984
        %v1017 = vmul.f32 %v793, %v985
        %v1018 = vmul.f32 %v794, %v986
        %v1019 = vmul.f32 %v795, %v987
        %v1020 = vmul.f32 %v796, %v988
        %v1021 = vmul.f32 %v797, %v989
        %v1022 = vmul.f32 %v798, %v990
        %v1023 = vmul.f32 %v799, %v991
        %v1024 = vmul.f32 %v800, %v992
        %v1025 = vmul.f32 %v801, %v993
        %v1026 = vmul.f32 %v802, %v994
        %v1027 = vmul.f32 %v803, %v995
        %v1028 = vmul.f32 %v804, %v996
        %v1029 = vmul.f32 %v805, %v997
        %v1030 = vmul.f32 %v806, %v998
        %v1031 = vmul.f32 %v807, %v999
        %v1032 = vmul.f32 %v808, %v1000
        %v1033 = vmul.f32 %v809, %v1001
        %v1034 = vmul.f32 %v810, %v1002
        %v1035 = vmul.f32 %v811, %v1003
        %v1036 = vmul.f32 %v812, %v1004
        %v1037 = vmul.f32 %v813, %v1005
        %v1038 = vmul.f32 %v814, %v1006
        %v1039 = vmul.f32 %v815, %v1007
        %v1040 = vmul.f32 %v816, %v1008
        %v1041 = vmul.f32 %v817, %v1009
        %v1042 = vmul.f32 %v818, %v1010
        %v1043 = vmul.f32 %v819, %v1011
        %v1044 = vlaneseq
        %v1045 = vshrl.u32 %v1044, 7
        %v1046 = vsub.s32 0, %v1045
        %v1047 = vrot.slane %v411, %v1046
        %v1048 = vmul.f32 %v1012, %v1047
        %v1049 = vmul.f32 %v1013, %v1047
        %v1050 = vmul.f32 %v1014, %v1047
        %v1051 = vmul.f32 %v1015, %v1047
        %v1052 = vmul.f32 %v1016, %v1047
        %v1053 = vmul.f32 %v1017, %v1047
        %v1054 = vmul.f32 %v1018, %v1047
        %v1055 = vmul.f32 %v1019, %v1047
        %v1056 = vmul.f32 %v1020, %v1047
        %v1057 = vmul.f32 %v1021, %v1047
        %v1058 = vmul.f32 %v1022, %v1047
        %v1059 = vmul.f32 %v1023, %v1047
        %v1060 = vmul.f32 %v1024, %v1047
        %v1061 = vmul.f32 %v1025, %v1047
        %v1062 = vmul.f32 %v1026, %v1047
        %v1063 = vmul.f32 %v1027, %v1047
        %v1064 = vmul.f32 %v1028, %v1047
        %v1065 = vmul.f32 %v1029, %v1047
        %v1066 = vmul.f32 %v1030, %v1047
        %v1067 = vmul.f32 %v1031, %v1047
        %v1068 = vmul.f32 %v1032, %v1047
        %v1069 = vmul.f32 %v1033, %v1047
        %v1070 = vmul.f32 %v1034, %v1047
        %v1071 = vmul.f32 %v1035, %v1047
        %v1072 = vmul.f32 %v1036, %v1047
        %v1073 = vmul.f32 %v1037, %v1047
        %v1074 = vmul.f32 %v1038, %v1047
        %v1075 = vmul.f32 %v1039, %v1047
        %v1076 = vmul.f32 %v1040, %v1047
        %v1077 = vmul.f32 %v1041, %v1047
        %v1078 = vmul.f32 %v1042, %v1047
        %v1079 = vmul.f32 %v1043, %v1047
        %v1080 = vlaneseq
        %v1081 = vshrl.u32 %v1080, 7
        %v1082 = vsub.s32 0, %v1081
        %v1083 = vrot.slane %v412, %v1082
        %v1084 = vadd.f32 %v1048, %v1083
        %v1085 = vadd.f32 %v1049, %v1083
        %v1086 = vadd.f32 %v1050, %v1083
        %v1087 = vadd.f32 %v1051, %v1083
        %v1088 = vadd.f32 %v1052, %v1083
        %v1089 = vadd.f32 %v1053, %v1083
        %v1090 = vadd.f32 %v1054, %v1083
        %v1091 = vadd.f32 %v1055, %v1083
        %v1092 = vadd.f32 %v1056, %v1083
        %v1093 = vadd.f32 %v1057, %v1083
        %v1094 = vadd.f32 %v1058, %v1083
        %v1095 = vadd.f32 %v1059, %v1083
        %v1096 = vadd.f32 %v1060, %v1083
        %v1097 = vadd.f32 %v1061, %v1083
        %v1098 = vadd.f32 %v1062, %v1083
        %v1099 = vadd.f32 %v1063, %v1083
        %v1100 = vadd.f32 %v1064, %v1083
        %v1101 = vadd.f32 %v1065, %v1083
        %v1102 = vadd.f32 %v1066, %v1083
        %v1103 = vadd.f32 %v1067, %v1083
        %v1104 = vadd.f32 %v1068, %v1083
        %v1105 = vadd.f32 %v1069, %v1083
        %v1106 = vadd.f32 %v1070, %v1083
        %v1107 = vadd.f32 %v1071, %v1083
        %v1108 = vadd.f32 %v1072, %v1083
        %v1109 = vadd.f32 %v1073, %v1083
        %v1110 = vadd.f32 %v1074, %v1083
        %v1111 = vadd.f32 %v1075, %v1083
        %v1112 = vadd.f32 %v1076, %v1083
        %v1113 = vadd.f32 %v1077, %v1083
        %v1114 = vadd.f32 %v1078, %v1083
        %v1115 = vadd.f32 %v1079, %v1083
        %v1116 = vpack.c.bf16 %v1085, %v1084
        %v1117 = vpack.c.bf16 %v1087, %v1086
        %v1118 = vpack.c.bf16 %v1089, %v1088
        %v1119 = vpack.c.bf16 %v1091, %v1090
        %v1120 = vpack.c.bf16 %v1093, %v1092
        %v1121 = vpack.c.bf16 %v1095, %v1094
        %v1122 = vpack.c.bf16 %v1097, %v1096
        %v1123 = vpack.c.bf16 %v1099, %v1098
        %v1124 = vpack.c.bf16 %v1101, %v1100
        %v1125 = vpack.c.bf16 %v1103, %v1102
        %v1126 = vpack.c.bf16 %v1105, %v1104
        %v1127 = vpack.c.bf16 %v1107, %v1106
        %v1128 = vpack.c.bf16 %v1109, %v1108
        %v1129 = vpack.c.bf16 %v1111, %v1110
        %v1130 = vpack.c.bf16 %v1113, %v1112
        %v1131 = vpack.c.bf16 %v1115, %v1114
        %v1132 = vld [vmem:[#allocation7] sm:$0xf]
        %v1133 = vld [vmem:[#allocation7 + $0x4] sm:$0xf]
        %v1134 = vld [vmem:[#allocation7 + $0x8] sm:$0xf]
        %v1135 = vld [vmem:[#allocation7 + $0xc] sm:$0xf]
        %v1136 = vld [vmem:[#allocation7 + $0x10] sm:$0xf]
        %v1137 = vld [vmem:[#allocation7 + $0x14] sm:$0xf]
        %v1138 = vld [vmem:[#allocation7 + $0x18] sm:$0xf]
        %v1139 = vld [vmem:[#allocation7 + $0x1c] sm:$0xf]
        %v1140 = vld [vmem:[#allocation7 + $0x20] sm:$0xf]
        %v1141 = vld [vmem:[#allocation7 + $0x24] sm:$0xf]
        %v1142 = vld [vmem:[#allocation7 + $0x28] sm:$0xf]
        %v1143 = vld [vmem:[#allocation7 + $0x2c] sm:$0xf]
        %v1144 = vld [vmem:[#allocation7 + $0x30] sm:$0xf]
        %v1145 = vld [vmem:[#allocation7 + $0x34] sm:$0xf]
        %v1146 = vld [vmem:[#allocation7 + $0x38] sm:$0xf]
        %v1147 = vld [vmem:[#allocation7 + $0x3c] sm:$0xf]
        %v1148 = vlaneseq
        %v1149 = vshrl.u32 %v1148, 7
        %v1150 = vsub.s32 0, %v1149
        %v1151 = vrot.slane %v413, %v1150
        %v1168 = vunpack.c.l.b16 %v1132
        %v1169 = vunpack.c.l.b16 %v1133
        %v1170 = vunpack.c.l.b16 %v1134
        %v1171 = vunpack.c.l.b16 %v1135
        %v1172 = vunpack.c.l.b16 %v1136
        %v1173 = vunpack.c.l.b16 %v1137
        %v1174 = vunpack.c.l.b16 %v1138
        %v1175 = vunpack.c.l.b16 %v1139
        %v1176 = vunpack.c.l.b16 %v1140
        %v1177 = vunpack.c.l.b16 %v1141
        %v1178 = vunpack.c.l.b16 %v1142
        %v1179 = vunpack.c.l.b16 %v1143
        %v1180 = vunpack.c.l.b16 %v1144
        %v1181 = vunpack.c.l.b16 %v1145
        %v1182 = vunpack.c.l.b16 %v1146
        %v1183 = vunpack.c.l.b16 %v1147
        %v1184 = vpack.c.b16 %v1169, %v1168
        %v1185 = vpack.c.b16 %v1171, %v1170
        %v1186 = vpack.c.b16 %v1173, %v1172
        %v1187 = vpack.c.b16 %v1175, %v1174
        %v1188 = vpack.c.b16 %v1177, %v1176
        %v1189 = vpack.c.b16 %v1179, %v1178
        %v1190 = vpack.c.b16 %v1181, %v1180
        %v1191 = vpack.c.b16 %v1183, %v1182
        %1200 = vmatprep.subr.bf16.mxu0 0
        %1201 = vmatpush1.bf16.msra.mxu0 %v1184
        %1202 = vmatprep.subr.bf16.mxu0 0
        %1203 = vmatpush1.bf16.msra.mxu0 %v1185
        %1204 = vmatprep.subr.bf16.mxu0 0
        %1205 = vmatpush1.bf16.msra.mxu0 %v1186
        %1206 = vmatprep.subr.bf16.mxu0 0
        %1207 = vmatpush1.bf16.msra.mxu0 %v1187
        %1208 = vmatprep.subr.bf16.mxu0 0
        %1209 = vmatpush1.bf16.msra.mxu0 %v1188
        %1210 = vmatprep.subr.bf16.mxu0 0
        %1211 = vmatpush1.bf16.msra.mxu0 %v1189
        %1212 = vmatprep.subr.bf16.mxu0 0
        %1213 = vmatpush1.bf16.msra.mxu0 %v1190
        %1214 = vmatprep.subr.bf16.mxu0 0
        %1215 = vmatpush1.bf16.msra.mxu0 %v1191
        %1216 = vmatprep.subr.bf16.mxu0 0
        %1217 = vmatpush1.bf16.msra.mxu0 0
        %1218 = vmatprep.subr.bf16.mxu0 0
        %1219 = vmatpush1.bf16.msra.mxu0 0
        %1220 = vmatprep.subr.bf16.mxu0 0
        %1221 = vmatpush1.bf16.msra.mxu0 0
        %1222 = vmatprep.subr.bf16.mxu0 0
        %1223 = vmatpush1.bf16.msra.mxu0 0
        %1224 = vmatprep.subr.bf16.mxu0 0
        %1225 = vmatpush1.bf16.msra.mxu0 0
        %1226 = vmatprep.subr.bf16.mxu0 0
        %1227 = vmatpush1.bf16.msra.mxu0 0
        %1228 = vmatprep.subr.bf16.mxu0 0
        %1229 = vmatpush1.bf16.msra.mxu0 0
        %1230 = vmatprep.subr.bf16.mxu0 0
        %1231 = vmatpush1.bf16.msra.mxu0 0
        %1232 = vmatprep.mubr.bf16.mxu0 0
        %1233 = vmatmul.mubr.bf16.gmra.mrb[0].mxu0 %v1116
        %v1234 = vpop.f32.mrb[0].mxu0
        %v1235 = vadd.f32 %v1151, %v1234
        %v1236 = vpop.f32.mrb[0].mxu0
        %v1237 = vpop.f32.mrb[0].mxu0
        %v1238 = vadd.f32 %v1151, %v1237
        %v1239 = vpop.f32.mrb[0].mxu0
        %1240 = vmatprep.mubr.bf16.mxu0 0
        %1241 = vmatmul.mubr.bf16.gmra.mrb[0].mxu0 %v1117
        %v1242 = vpop.f32.mrb[0].mxu0
        %v1243 = vadd.f32 %v1151, %v1242
        %v1244 = vpop.f32.mrb[0].mxu0
        %v1245 = vpop.f32.mrb[0].mxu0
        %v1246 = vadd.f32 %v1151, %v1245
        %v1247 = vpop.f32.mrb[0].mxu0
        %1248 = vmatprep.mubr.bf16.mxu0 0
        %1249 = vmatmul.mubr.bf16.gmra.mrb[0].mxu0 %v1118
        %v1250 = vpop.f32.mrb[0].mxu0
        %v1251 = vadd.f32 %v1151, %v1250
        %v1252 = vpop.f32.mrb[0].mxu0
        %v1253 = vpop.f32.mrb[0].mxu0
        %v1254 = vadd.f32 %v1151, %v1253
        %v1255 = vpop.f32.mrb[0].mxu0
        %1256 = vmatprep.mubr.bf16.mxu0 0
        %1257 = vmatmul.mubr.bf16.gmra.mrb[0].mxu0 %v1119
        %v1258 = vpop.f32.mrb[0].mxu0
        %v1259 = vadd.f32 %v1151, %v1258
        %v1260 = vpop.f32.mrb[0].mxu0
        %v1261 = vpop.f32.mrb[0].mxu0
        %v1262 = vadd.f32 %v1151, %v1261
        %v1263 = vpop.f32.mrb[0].mxu0
        %1264 = vmatprep.mubr.bf16.mxu0 0
        %1265 = vmatmul.mubr.bf16.gmra.mrb[0].mxu0 %v1120
        %v1266 = vpop.f32.mrb[0].mxu0
        %v1267 = vadd.f32 %v1151, %v1266
        %v1268 = vpop.f32.mrb[0].mxu0
        %v1269 = vpop.f32.mrb[0].mxu0
        %v1270 = vadd.f32 %v1151, %v1269
        %v1271 = vpop.f32.mrb[0].mxu0
        %1272 = vmatprep.mubr.bf16.mxu0 0
        %1273 = vmatmul.mubr.bf16.gmra.mrb[0].mxu0 %v1121
        %v1274 = vpop.f32.mrb[0].mxu0
        %v1275 = vadd.f32 %v1151, %v1274
        %v1276 = vpop.f32.mrb[0].mxu0
        %v1277 = vpop.f32.mrb[0].mxu0
        %v1278 = vadd.f32 %v1151, %v1277
        %v1279 = vpop.f32.mrb[0].mxu0
        %1280 = vmatprep.mubr.bf16.mxu0 0
        %1281 = vmatmul.mubr.bf16.gmra.mrb[0].mxu0 %v1122
        %v1282 = vpop.f32.mrb[0].mxu0
        %v1283 = vadd.f32 %v1151, %v1282
        %v1284 = vpop.f32.mrb[0].mxu0
        %v1285 = vpop.f32.mrb[0].mxu0
        %v1286 = vadd.f32 %v1151, %v1285
        %v1287 = vpop.f32.mrb[0].mxu0
        %1288 = vmatprep.mubr.bf16.mxu0 0
        %1289 = vmatmul.mubr.bf16.gmra.mrb[0].mxu0 %v1123
        %v1290 = vpop.f32.mrb[0].mxu0
        %v1291 = vadd.f32 %v1151, %v1290
        %v1292 = vpop.f32.mrb[0].mxu0
        %v1293 = vpop.f32.mrb[0].mxu0
        %v1294 = vadd.f32 %v1151, %v1293
        %v1295 = vpop.f32.mrb[0].mxu0
        %1296 = vmatprep.mubr.bf16.mxu0 0
        %1297 = vmatmul.mubr.bf16.gmra.mrb[0].mxu0 %v1124
        %v1298 = vpop.f32.mrb[0].mxu0
        %v1299 = vadd.f32 %v1151, %v1298
        %v1300 = vpop.f32.mrb[0].mxu0
        %v1301 = vpop.f32.mrb[0].mxu0
        %v1302 = vadd.f32 %v1151, %v1301
        %v1303 = vpop.f32.mrb[0].mxu0
        %1304 = vmatprep.mubr.bf16.mxu0 0
        %1305 = vmatmul.mubr.bf16.gmra.mrb[0].mxu0 %v1125
        %v1306 = vpop.f32.mrb[0].mxu0
        %v1307 = vadd.f32 %v1151, %v1306
        %v1308 = vpop.f32.mrb[0].mxu0
        %v1309 = vpop.f32.mrb[0].mxu0
        %v1310 = vadd.f32 %v1151, %v1309
        %v1311 = vpop.f32.mrb[0].mxu0
        %1312 = vmatprep.mubr.bf16.mxu0 0
        %1313 = vmatmul.mubr.bf16.gmra.mrb[0].mxu0 %v1126
        %v1314 = vpop.f32.mrb[0].mxu0
        %v1315 = vadd.f32 %v1151, %v1314
        %v1316 = vpop.f32.mrb[0].mxu0
        %v1317 = vpop.f32.mrb[0].mxu0
        %v1318 = vadd.f32 %v1151, %v1317
        %v1319 = vpop.f32.mrb[0].mxu0
        %1320 = vmatprep.mubr.bf16.mxu0 0
        %1321 = vmatmul.mubr.bf16.gmra.mrb[0].mxu0 %v1127
        %v1322 = vpop.f32.mrb[0].mxu0
        %v1323 = vadd.f32 %v1151, %v1322
        %v1324 = vpop.f32.mrb[0].mxu0
        %v1325 = vpop.f32.mrb[0].mxu0
        %v1326 = vadd.f32 %v1151, %v1325
        %v1327 = vpop.f32.mrb[0].mxu0
        %1328 = vmatprep.mubr.bf16.mxu0 0
        %1329 = vmatmul.mubr.bf16.gmra.mrb[0].mxu0 %v1128
        %v1330 = vpop.f32.mrb[0].mxu0
        %v1331 = vadd.f32 %v1151, %v1330
        %v1332 = vpop.f32.mrb[0].mxu0
        %v1333 = vpop.f32.mrb[0].mxu0
        %v1334 = vadd.f32 %v1151, %v1333
        %v1335 = vpop.f32.mrb[0].mxu0
        %1336 = vmatprep.mubr.bf16.mxu0 0
        %1337 = vmatmul.mubr.bf16.gmra.mrb[0].mxu0 %v1129
        %v1338 = vpop.f32.mrb[0].mxu0
        %v1339 = vadd.f32 %v1151, %v1338
        %v1340 = vpop.f32.mrb[0].mxu0
        %v1341 = vpop.f32.mrb[0].mxu0
        %v1342 = vadd.f32 %v1151, %v1341
        %v1343 = vpop.f32.mrb[0].mxu0
        %1344 = vmatprep.mubr.bf16.mxu0 0
        %1345 = vmatmul.mubr.bf16.gmra.mrb[0].mxu0 %v1130
        %v1346 = vpop.f32.mrb[0].mxu0
        %v1347 = vadd.f32 %v1151, %v1346
        %v1348 = vpop.f32.mrb[0].mxu0
        %v1349 = vpop.f32.mrb[0].mxu0
        %v1350 = vadd.f32 %v1151, %v1349
        %v1351 = vpop.f32.mrb[0].mxu0
        %1352 = vmatprep.mubr.bf16.mxu0 0
        %1353 = vmatmul.mubr.bf16.gmra.mrb[0].mxu0 %v1131
        %v1354 = vpop.f32.mrb[0].mxu0
        %v1355 = vadd.f32 %v1151, %v1354
        %v1356 = vpop.f32.mrb[0].mxu0
        %v1357 = vpop.f32.mrb[0].mxu0
        %v1358 = vadd.f32 %v1151, %v1357
        %v1359 = vpop.f32.mrb[0].mxu0
        %1360 = vdwg.mxu0
        %v1361 = vmul.f32 %v1235, 0.088388346
        %v1362 = vmul.f32 %v1238, 0.088388346
        %v1363 = vmul.f32 %v1243, 0.088388346
        %v1364 = vmul.f32 %v1246, 0.088388346
        %v1365 = vmul.f32 %v1251, 0.088388346
        %v1366 = vmul.f32 %v1254, 0.088388346
        %v1367 = vmul.f32 %v1259, 0.088388346
        %v1368 = vmul.f32 %v1262, 0.088388346
        %v1369 = vmul.f32 %v1267, 0.088388346
        %v1370 = vmul.f32 %v1270, 0.088388346
        %v1371 = vmul.f32 %v1275, 0.088388346
        %v1372 = vmul.f32 %v1278, 0.088388346
        %v1373 = vmul.f32 %v1283, 0.088388346
        %v1374 = vmul.f32 %v1286, 0.088388346
        %v1375 = vmul.f32 %v1291, 0.088388346
        %v1376 = vmul.f32 %v1294, 0.088388346
        %v1377 = vmul.f32 %v1299, 0.088388346
        %v1378 = vmul.f32 %v1302, 0.088388346
        %v1379 = vmul.f32 %v1307, 0.088388346
        %v1380 = vmul.f32 %v1310, 0.088388346
        %v1381 = vmul.f32 %v1315, 0.088388346
        %v1382 = vmul.f32 %v1318, 0.088388346
        %v1383 = vmul.f32 %v1323, 0.088388346
        %v1384 = vmul.f32 %v1326, 0.088388346
        %v1385 = vmul.f32 %v1331, 0.088388346
        %v1386 = vmul.f32 %v1334, 0.088388346
        %v1387 = vmul.f32 %v1339, 0.088388346
        %v1388 = vmul.f32 %v1342, 0.088388346
        %v1389 = vmul.f32 %v1347, 0.088388346
        %v1390 = vmul.f32 %v1350, 0.088388346
        %v1391 = vmul.f32 %v1355, 0.088388346
        %v1392 = vmul.f32 %v1358, 0.088388346
        %v1393 = vld [vmem:[%s3] sm:$0xf]
        %1394 = vmatprep.subr.mxu0 0.0
        %1395 = vmatpush1.xpose.msra.mxu0 %v1393
        %1396 = vmatprep.subr.mxu0 0.0
        %1397 = vmatpush1.xpose.msra.mxu0 0.0
        %1398 = vmatprep.subr.mxu0 0.0
        %1399 = vmatpush1.xpose.msra.mxu0 0.0
        %1400 = vmatprep.subr.mxu0 0.0
        %1401 = vmatpush1.xpose.msra.mxu0 0.0
        %1402 = vmatprep.subr.mxu0 0.0
        %1403 = vmatpush1.xpose.msra.mxu0 0.0
        %1404 = vmatprep.subr.mxu0 0.0
        %1405 = vmatpush1.xpose.msra.mxu0 0.0
        %1406 = vmatprep.subr.mxu0 0.0
        %1407 = vmatpush1.xpose.msra.mxu0 0.0
        %1408 = vmatprep.subr.mxu0 0.0
        %1409 = vmatpush1.xpose.msra.mxu0 0.0
        %1410 = vmatprep.subr.mxu0 0.0
        %1411 = vmatpush1.xpose.msra.mxu0 0.0
        %1412 = vmatprep.subr.mxu0 0.0
        %1413 = vmatpush1.xpose.msra.mxu0 0.0
        %1414 = vmatprep.subr.mxu0 0.0
        %1415 = vmatpush1.xpose.msra.mxu0 0.0
        %1416 = vmatprep.subr.mxu0 0.0
        %1417 = vmatpush1.xpose.msra.mxu0 0.0
        %1418 = vmatprep.subr.mxu0 0.0
        %1419 = vmatpush1.xpose.msra.mxu0 0.0
        %1420 = vmatprep.subr.mxu0 0.0
        %1421 = vmatpush1.xpose.msra.mxu0 0.0
        %1422 = vmatprep.subr.mxu0 0.0
        %1423 = vmatpush1.xpose.msra.mxu0 0.0
        %1424 = vmatprep.subr.mxu0 0.0
        %1425 = vmatpush1.xpose.msra.mxu0 0.0
        %1426 = vmatprep.subr.mxu0 0.0
        %1427 = vmatpush1.xpose.msra.mxu0 0.0
        %1428 = vmatprep.subr.mxu0 0.0
        %1429 = vmatpush1.xpose.msra.mxu0 0.0
        %1430 = vmatprep.subr.mxu0 0.0
        %1431 = vmatpush1.xpose.msra.mxu0 0.0
        %1432 = vmatprep.subr.mxu0 0.0
        %1433 = vmatpush1.xpose.msra.mxu0 0.0
        %1434 = vmatprep.subr.mxu0 0.0
        %1435 = vmatpush1.xpose.msra.mxu0 0.0
        %1436 = vmatprep.subr.mxu0 0.0
        %1437 = vmatpush1.xpose.msra.mxu0 0.0
        %1438 = vmatprep.subr.mxu0 0.0
        %1439 = vmatpush1.xpose.msra.mxu0 0.0
        %1440 = vmatprep.subr.mxu0 0.0
        %1441 = vmatpush1.xpose.msra.mxu0 0.0
        %1442 = vmatprep.subr.mxu0 0.0
        %1443 = vmatpush1.xpose.msra.mxu0 0.0
        %1444 = vmatprep.subr.mxu0 0.0
        %1445 = vmatpush1.xpose.msra.mxu0 0.0
        %1446 = vmatprep.subr.mxu0 0.0
        %1447 = vmatpush1.xpose.msra.mxu0 0.0
        %1448 = vmatprep.subr.mxu0 0.0
        %1449 = vmatpush1.xpose.msra.mxu0 0.0
        %1450 = vmatprep.subr.mxu0 0.0
        %1451 = vmatpush1.xpose.msra.mxu0 0.0
        %1452 = vmatprep.subr.mxu0 0.0
        %1453 = vmatpush1.xpose.msra.mxu0 0.0
        %1454 = vmatprep.subr.mxu0 0.0
        %1455 = vmatpush1.xpose.msra.mxu0 0.0
        %1456 = vmatprep.subr.mxu0 0.0
        %1457 = vmatpush1.xpose.msra.mxu0 0.0
        %1458 = vmatprep.mubr.f32.mxu0 0.0
        %1459 = vmatmul.mubr.f32.gmra.mrb[0].mxu0 %v1361
        %v1460 = vpop.f32.mrb[0].mxu0
        %v1461 = vadd.f32 0.0, %v1460
        %v1462 = vpop.f32.mrb[0].mxu0
        %1463 = vmatprep.mubr.f32.mxu0 0.0
        %1464 = vmatmul.mubr.f32.gmra.mrb[0].mxu0 %v1362
        %v1465 = vpop.f32.mrb[0].mxu0
        %v1466 = vadd.f32 0.0, %v1465
        %v1467 = vpop.f32.mrb[0].mxu0
        %1468 = vmatprep.mubr.f32.mxu0 0.0
        %1469 = vmatmul.mubr.f32.gmra.mrb[0].mxu0 %v1363
        %v1470 = vpop.f32.mrb[0].mxu0
        %v1471 = vadd.f32 0.0, %v1470
        %v1472 = vpop.f32.mrb[0].mxu0
        %1473 = vmatprep.mubr.f32.mxu0 0.0
        %1474 = vmatmul.mubr.f32.gmra.mrb[0].mxu0 %v1364
        %v1475 = vpop.f32.mrb[0].mxu0
        %v1476 = vadd.f32 0.0, %v1475
        %v1477 = vpop.f32.mrb[0].mxu0
        %1478 = vmatprep.mubr.f32.mxu0 0.0
        %1479 = vmatmul.mubr.f32.gmra.mrb[0].mxu0 %v1365
        %v1480 = vpop.f32.mrb[0].mxu0
        %v1481 = vadd.f32 0.0, %v1480
        %v1482 = vpop.f32.mrb[0].mxu0
        %1483 = vmatprep.mubr.f32.mxu0 0.0
        %1484 = vmatmul.mubr.f32.gmra.mrb[0].mxu0 %v1366
        %v1485 = vpop.f32.mrb[0].mxu0
        %v1486 = vadd.f32 0.0, %v1485
        %v1487 = vpop.f32.mrb[0].mxu0
        %1488 = vmatprep.mubr.f32.mxu0 0.0
        %1489 = vmatmul.mubr.f32.gmra.mrb[0].mxu0 %v1367
        %v1490 = vpop.f32.mrb[0].mxu0
        %v1491 = vadd.f32 0.0, %v1490
        %v1492 = vpop.f32.mrb[0].mxu0
        %1493 = vmatprep.mubr.f32.mxu0 0.0
        %1494 = vmatmul.mubr.f32.gmra.mrb[0].mxu0 %v1368
        %v1495 = vpop.f32.mrb[0].mxu0
        %v1496 = vadd.f32 0.0, %v1495
        %v1497 = vpop.f32.mrb[0].mxu0
        %1498 = vmatprep.mubr.f32.mxu0 0.0
        %1499 = vmatmul.mubr.f32.gmra.mrb[0].mxu0 %v1369
        %v1500 = vpop.f32.mrb[0].mxu0
        %v1501 = vadd.f32 0.0, %v1500
        %v1502 = vpop.f32.mrb[0].mxu0
        %1503 = vmatprep.mubr.f32.mxu0 0.0
        %1504 = vmatmul.mubr.f32.gmra.mrb[0].mxu0 %v1370
        %v1505 = vpop.f32.mrb[0].mxu0
        %v1506 = vadd.f32 0.0, %v1505
        %v1507 = vpop.f32.mrb[0].mxu0
        %1508 = vmatprep.mubr.f32.mxu0 0.0
        %1509 = vmatmul.mubr.f32.gmra.mrb[0].mxu0 %v1371
        %v1510 = vpop.f32.mrb[0].mxu0
        %v1511 = vadd.f32 0.0, %v1510
        %v1512 = vpop.f32.mrb[0].mxu0
        %1513 = vmatprep.mubr.f32.mxu0 0.0
        %1514 = vmatmul.mubr.f32.gmra.mrb[0].mxu0 %v1372
        %v1515 = vpop.f32.mrb[0].mxu0
        %v1516 = vadd.f32 0.0, %v1515
        %v1517 = vpop.f32.mrb[0].mxu0
        %1518 = vmatprep.mubr.f32.mxu0 0.0
        %1519 = vmatmul.mubr.f32.gmra.mrb[0].mxu0 %v1373
        %v1520 = vpop.f32.mrb[0].mxu0
        %v1521 = vadd.f32 0.0, %v1520
        %v1522 = vpop.f32.mrb[0].mxu0
        %1523 = vmatprep.mubr.f32.mxu0 0.0
        %1524 = vmatmul.mubr.f32.gmra.mrb[0].mxu0 %v1374
        %v1525 = vpop.f32.mrb[0].mxu0
        %v1526 = vadd.f32 0.0, %v1525
        %v1527 = vpop.f32.mrb[0].mxu0
        %1528 = vmatprep.mubr.f32.mxu0 0.0
        %1529 = vmatmul.mubr.f32.gmra.mrb[0].mxu0 %v1375
        %v1530 = vpop.f32.mrb[0].mxu0
        %v1531 = vadd.f32 0.0, %v1530
        %v1532 = vpop.f32.mrb[0].mxu0
        %1533 = vmatprep.mubr.f32.mxu0 0.0
        %1534 = vmatmul.mubr.f32.gmra.mrb[0].mxu0 %v1376
        %v1535 = vpop.f32.mrb[0].mxu0
        %v1536 = vadd.f32 0.0, %v1535
        %v1537 = vpop.f32.mrb[0].mxu0
        %1538 = vmatprep.mubr.f32.mxu0 0.0
        %1539 = vmatmul.mubr.f32.gmra.mrb[0].mxu0 %v1377
        %v1540 = vpop.f32.mrb[0].mxu0
        %v1541 = vadd.f32 0.0, %v1540
        %v1542 = vpop.f32.mrb[0].mxu0
        %1543 = vmatprep.mubr.f32.mxu0 0.0
        %1544 = vmatmul.mubr.f32.gmra.mrb[0].mxu0 %v1378
        %v1545 = vpop.f32.mrb[0].mxu0
        %v1546 = vadd.f32 0.0, %v1545
        %v1547 = vpop.f32.mrb[0].mxu0
        %1548 = vmatprep.mubr.f32.mxu0 0.0
        %1549 = vmatmul.mubr.f32.gmra.mrb[0].mxu0 %v1379
        %v1550 = vpop.f32.mrb[0].mxu0
        %v1551 = vadd.f32 0.0, %v1550
        %v1552 = vpop.f32.mrb[0].mxu0
        %1553 = vmatprep.mubr.f32.mxu0 0.0
        %1554 = vmatmul.mubr.f32.gmra.mrb[0].mxu0 %v1380
        %v1555 = vpop.f32.mrb[0].mxu0
        %v1556 = vadd.f32 0.0, %v1555
        %v1557 = vpop.f32.mrb[0].mxu0
        %1558 = vmatprep.mubr.f32.mxu0 0.0
        %1559 = vmatmul.mubr.f32.gmra.mrb[0].mxu0 %v1381
        %v1560 = vpop.f32.mrb[0].mxu0
        %v1561 = vadd.f32 0.0, %v1560
        %v1562 = vpop.f32.mrb[0].mxu0
        %1563 = vmatprep.mubr.f32.mxu0 0.0
        %1564 = vmatmul.mubr.f32.gmra.mrb[0].mxu0 %v1382
        %v1565 = vpop.f32.mrb[0].mxu0
        %v1566 = vadd.f32 0.0, %v1565
        %v1567 = vpop.f32.mrb[0].mxu0
        %1568 = vmatprep.mubr.f32.mxu0 0.0
        %1569 = vmatmul.mubr.f32.gmra.mrb[0].mxu0 %v1383
        %v1570 = vpop.f32.mrb[0].mxu0
        %v1571 = vadd.f32 0.0, %v1570
        %v1572 = vpop.f32.mrb[0].mxu0
        %1573 = vmatprep.mubr.f32.mxu0 0.0
        %1574 = vmatmul.mubr.f32.gmra.mrb[0].mxu0 %v1384
        %v1575 = vpop.f32.mrb[0].mxu0
        %v1576 = vadd.f32 0.0, %v1575
        %v1577 = vpop.f32.mrb[0].mxu0
        %1578 = vmatprep.mubr.f32.mxu0 0.0
        %1579 = vmatmul.mubr.f32.gmra.mrb[0].mxu0 %v1385
        %v1580 = vpop.f32.mrb[0].mxu0
        %v1581 = vadd.f32 0.0, %v1580
        %v1582 = vpop.f32.mrb[0].mxu0
        %1583 = vmatprep.mubr.f32.mxu0 0.0
        %1584 = vmatmul.mubr.f32.gmra.mrb[0].mxu0 %v1386
        %v1585 = vpop.f32.mrb[0].mxu0
        %v1586 = vadd.f32 0.0, %v1585
        %v1587 = vpop.f32.mrb[0].mxu0
        %1588 = vmatprep.mubr.f32.mxu0 0.0
        %1589 = vmatmul.mubr.f32.gmra.mrb[0].mxu0 %v1387
        %v1590 = vpop.f32.mrb[0].mxu0
        %v1591 = vadd.f32 0.0, %v1590
        %v1592 = vpop.f32.mrb[0].mxu0
        %1593 = vmatprep.mubr.f32.mxu0 0.0
        %1594 = vmatmul.mubr.f32.gmra.mrb[0].mxu0 %v1388
        %v1595 = vpop.f32.mrb[0].mxu0
        %v1596 = vadd.f32 0.0, %v1595
        %v1597 = vpop.f32.mrb[0].mxu0
        %1598 = vmatprep.mubr.f32.mxu0 0.0
        %1599 = vmatmul.mubr.f32.gmra.mrb[0].mxu0 %v1389
        %v1600 = vpop.f32.mrb[0].mxu0
        %v1601 = vadd.f32 0.0, %v1600
        %v1602 = vpop.f32.mrb[0].mxu0
        %1603 = vmatprep.mubr.f32.mxu0 0.0
        %1604 = vmatmul.mubr.f32.gmra.mrb[0].mxu0 %v1390
        %v1605 = vpop.f32.mrb[0].mxu0
        %v1606 = vadd.f32 0.0, %v1605
        %v1607 = vpop.f32.mrb[0].mxu0
        %1608 = vmatprep.mubr.f32.mxu0 0.0
        %1609 = vmatmul.mubr.f32.gmra.mrb[0].mxu0 %v1391
        %v1610 = vpop.f32.mrb[0].mxu0
        %v1611 = vadd.f32 0.0, %v1610
        %v1612 = vpop.f32.mrb[0].mxu0
        %1613 = vmatprep.mubr.f32.mxu0 0.0
        %1614 = vmatmul.mubr.f32.gmra.mrb[0].mxu0 %v1392
        %v1615 = vpop.f32.mrb[0].mxu0
        %v1616 = vadd.f32 0.0, %v1615
        %v1617 = vpop.f32.mrb[0].mxu0
        %1618 = vdwg.mxu0
        %vm1619 = vcmask 31744
        %v1620 = vsel %vm1619, %v1461, -inf
        %1621 = vmax.xlane.f32.xlu0 %v1620
        %v1622 = vpop.xlane.xlu0 %1621
        %v1623 = vsel %vm1619, %v1466, -inf
        %1624 = vmax.xlane.f32.xlu0 %v1623
        %v1625 = vpop.xlane.xlu0 %1624
        %v1626 = vsel %vm1619, %v1471, -inf
        %1627 = vmax.xlane.f32.xlu0 %v1626
        %v1628 = vpop.xlane.xlu0 %1627
        %v1629 = vsel %vm1619, %v1476, -inf
        %1630 = vmax.xlane.f32.xlu0 %v1629
        %v1631 = vpop.xlane.xlu0 %1630
        %v1632 = vsel %vm1619, %v1481, -inf
        %1633 = vmax.xlane.f32.xlu0 %v1632
        %v1634 = vpop.xlane.xlu0 %1633
        %v1635 = vsel %vm1619, %v1486, -inf
        %1636 = vmax.xlane.f32.xlu0 %v1635
        %v1637 = vpop.xlane.xlu0 %1636
        %v1638 = vsel %vm1619, %v1491, -inf
        %1639 = vmax.xlane.f32.xlu0 %v1638
        %v1640 = vpop.xlane.xlu0 %1639
        %v1641 = vsel %vm1619, %v1496, -inf
        %1642 = vmax.xlane.f32.xlu0 %v1641
        %v1643 = vpop.xlane.xlu0 %1642
        %v1644 = vsel %vm1619, %v1501, -inf
        %1645 = vmax.xlane.f32.xlu0 %v1644
        %v1646 = vpop.xlane.xlu0 %1645
        %v1647 = vsel %vm1619, %v1506, -inf
        %1648 = vmax.xlane.f32.xlu0 %v1647
        %v1649 = vpop.xlane.xlu0 %1648
        %v1650 = vsel %vm1619, %v1511, -inf
        %1651 = vmax.xlane.f32.xlu0 %v1650
        %v1652 = vpop.xlane.xlu0 %1651
        %v1653 = vsel %vm1619, %v1516, -inf
        %1654 = vmax.xlane.f32.xlu0 %v1653
        %v1655 = vpop.xlane.xlu0 %1654
        %v1656 = vsel %vm1619, %v1521, -inf
        %1657 = vmax.xlane.f32.xlu0 %v1656
        %v1658 = vpop.xlane.xlu0 %1657
        %v1659 = vsel %vm1619, %v1526, -inf
        %1660 = vmax.xlane.f32.xlu0 %v1659
        %v1661 = vpop.xlane.xlu0 %1660
        %v1662 = vsel %vm1619, %v1531, -inf
        %1663 = vmax.xlane.f32.xlu0 %v1662
        %v1664 = vpop.xlane.xlu0 %1663
        %v1665 = vsel %vm1619, %v1536, -inf
        %1666 = vmax.xlane.f32.xlu0 %v1665
        %v1667 = vpop.xlane.xlu0 %1666
        %v1668 = vsel %vm1619, %v1541, -inf
        %1669 = vmax.xlane.f32.xlu0 %v1668
        %v1670 = vpop.xlane.xlu0 %1669
        %v1671 = vsel %vm1619, %v1546, -inf
        %1672 = vmax.xlane.f32.xlu0 %v1671
        %v1673 = vpop.xlane.xlu0 %1672
        %v1674 = vsel %vm1619, %v1551, -inf
        %1675 = vmax.xlane.f32.xlu0 %v1674
        %v1676 = vpop.xlane.xlu0 %1675
        %v1677 = vsel %vm1619, %v1556, -inf
        %1678 = vmax.xlane.f32.xlu0 %v1677
        %v1679 = vpop.xlane.xlu0 %1678
        %v1680 = vsel %vm1619, %v1561, -inf
        %1681 = vmax.xlane.f32.xlu0 %v1680
        %v1682 = vpop.xlane.xlu0 %1681
        %v1683 = vsel %vm1619, %v1566, -inf
        %1684 = vmax.xlane.f32.xlu0 %v1683
        %v1685 = vpop.xlane.xlu0 %1684
        %v1686 = vsel %vm1619, %v1571, -inf
        %1687 = vmax.xlane.f32.xlu0 %v1686
        %v1688 = vpop.xlane.xlu0 %1687
        %v1689 = vsel %vm1619, %v1576, -inf
        %1690 = vmax.xlane.f32.xlu0 %v1689
        %v1691 = vpop.xlane.xlu0 %1690
        %v1692 = vsel %vm1619, %v1581, -inf
        %1693 = vmax.xlane.f32.xlu0 %v1692
        %v1694 = vpop.xlane.xlu0 %1693
        %v1695 = vsel %vm1619, %v1586, -inf
        %1696 = vmax.xlane.f32.xlu0 %v1695
        %v1697 = vpop.xlane.xlu0 %1696
        %v1698 = vsel %vm1619, %v1591, -inf
        %1699 = vmax.xlane.f32.xlu0 %v1698
        %v1700 = vpop.xlane.xlu0 %1699
        %v1701 = vsel %vm1619, %v1596, -inf
        %1702 = vmax.xlane.f32.xlu0 %v1701
        %v1703 = vpop.xlane.xlu0 %1702
        %v1704 = vsel %vm1619, %v1601, -inf
        %1705 = vmax.xlane.f32.xlu0 %v1704
        %v1706 = vpop.xlane.xlu0 %1705
        %v1707 = vsel %vm1619, %v1606, -inf
        %1708 = vmax.xlane.f32.xlu0 %v1707
        %v1709 = vpop.xlane.xlu0 %1708
        %v1710 = vsel %vm1619, %v1611, -inf
        %1711 = vmax.xlane.f32.xlu0 %v1710
        %v1712 = vpop.xlane.xlu0 %1711
        %v1713 = vsel %vm1619, %v1616, -inf
        %1714 = vmax.xlane.f32.xlu0 %v1713
        %v1715 = vpop.xlane.xlu0 %1714
        %v1716 = vsub.f32 %v1461, %v1622
        %v1717 = vsub.f32 %v1466, %v1625
        %v1718 = vsub.f32 %v1471, %v1628
        %v1719 = vsub.f32 %v1476, %v1631
        %v1720 = vsub.f32 %v1481, %v1634
        %v1721 = vsub.f32 %v1486, %v1637
        %v1722 = vsub.f32 %v1491, %v1640
        %v1723 = vsub.f32 %v1496, %v1643
        %v1724 = vsub.f32 %v1501, %v1646
        %v1725 = vsub.f32 %v1506, %v1649
        %v1726 = vsub.f32 %v1511, %v1652
        %v1727 = vsub.f32 %v1516, %v1655
        %v1728 = vsub.f32 %v1521, %v1658
        %v1729 = vsub.f32 %v1526, %v1661
        %v1730 = vsub.f32 %v1531, %v1664
        %v1731 = vsub.f32 %v1536, %v1667
        %v1732 = vsub.f32 %v1541, %v1670
        %v1733 = vsub.f32 %v1546, %v1673
        %v1734 = vsub.f32 %v1551, %v1676
        %v1735 = vsub.f32 %v1556, %v1679
        %v1736 = vsub.f32 %v1561, %v1682
        %v1737 = vsub.f32 %v1566, %v1685
        %v1738 = vsub.f32 %v1571, %v1688
        %v1739 = vsub.f32 %v1576, %v1691
        %v1740 = vsub.f32 %v1581, %v1694
        %v1741 = vsub.f32 %v1586, %v1697
        %v1742 = vsub.f32 %v1591, %v1700
        %v1743 = vsub.f32 %v1596, %v1703
        %v1744 = vsub.f32 %v1601, %v1706
        %v1745 = vsub.f32 %v1606, %v1709
        %v1746 = vsub.f32 %v1611, %v1712
        %v1747 = vsub.f32 %v1616, %v1715
        %v1748 = vmul.f32 %v1716, 1.442695
        %v1749 = vpow.pop %v1748
        %v1750 = vmul.f32 %v1717, 1.442695
        %v1751 = vpow.pop %v1750
        %v1752 = vmul.f32 %v1718, 1.442695
        %v1753 = vpow.pop %v1752
        %v1754 = vmul.f32 %v1719, 1.442695
        %v1755 = vpow.pop %v1754
        %v1756 = vmul.f32 %v1720, 1.442695
        %v1757 = vpow.pop %v1756
        %v1758 = vmul.f32 %v1721, 1.442695
        %v1759 = vpow.pop %v1758
        %v1760 = vmul.f32 %v1722, 1.442695
        %v1761 = vpow.pop %v1760
        %v1762 = vmul.f32 %v1723, 1.442695
        %v1763 = vpow.pop %v1762
        %v1764 = vmul.f32 %v1724, 1.442695
        %v1765 = vpow.pop %v1764
        %v1766 = vmul.f32 %v1725, 1.442695
        %v1767 = vpow.pop %v1766
        %v1768 = vmul.f32 %v1726, 1.442695
        %v1769 = vpow.pop %v1768
        %v1770 = vmul.f32 %v1727, 1.442695
        %v1771 = vpow.pop %v1770
        %v1772 = vmul.f32 %v1728, 1.442695
        %v1773 = vpow.pop %v1772
        %v1774 = vmul.f32 %v1729, 1.442695
        %v1775 = vpow.pop %v1774
        %v1776 = vmul.f32 %v1730, 1.442695
        %v1777 = vpow.pop %v1776
        %v1778 = vmul.f32 %v1731, 1.442695
        %v1779 = vpow.pop %v1778
        %v1780 = vmul.f32 %v1732, 1.442695
        %v1781 = vpow.pop %v1780
        %v1782 = vmul.f32 %v1733, 1.442695
        %v1783 = vpow.pop %v1782
        %v1784 = vmul.f32 %v1734, 1.442695
        %v1785 = vpow.pop %v1784
        %v1786 = vmul.f32 %v1735, 1.442695
        %v1787 = vpow.pop %v1786
        %v1788 = vmul.f32 %v1736, 1.442695
        %v1789 = vpow.pop %v1788
        %v1790 = vmul.f32 %v1737, 1.442695
        %v1791 = vpow.pop %v1790
        %v1792 = vmul.f32 %v1738, 1.442695
        %v1793 = vpow.pop %v1792
        %v1794 = vmul.f32 %v1739, 1.442695
        %v1795 = vpow.pop %v1794
        %v1796 = vmul.f32 %v1740, 1.442695
        %v1797 = vpow.pop %v1796
        %v1798 = vmul.f32 %v1741, 1.442695
        %v1799 = vpow.pop %v1798
        %v1800 = vmul.f32 %v1742, 1.442695
        %v1801 = vpow.pop %v1800
        %v1802 = vmul.f32 %v1743, 1.442695
        %v1803 = vpow.pop %v1802
        %v1804 = vmul.f32 %v1744, 1.442695
        %v1805 = vpow.pop %v1804
        %v1806 = vmul.f32 %v1745, 1.442695
        %v1807 = vpow.pop %v1806
        %v1808 = vmul.f32 %v1746, 1.442695
        %v1809 = vpow.pop %v1808
        %v1810 = vmul.f32 %v1747, 1.442695
        %v1811 = vpow.pop %v1810
        %v1812 = vsel %vm1619, %v1749, 0.0
        %1813 = vadd.xlane.f32.xlu0 %v1812
        %v1814 = vpop.xlane.xlu0 %1813
        %v1815 = vsel %vm1619, %v1751, 0.0
        %1816 = vadd.xlane.f32.xlu0 %v1815
        %v1817 = vpop.xlane.xlu0 %1816
        %v1818 = vsel %vm1619, %v1753, 0.0
        %1819 = vadd.xlane.f32.xlu0 %v1818
        %v1820 = vpop.xlane.xlu0 %1819
        %v1821 = vsel %vm1619, %v1755, 0.0
        %1822 = vadd.xlane.f32.xlu0 %v1821
        %v1823 = vpop.xlane.xlu0 %1822
        %v1824 = vsel %vm1619, %v1757, 0.0
        %1825 = vadd.xlane.f32.xlu0 %v1824
        %v1826 = vpop.xlane.xlu0 %1825
        %v1827 = vsel %vm1619, %v1759, 0.0
        %1828 = vadd.xlane.f32.xlu0 %v1827
        %v1829 = vpop.xlane.xlu0 %1828
        %v1830 = vsel %vm1619, %v1761, 0.0
        %1831 = vadd.xlane.f32.xlu0 %v1830
        %v1832 = vpop.xlane.xlu0 %1831
        %v1833 = vsel %vm1619, %v1763, 0.0
        %1834 = vadd.xlane.f32.xlu0 %v1833
        %v1835 = vpop.xlane.xlu0 %1834
        %v1836 = vsel %vm1619, %v1765, 0.0
        %1837 = vadd.xlane.f32.xlu0 %v1836
        %v1838 = vpop.xlane.xlu0 %1837
        %v1839 = vsel %vm1619, %v1767, 0.0
        %1840 = vadd.xlane.f32.xlu0 %v1839
        %v1841 = vpop.xlane.xlu0 %1840
        %v1842 = vsel %vm1619, %v1769, 0.0
        %1843 = vadd.xlane.f32.xlu0 %v1842
        %v1844 = vpop.xlane.xlu0 %1843
        %v1845 = vsel %vm1619, %v1771, 0.0
        %1846 = vadd.xlane.f32.xlu0 %v1845
        %v1847 = vpop.xlane.xlu0 %1846
        %v1848 = vsel %vm1619, %v1773, 0.0
        %1849 = vadd.xlane.f32.xlu0 %v1848
        %v1850 = vpop.xlane.xlu0 %1849
        %v1851 = vsel %vm1619, %v1775, 0.0
        %1852 = vadd.xlane.f32.xlu0 %v1851
        %v1853 = vpop.xlane.xlu0 %1852
        %v1854 = vsel %vm1619, %v1777, 0.0
        %1855 = vadd.xlane.f32.xlu0 %v1854
        %v1856 = vpop.xlane.xlu0 %1855
        %v1857 = vsel %vm1619, %v1779, 0.0
        %1858 = vadd.xlane.f32.xlu0 %v1857
        %v1859 = vpop.xlane.xlu0 %1858
        %v1860 = vsel %vm1619, %v1781, 0.0
        %1861 = vadd.xlane.f32.xlu0 %v1860
        %v1862 = vpop.xlane.xlu0 %1861
        %v1863 = vsel %vm1619, %v1783, 0.0
        %1864 = vadd.xlane.f32.xlu0 %v1863
        %v1865 = vpop.xlane.xlu0 %1864
        %v1866 = vsel %vm1619, %v1785, 0.0
        %1867 = vadd.xlane.f32.xlu0 %v1866
        %v1868 = vpop.xlane.xlu0 %1867
        %v1869 = vsel %vm1619, %v1787, 0.0
        %1870 = vadd.xlane.f32.xlu0 %v1869
        %v1871 = vpop.xlane.xlu0 %1870
        %v1872 = vsel %vm1619, %v1789, 0.0
        %1873 = vadd.xlane.f32.xlu0 %v1872
        %v1874 = vpop.xlane.xlu0 %1873
        %v1875 = vsel %vm1619, %v1791, 0.0
        %1876 = vadd.xlane.f32.xlu0 %v1875
        %v1877 = vpop.xlane.xlu0 %1876
        %v1878 = vsel %vm1619, %v1793, 0.0
        %1879 = vadd.xlane.f32.xlu0 %v1878
        %v1880 = vpop.xlane.xlu0 %1879
        %v1881 = vsel %vm1619, %v1795, 0.0
        %1882 = vadd.xlane.f32.xlu0 %v1881
        %v1883 = vpop.xlane.xlu0 %1882
        %v1884 = vsel %vm1619, %v1797, 0.0
        %1885 = vadd.xlane.f32.xlu0 %v1884
        %v1886 = vpop.xlane.xlu0 %1885
        %v1887 = vsel %vm1619, %v1799, 0.0
        %1888 = vadd.xlane.f32.xlu0 %v1887
        %v1889 = vpop.xlane.xlu0 %1888
        %v1890 = vsel %vm1619, %v1801, 0.0
        %1891 = vadd.xlane.f32.xlu0 %v1890
        %v1892 = vpop.xlane.xlu0 %1891
        %v1893 = vsel %vm1619, %v1803, 0.0
        %1894 = vadd.xlane.f32.xlu0 %v1893
        %v1895 = vpop.xlane.xlu0 %1894
        %v1896 = vsel %vm1619, %v1805, 0.0
        %1897 = vadd.xlane.f32.xlu0 %v1896
        %v1898 = vpop.xlane.xlu0 %1897
        %v1899 = vsel %vm1619, %v1807, 0.0
        %1900 = vadd.xlane.f32.xlu0 %v1899
        %v1901 = vpop.xlane.xlu0 %1900
        %v1902 = vsel %vm1619, %v1809, 0.0
        %1903 = vadd.xlane.f32.xlu0 %v1902
        %v1904 = vpop.xlane.xlu0 %1903
        %v1905 = vsel %vm1619, %v1811, 0.0
        %1906 = vadd.xlane.f32.xlu0 %v1905
        %v1907 = vpop.xlane.xlu0 %1906
        %v1908 = vrcp.pop %v1814
        %v1909 = vrcp.pop %v1817
        %v1910 = vrcp.pop %v1820
        %v1911 = vrcp.pop %v1823
        %v1912 = vrcp.pop %v1826
        %v1913 = vrcp.pop %v1829
        %v1914 = vrcp.pop %v1832
        %v1915 = vrcp.pop %v1835
        %v1916 = vrcp.pop %v1838
        %v1917 = vrcp.pop %v1841
        %v1918 = vrcp.pop %v1844
        %v1919 = vrcp.pop %v1847
        %v1920 = vrcp.pop %v1850
        %v1921 = vrcp.pop %v1853
        %v1922 = vrcp.pop %v1856
        %v1923 = vrcp.pop %v1859
        %v1924 = vrcp.pop %v1862
        %v1925 = vrcp.pop %v1865
        %v1926 = vrcp.pop %v1868
        %v1927 = vrcp.pop %v1871
        %v1928 = vrcp.pop %v1874
        %v1929 = vrcp.pop %v1877
        %v1930 = vrcp.pop %v1880
        %v1931 = vrcp.pop %v1883
        %v1932 = vrcp.pop %v1886
        %v1933 = vrcp.pop %v1889
        %v1934 = vrcp.pop %v1892
        %v1935 = vrcp.pop %v1895
        %v1936 = vrcp.pop %v1898
        %v1937 = vrcp.pop %v1901
        %v1938 = vrcp.pop %v1904
        %v1939 = vrcp.pop %v1907
        %v1940 = vld [vmem:[%s4] sm:$0x1]
        %1942 = vset.pattern.permute.xlu0 0
        %1943 = vperm.xlu0 %1942, %v1749
        %v1944 = vpop.permute.xlu0 %1943
        %1947 = vset.pattern.permute.xlu0 0
        %1948 = vperm.xlu0 %1947, %v1751
        %v1949 = vpop.permute.xlu0 %1948
        %1952 = vset.pattern.permute.xlu0 0
        %1953 = vperm.xlu0 %1952, %v1753
        %v1954 = vpop.permute.xlu0 %1953
        %1957 = vset.pattern.permute.xlu0 0
        %1958 = vperm.xlu0 %1957, %v1755
        %v1959 = vpop.permute.xlu0 %1958
        %1962 = vset.pattern.permute.xlu0 0
        %1963 = vperm.xlu0 %1962, %v1757
        %v1964 = vpop.permute.xlu0 %1963
        %1967 = vset.pattern.permute.xlu0 0
        %1968 = vperm.xlu0 %1967, %v1759
        %v1969 = vpop.permute.xlu0 %1968
        %1972 = vset.pattern.permute.xlu0 0
        %1973 = vperm.xlu0 %1972, %v1761
        %v1974 = vpop.permute.xlu0 %1973
        %1977 = vset.pattern.permute.xlu0 0
        %1978 = vperm.xlu0 %1977, %v1763
        %v1979 = vpop.permute.xlu0 %1978
        %1982 = vset.pattern.permute.xlu0 0
        %1983 = vperm.xlu0 %1982, %v1765
        %v1984 = vpop.permute.xlu0 %1983
        %1987 = vset.pattern.permute.xlu0 0
        %1988 = vperm.xlu0 %1987, %v1767
        %v1989 = vpop.permute.xlu0 %1988
        %1992 = vset.pattern.permute.xlu0 0
        %1993 = vperm.xlu0 %1992, %v1769
        %v1994 = vpop.permute.xlu0 %1993
        %1997 = vset.pattern.permute.xlu0 0
        %1998 = vperm.xlu0 %1997, %v1771
        %v1999 = vpop.permute.xlu0 %1998
        %2002 = vset.pattern.permute.xlu0 0
        %2003 = vperm.xlu0 %2002, %v1773
        %v2004 = vpop.permute.xlu0 %2003
        %2007 = vset.pattern.permute.xlu0 0
        %2008 = vperm.xlu0 %2007, %v1775
        %v2009 = vpop.permute.xlu0 %2008
        %2012 = vset.pattern.permute.xlu0 0
        %2013 = vperm.xlu0 %2012, %v1777
        %v2014 = vpop.permute.xlu0 %2013
        %2017 = vset.pattern.permute.xlu0 0
        %2018 = vperm.xlu0 %2017, %v1779
        %v2019 = vpop.permute.xlu0 %2018
        %2022 = vset.pattern.permute.xlu0 0
        %2023 = vperm.xlu0 %2022, %v1781
        %v2024 = vpop.permute.xlu0 %2023
        %2027 = vset.pattern.permute.xlu0 0
        %2028 = vperm.xlu0 %2027, %v1783
        %v2029 = vpop.permute.xlu0 %2028
        %2032 = vset.pattern.permute.xlu0 0
        %2033 = vperm.xlu0 %2032, %v1785
        %v2034 = vpop.permute.xlu0 %2033
        %2037 = vset.pattern.permute.xlu0 0
        %2038 = vperm.xlu0 %2037, %v1787
        %v2039 = vpop.permute.xlu0 %2038
        %2042 = vset.pattern.permute.xlu0 0
        %2043 = vperm.xlu0 %2042, %v1789
        %v2044 = vpop.permute.xlu0 %2043
        %2047 = vset.pattern.permute.xlu0 0
        %2048 = vperm.xlu0 %2047, %v1791
        %v2049 = vpop.permute.xlu0 %2048
        %2052 = vset.pattern.permute.xlu0 0
        %2053 = vperm.xlu0 %2052, %v1793
        %v2054 = vpop.permute.xlu0 %2053
        %2057 = vset.pattern.permute.xlu0 0
        %2058 = vperm.xlu0 %2057, %v1795
        %v2059 = vpop.permute.xlu0 %2058
        %2062 = vset.pattern.permute.xlu0 0
        %2063 = vperm.xlu0 %2062, %v1797
        %v2064 = vpop.permute.xlu0 %2063
        %2067 = vset.pattern.permute.xlu0 0
        %2068 = vperm.xlu0 %2067, %v1799
        %v2069 = vpop.permute.xlu0 %2068
        %2072 = vset.pattern.permute.xlu0 0
        %2073 = vperm.xlu0 %2072, %v1801
        %v2074 = vpop.permute.xlu0 %2073
        %2077 = vset.pattern.permute.xlu0 0
        %2078 = vperm.xlu0 %2077, %v1803
        %v2079 = vpop.permute.xlu0 %2078
        %2082 = vset.pattern.permute.xlu0 0
        %2083 = vperm.xlu0 %2082, %v1805
        %v2084 = vpop.permute.xlu0 %2083
        %2087 = vset.pattern.permute.xlu0 0
        %2088 = vperm.xlu0 %2087, %v1807
        %v2089 = vpop.permute.xlu0 %2088
        %2092 = vset.pattern.permute.xlu0 0
        %2093 = vperm.xlu0 %2092, %v1809
        %v2094 = vpop.permute.xlu0 %2093
        %2097 = vset.pattern.permute.xlu0 0
        %2098 = vperm.xlu0 %2097, %v1811
        %v2099 = vpop.permute.xlu0 %2098
        %v2101 = vlaneseq
        %v2102 = vshrl.u32 %v2101, 7
        %v2103 = vsub.s32 0, %v2102
        %v2104 = vrot.slane %v1940, %v2103
        %v2105 = vmul.f32 %v1944, %v2104
        %v2106 = vmul.f32 %v1949, %v2104
        %v2107 = vmul.f32 %v1954, %v2104
        %v2108 = vmul.f32 %v1959, %v2104
        %v2109 = vmul.f32 %v1964, %v2104
        %v2110 = vmul.f32 %v1969, %v2104
        %v2111 = vmul.f32 %v1974, %v2104
        %v2112 = vmul.f32 %v1979, %v2104
        %v2113 = vmul.f32 %v1984, %v2104
        %v2114 = vmul.f32 %v1989, %v2104
        %v2115 = vmul.f32 %v1994, %v2104
        %v2116 = vmul.f32 %v1999, %v2104
        %v2117 = vmul.f32 %v2004, %v2104
        %v2118 = vmul.f32 %v2009, %v2104
        %v2119 = vmul.f32 %v2014, %v2104
        %v2120 = vmul.f32 %v2019, %v2104
        %v2121 = vmul.f32 %v2024, %v2104
        %v2122 = vmul.f32 %v2029, %v2104
        %v2123 = vmul.f32 %v2034, %v2104
        %v2124 = vmul.f32 %v2039, %v2104
        %v2125 = vmul.f32 %v2044, %v2104
        %v2126 = vmul.f32 %v2049, %v2104
        %v2127 = vmul.f32 %v2054, %v2104
        %v2128 = vmul.f32 %v2059, %v2104
        %v2129 = vmul.f32 %v2064, %v2104
        %v2130 = vmul.f32 %v2069, %v2104
        %v2131 = vmul.f32 %v2074, %v2104
        %v2132 = vmul.f32 %v2079, %v2104
        %v2133 = vmul.f32 %v2084, %v2104
        %v2134 = vmul.f32 %v2089, %v2104
        %v2135 = vmul.f32 %v2094, %v2104
        %v2136 = vmul.f32 %v2099, %v2104
        %v2137 = vld [vmem:[%s4 + $0x1] sm:$0x1]
        %2138 = vset.pattern.permute.xlu0 1
        %2139 = vperm.xlu0 %2138, %v1749
        %v2140 = vpop.permute.xlu0 %2139
        %2142 = vset.pattern.permute.xlu0 1
        %2143 = vperm.xlu0 %2142, %v1751
        %v2144 = vpop.permute.xlu0 %2143
        %2146 = vset.pattern.permute.xlu0 1
        %2147 = vperm.xlu0 %2146, %v1753
        %v2148 = vpop.permute.xlu0 %2147
        %2150 = vset.pattern.permute.xlu0 1
        %2151 = vperm.xlu0 %2150, %v1755
        %v2152 = vpop.permute.xlu0 %2151
        %2154 = vset.pattern.permute.xlu0 1
        %2155 = vperm.xlu0 %2154, %v1757
        %v2156 = vpop.permute.xlu0 %2155
        %2158 = vset.pattern.permute.xlu0 1
        %2159 = vperm.xlu0 %2158, %v1759
        %v2160 = vpop.permute.xlu0 %2159
        %2162 = vset.pattern.permute.xlu0 1
        %2163 = vperm.xlu0 %2162, %v1761
        %v2164 = vpop.permute.xlu0 %2163
        %2166 = vset.pattern.permute.xlu0 1
        %2167 = vperm.xlu0 %2166, %v1763
        %v2168 = vpop.permute.xlu0 %2167
        %2170 = vset.pattern.permute.xlu0 1
        %2171 = vperm.xlu0 %2170, %v1765
        %v2172 = vpop.permute.xlu0 %2171
        %2174 = vset.pattern.permute.xlu0 1
        %2175 = vperm.xlu0 %2174, %v1767
        %v2176 = vpop.permute.xlu0 %2175
        %2178 = vset.pattern.permute.xlu0 1
        %2179 = vperm.xlu0 %2178, %v1769
        %v2180 = vpop.permute.xlu0 %2179
        %2182 = vset.pattern.permute.xlu0 1
        %2183 = vperm.xlu0 %2182, %v1771
        %v2184 = vpop.permute.xlu0 %2183
        %2186 = vset.pattern.permute.xlu0 1
        %2187 = vperm.xlu0 %2186, %v1773
        %v2188 = vpop.permute.xlu0 %2187
        %2190 = vset.pattern.permute.xlu0 1
        %2191 = vperm.xlu0 %2190, %v1775
        %v2192 = vpop.permute.xlu0 %2191
        %2194 = vset.pattern.permute.xlu0 1
        %2195 = vperm.xlu0 %2194, %v1777
        %v2196 = vpop.permute.xlu0 %2195
        %2198 = vset.pattern.permute.xlu0 1
        %2199 = vperm.xlu0 %2198, %v1779
        %v2200 = vpop.permute.xlu0 %2199
        %2202 = vset.pattern.permute.xlu0 1
        %2203 = vperm.xlu0 %2202, %v1781
        %v2204 = vpop.permute.xlu0 %2203
        %2206 = vset.pattern.permute.xlu0 1
        %2207 = vperm.xlu0 %2206, %v1783
        %v2208 = vpop.permute.xlu0 %2207
        %2210 = vset.pattern.permute.xlu0 1
        %2211 = vperm.xlu0 %2210, %v1785
        %v2212 = vpop.permute.xlu0 %2211
        %2214 = vset.pattern.permute.xlu0 1
        %2215 = vperm.xlu0 %2214, %v1787
        %v2216 = vpop.permute.xlu0 %2215
        %2218 = vset.pattern.permute.xlu0 1
        %2219 = vperm.xlu0 %2218, %v1789
        %v2220 = vpop.permute.xlu0 %2219
        %2222 = vset.pattern.permute.xlu0 1
        %2223 = vperm.xlu0 %2222, %v1791
        %v2224 = vpop.permute.xlu0 %2223
        %2226 = vset.pattern.permute.xlu0 1
        %2227 = vperm.xlu0 %2226, %v1793
        %v2228 = vpop.permute.xlu0 %2227
        %2230 = vset.pattern.permute.xlu0 1
        %2231 = vperm.xlu0 %2230, %v1795
        %v2232 = vpop.permute.xlu0 %2231
        %2234 = vset.pattern.permute.xlu0 1
        %2235 = vperm.xlu0 %2234, %v1797
        %v2236 = vpop.permute.xlu0 %2235
        %2238 = vset.pattern.permute.xlu0 1
        %2239 = vperm.xlu0 %2238, %v1799
        %v2240 = vpop.permute.xlu0 %2239
        %2242 = vset.pattern.permute.xlu0 1
        %2243 = vperm.xlu0 %2242, %v1801
        %v2244 = vpop.permute.xlu0 %2243
        %2246 = vset.pattern.permute.xlu0 1
        %2247 = vperm.xlu0 %2246, %v1803
        %v2248 = vpop.permute.xlu0 %2247
        %2250 = vset.pattern.permute.xlu0 1
        %2251 = vperm.xlu0 %2250, %v1805
        %v2252 = vpop.permute.xlu0 %2251
        %2254 = vset.pattern.permute.xlu0 1
        %2255 = vperm.xlu0 %2254, %v1807
        %v2256 = vpop.permute.xlu0 %2255
        %2258 = vset.pattern.permute.xlu0 1
        %2259 = vperm.xlu0 %2258, %v1809
        %v2260 = vpop.permute.xlu0 %2259
        %2262 = vset.pattern.permute.xlu0 1
        %2263 = vperm.xlu0 %2262, %v1811
        %v2264 = vpop.permute.xlu0 %2263
        %v2266 = vlaneseq
        %v2267 = vshrl.u32 %v2266, 7
        %v2268 = vsub.s32 0, %v2267
        %v2269 = vrot.slane %v2137, %v2268
        %v2270 = vmul.f32 %v2140, %v2269
        %v2271 = vmul.f32 %v2144, %v2269
        %v2272 = vmul.f32 %v2148, %v2269
        %v2273 = vmul.f32 %v2152, %v2269
        %v2274 = vmul.f32 %v2156, %v2269
        %v2275 = vmul.f32 %v2160, %v2269
        %v2276 = vmul.f32 %v2164, %v2269
        %v2277 = vmul.f32 %v2168, %v2269
        %v2278 = vmul.f32 %v2172, %v2269
        %v2279 = vmul.f32 %v2176, %v2269
        %v2280 = vmul.f32 %v2180, %v2269
        %v2281 = vmul.f32 %v2184, %v2269
        %v2282 = vmul.f32 %v2188, %v2269
        %v2283 = vmul.f32 %v2192, %v2269
        %v2284 = vmul.f32 %v2196, %v2269
        %v2285 = vmul.f32 %v2200, %v2269
        %v2286 = vmul.f32 %v2204, %v2269
        %v2287 = vmul.f32 %v2208, %v2269
        %v2288 = vmul.f32 %v2212, %v2269
        %v2289 = vmul.f32 %v2216, %v2269
        %v2290 = vmul.f32 %v2220, %v2269
        %v2291 = vmul.f32 %v2224, %v2269
        %v2292 = vmul.f32 %v2228, %v2269
        %v2293 = vmul.f32 %v2232, %v2269
        %v2294 = vmul.f32 %v2236, %v2269
        %v2295 = vmul.f32 %v2240, %v2269
        %v2296 = vmul.f32 %v2244, %v2269
        %v2297 = vmul.f32 %v2248, %v2269
        %v2298 = vmul.f32 %v2252, %v2269
        %v2299 = vmul.f32 %v2256, %v2269
        %v2300 = vmul.f32 %v2260, %v2269
        %v2301 = vmul.f32 %v2264, %v2269
        %v2302 = vadd.f32 %v2105, %v2270
        %v2303 = vadd.f32 %v2106, %v2271
        %v2304 = vadd.f32 %v2107, %v2272
        %v2305 = vadd.f32 %v2108, %v2273
        %v2306 = vadd.f32 %v2109, %v2274
        %v2307 = vadd.f32 %v2110, %v2275
        %v2308 = vadd.f32 %v2111, %v2276
        %v2309 = vadd.f32 %v2112, %v2277
        %v2310 = vadd.f32 %v2113, %v2278
        %v2311 = vadd.f32 %v2114, %v2279
        %v2312 = vadd.f32 %v2115, %v2280
        %v2313 = vadd.f32 %v2116, %v2281
        %v2314 = vadd.f32 %v2117, %v2282
        %v2315 = vadd.f32 %v2118, %v2283
        %v2316 = vadd.f32 %v2119, %v2284
        %v2317 = vadd.f32 %v2120, %v2285
        %v2318 = vadd.f32 %v2121, %v2286
        %v2319 = vadd.f32 %v2122, %v2287
        %v2320 = vadd.f32 %v2123, %v2288
        %v2321 = vadd.f32 %v2124, %v2289
        %v2322 = vadd.f32 %v2125, %v2290
        %v2323 = vadd.f32 %v2126, %v2291
        %v2324 = vadd.f32 %v2127, %v2292
        %v2325 = vadd.f32 %v2128, %v2293
        %v2326 = vadd.f32 %v2129, %v2294
        %v2327 = vadd.f32 %v2130, %v2295
        %v2328 = vadd.f32 %v2131, %v2296
        %v2329 = vadd.f32 %v2132, %v2297
        %v2330 = vadd.f32 %v2133, %v2298
        %v2331 = vadd.f32 %v2134, %v2299
        %v2332 = vadd.f32 %v2135, %v2300
        %v2333 = vadd.f32 %v2136, %v2301
        %v2334 = vld [vmem:[%s4 + $0x2] sm:$0x1]
        %2335 = vset.pattern.permute.xlu0 2
        %2336 = vperm.xlu0 %2335, %v1749
        %v2337 = vpop.permute.xlu0 %2336
        %2339 = vset.pattern.permute.xlu0 2
        %2340 = vperm.xlu0 %2339, %v1751
        %v2341 = vpop.permute.xlu0 %2340
        %2343 = vset.pattern.permute.xlu0 2
        %2344 = vperm.xlu0 %2343, %v1753
        %v2345 = vpop.permute.xlu0 %2344
        %2347 = vset.pattern.permute.xlu0 2
        %2348 = vperm.xlu0 %2347, %v1755
        %v2349 = vpop.permute.xlu0 %2348
        %2351 = vset.pattern.permute.xlu0 2
        %2352 = vperm.xlu0 %2351, %v1757
        %v2353 = vpop.permute.xlu0 %2352
        %2355 = vset.pattern.permute.xlu0 2
        %2356 = vperm.xlu0 %2355, %v1759
        %v2357 = vpop.permute.xlu0 %2356
        %2359 = vset.pattern.permute.xlu0 2
        %2360 = vperm.xlu0 %2359, %v1761
        %v2361 = vpop.permute.xlu0 %2360
        %2363 = vset.pattern.permute.xlu0 2
        %2364 = vperm.xlu0 %2363, %v1763
        %v2365 = vpop.permute.xlu0 %2364
        %2367 = vset.pattern.permute.xlu0 2
        %2368 = vperm.xlu0 %2367, %v1765
        %v2369 = vpop.permute.xlu0 %2368
        %2371 = vset.pattern.permute.xlu0 2
        %2372 = vperm.xlu0 %2371, %v1767
        %v2373 = vpop.permute.xlu0 %2372
        %2375 = vset.pattern.permute.xlu0 2
        %2376 = vperm.xlu0 %2375, %v1769
        %v2377 = vpop.permute.xlu0 %2376
        %2379 = vset.pattern.permute.xlu0 2
        %2380 = vperm.xlu0 %2379, %v1771
        %v2381 = vpop.permute.xlu0 %2380
        %2383 = vset.pattern.permute.xlu0 2
        %2384 = vperm.xlu0 %2383, %v1773
        %v2385 = vpop.permute.xlu0 %2384
        %2387 = vset.pattern.permute.xlu0 2
        %2388 = vperm.xlu0 %2387, %v1775
        %v2389 = vpop.permute.xlu0 %2388
        %2391 = vset.pattern.permute.xlu0 2
        %2392 = vperm.xlu0 %2391, %v1777
        %v2393 = vpop.permute.xlu0 %2392
        %2395 = vset.pattern.permute.xlu0 2
        %2396 = vperm.xlu0 %2395, %v1779
        %v2397 = vpop.permute.xlu0 %2396
        %2399 = vset.pattern.permute.xlu0 2
        %2400 = vperm.xlu0 %2399, %v1781
        %v2401 = vpop.permute.xlu0 %2400
        %2403 = vset.pattern.permute.xlu0 2
        %2404 = vperm.xlu0 %2403, %v1783
        %v2405 = vpop.permute.xlu0 %2404
        %2407 = vset.pattern.permute.xlu0 2
        %2408 = vperm.xlu0 %2407, %v1785
        %v2409 = vpop.permute.xlu0 %2408
        %2411 = vset.pattern.permute.xlu0 2
        %2412 = vperm.xlu0 %2411, %v1787
        %v2413 = vpop.permute.xlu0 %2412
        %2415 = vset.pattern.permute.xlu0 2
        %2416 = vperm.xlu0 %2415, %v1789
        %v2417 = vpop.permute.xlu0 %2416
        %2419 = vset.pattern.permute.xlu0 2
        %2420 = vperm.xlu0 %2419, %v1791
        %v2421 = vpop.permute.xlu0 %2420
        %2423 = vset.pattern.permute.xlu0 2
        %2424 = vperm.xlu0 %2423, %v1793
        %v2425 = vpop.permute.xlu0 %2424
        %2427 = vset.pattern.permute.xlu0 2
        %2428 = vperm.xlu0 %2427, %v1795
        %v2429 = vpop.permute.xlu0 %2428
        %2431 = vset.pattern.permute.xlu0 2
        %2432 = vperm.xlu0 %2431, %v1797
        %v2433 = vpop.permute.xlu0 %2432
        %2435 = vset.pattern.permute.xlu0 2
        %2436 = vperm.xlu0 %2435, %v1799
        %v2437 = vpop.permute.xlu0 %2436
        %2439 = vset.pattern.permute.xlu0 2
        %2440 = vperm.xlu0 %2439, %v1801
        %v2441 = vpop.permute.xlu0 %2440
        %2443 = vset.pattern.permute.xlu0 2
        %2444 = vperm.xlu0 %2443, %v1803
        %v2445 = vpop.permute.xlu0 %2444
        %2447 = vset.pattern.permute.xlu0 2
        %2448 = vperm.xlu0 %2447, %v1805
        %v2449 = vpop.permute.xlu0 %2448
        %2451 = vset.pattern.permute.xlu0 2
        %2452 = vperm.xlu0 %2451, %v1807
        %v2453 = vpop.permute.xlu0 %2452
        %2455 = vset.pattern.permute.xlu0 2
        %2456 = vperm.xlu0 %2455, %v1809
        %v2457 = vpop.permute.xlu0 %2456
        %2459 = vset.pattern.permute.xlu0 2
        %2460 = vperm.xlu0 %2459, %v1811
        %v2461 = vpop.permute.xlu0 %2460
        %v2463 = vlaneseq
        %v2464 = vshrl.u32 %v2463, 7
        %v2465 = vsub.s32 0, %v2464
        %v2466 = vrot.slane %v2334, %v2465
        %v2467 = vmul.f32 %v2337, %v2466
        %v2468 = vmul.f32 %v2341, %v2466
        %v2469 = vmul.f32 %v2345, %v2466
        %v2470 = vmul.f32 %v2349, %v2466
        %v2471 = vmul.f32 %v2353, %v2466
        %v2472 = vmul.f32 %v2357, %v2466
        %v2473 = vmul.f32 %v2361, %v2466
        %v2474 = vmul.f32 %v2365, %v2466
        %v2475 = vmul.f32 %v2369, %v2466
        %v2476 = vmul.f32 %v2373, %v2466
        %v2477 = vmul.f32 %v2377, %v2466
        %v2478 = vmul.f32 %v2381, %v2466
        %v2479 = vmul.f32 %v2385, %v2466
        %v2480 = vmul.f32 %v2389, %v2466
        %v2481 = vmul.f32 %v2393, %v2466
        %v2482 = vmul.f32 %v2397, %v2466
        %v2483 = vmul.f32 %v2401, %v2466
        %v2484 = vmul.f32 %v2405, %v2466
        %v2485 = vmul.f32 %v2409, %v2466
        %v2486 = vmul.f32 %v2413, %v2466
        %v2487 = vmul.f32 %v2417, %v2466
        %v2488 = vmul.f32 %v2421, %v2466
        %v2489 = vmul.f32 %v2425, %v2466
        %v2490 = vmul.f32 %v2429, %v2466
        %v2491 = vmul.f32 %v2433, %v2466
        %v2492 = vmul.f32 %v2437, %v2466
        %v2493 = vmul.f32 %v2441, %v2466
        %v2494 = vmul.f32 %v2445, %v2466
        %v2495 = vmul.f32 %v2449, %v2466
        %v2496 = vmul.f32 %v2453, %v2466
        %v2497 = vmul.f32 %v2457, %v2466
        %v2498 = vmul.f32 %v2461, %v2466
        %v2499 = vadd.f32 %v2302, %v2467
        %v2500 = vadd.f32 %v2303, %v2468
        %v2501 = vadd.f32 %v2304, %v2469
        %v2502 = vadd.f32 %v2305, %v2470
        %v2503 = vadd.f32 %v2306, %v2471
        %v2504 = vadd.f32 %v2307, %v2472
        %v2505 = vadd.f32 %v2308, %v2473
        %v2506 = vadd.f32 %v2309, %v2474
        %v2507 = vadd.f32 %v2310, %v2475
        %v2508 = vadd.f32 %v2311, %v2476
        %v2509 = vadd.f32 %v2312, %v2477
        %v2510 = vadd.f32 %v2313, %v2478
        %v2511 = vadd.f32 %v2314, %v2479
        %v2512 = vadd.f32 %v2315, %v2480
        %v2513 = vadd.f32 %v2316, %v2481
        %v2514 = vadd.f32 %v2317, %v2482
        %v2515 = vadd.f32 %v2318, %v2483
        %v2516 = vadd.f32 %v2319, %v2484
        %v2517 = vadd.f32 %v2320, %v2485
        %v2518 = vadd.f32 %v2321, %v2486
        %v2519 = vadd.f32 %v2322, %v2487
        %v2520 = vadd.f32 %v2323, %v2488
        %v2521 = vadd.f32 %v2324, %v2489
        %v2522 = vadd.f32 %v2325, %v2490
        %v2523 = vadd.f32 %v2326, %v2491
        %v2524 = vadd.f32 %v2327, %v2492
        %v2525 = vadd.f32 %v2328, %v2493
        %v2526 = vadd.f32 %v2329, %v2494
        %v2527 = vadd.f32 %v2330, %v2495
        %v2528 = vadd.f32 %v2331, %v2496
        %v2529 = vadd.f32 %v2332, %v2497
        %v2530 = vadd.f32 %v2333, %v2498
        %v2531 = vld [vmem:[%s4 + $0x3] sm:$0x1]
        %2532 = vset.pattern.permute.xlu0 3
        %2533 = vperm.xlu0 %2532, %v1749
        %v2534 = vpop.permute.xlu0 %2533
        %2536 = vset.pattern.permute.xlu0 3
        %2537 = vperm.xlu0 %2536, %v1751
        %v2538 = vpop.permute.xlu0 %2537
        %2540 = vset.pattern.permute.xlu0 3
        %2541 = vperm.xlu0 %2540, %v1753
        %v2542 = vpop.permute.xlu0 %2541
        %2544 = vset.pattern.permute.xlu0 3
        %2545 = vperm.xlu0 %2544, %v1755
        %v2546 = vpop.permute.xlu0 %2545
        %2548 = vset.pattern.permute.xlu0 3
        %2549 = vperm.xlu0 %2548, %v1757
        %v2550 = vpop.permute.xlu0 %2549
        %2552 = vset.pattern.permute.xlu0 3
        %2553 = vperm.xlu0 %2552, %v1759
        %v2554 = vpop.permute.xlu0 %2553
        %2556 = vset.pattern.permute.xlu0 3
        %2557 = vperm.xlu0 %2556, %v1761
        %v2558 = vpop.permute.xlu0 %2557
        %2560 = vset.pattern.permute.xlu0 3
        %2561 = vperm.xlu0 %2560, %v1763
        %v2562 = vpop.permute.xlu0 %2561
        %2564 = vset.pattern.permute.xlu0 3
        %2565 = vperm.xlu0 %2564, %v1765
        %v2566 = vpop.permute.xlu0 %2565
        %2568 = vset.pattern.permute.xlu0 3
        %2569 = vperm.xlu0 %2568, %v1767
        %v2570 = vpop.permute.xlu0 %2569
        %2572 = vset.pattern.permute.xlu0 3
        %2573 = vperm.xlu0 %2572, %v1769
        %v2574 = vpop.permute.xlu0 %2573
        %2576 = vset.pattern.permute.xlu0 3
        %2577 = vperm.xlu0 %2576, %v1771
        %v2578 = vpop.permute.xlu0 %2577
        %2580 = vset.pattern.permute.xlu0 3
        %2581 = vperm.xlu0 %2580, %v1773
        %v2582 = vpop.permute.xlu0 %2581
        %2584 = vset.pattern.permute.xlu0 3
        %2585 = vperm.xlu0 %2584, %v1775
        %v2586 = vpop.permute.xlu0 %2585
        %2588 = vset.pattern.permute.xlu0 3
        %2589 = vperm.xlu0 %2588, %v1777
        %v2590 = vpop.permute.xlu0 %2589
        %2592 = vset.pattern.permute.xlu0 3
        %2593 = vperm.xlu0 %2592, %v1779
        %v2594 = vpop.permute.xlu0 %2593
        %2596 = vset.pattern.permute.xlu0 3
        %2597 = vperm.xlu0 %2596, %v1781
        %v2598 = vpop.permute.xlu0 %2597
        %2600 = vset.pattern.permute.xlu0 3
        %2601 = vperm.xlu0 %2600, %v1783
        %v2602 = vpop.permute.xlu0 %2601
        %2604 = vset.pattern.permute.xlu0 3
        %2605 = vperm.xlu0 %2604, %v1785
        %v2606 = vpop.permute.xlu0 %2605
        %2608 = vset.pattern.permute.xlu0 3
        %2609 = vperm.xlu0 %2608, %v1787
        %v2610 = vpop.permute.xlu0 %2609
        %2612 = vset.pattern.permute.xlu0 3
        %2613 = vperm.xlu0 %2612, %v1789
        %v2614 = vpop.permute.xlu0 %2613
        %2616 = vset.pattern.permute.xlu0 3
        %2617 = vperm.xlu0 %2616, %v1791
        %v2618 = vpop.permute.xlu0 %2617
        %2620 = vset.pattern.permute.xlu0 3
        %2621 = vperm.xlu0 %2620, %v1793
        %v2622 = vpop.permute.xlu0 %2621
        %2624 = vset.pattern.permute.xlu0 3
        %2625 = vperm.xlu0 %2624, %v1795
        %v2626 = vpop.permute.xlu0 %2625
        %2628 = vset.pattern.permute.xlu0 3
        %2629 = vperm.xlu0 %2628, %v1797
        %v2630 = vpop.permute.xlu0 %2629
        %2632 = vset.pattern.permute.xlu0 3
        %2633 = vperm.xlu0 %2632, %v1799
        %v2634 = vpop.permute.xlu0 %2633
        %2636 = vset.pattern.permute.xlu0 3
        %2637 = vperm.xlu0 %2636, %v1801
        %v2638 = vpop.permute.xlu0 %2637
        %2640 = vset.pattern.permute.xlu0 3
        %2641 = vperm.xlu0 %2640, %v1803
        %v2642 = vpop.permute.xlu0 %2641
        %2644 = vset.pattern.permute.xlu0 3
        %2645 = vperm.xlu0 %2644, %v1805
        %v2646 = vpop.permute.xlu0 %2645
        %2648 = vset.pattern.permute.xlu0 3
        %2649 = vperm.xlu0 %2648, %v1807
        %v2650 = vpop.permute.xlu0 %2649
        %2652 = vset.pattern.permute.xlu0 3
        %2653 = vperm.xlu0 %2652, %v1809
        %v2654 = vpop.permute.xlu0 %2653
        %2656 = vset.pattern.permute.xlu0 3
        %2657 = vperm.xlu0 %2656, %v1811
        %v2658 = vpop.permute.xlu0 %2657
        %v2660 = vlaneseq
        %v2661 = vshrl.u32 %v2660, 7
        %v2662 = vsub.s32 0, %v2661
        %v2663 = vrot.slane %v2531, %v2662
        %v2664 = vmul.f32 %v2534, %v2663
        %v2665 = vmul.f32 %v2538, %v2663
        %v2666 = vmul.f32 %v2542, %v2663
        %v2667 = vmul.f32 %v2546, %v2663
        %v2668 = vmul.f32 %v2550, %v2663
        %v2669 = vmul.f32 %v2554, %v2663
        %v2670 = vmul.f32 %v2558, %v2663
        %v2671 = vmul.f32 %v2562, %v2663
        %v2672 = vmul.f32 %v2566, %v2663
        %v2673 = vmul.f32 %v2570, %v2663
        %v2674 = vmul.f32 %v2574, %v2663
        %v2675 = vmul.f32 %v2578, %v2663
        %v2676 = vmul.f32 %v2582, %v2663
        %v2677 = vmul.f32 %v2586, %v2663
        %v2678 = vmul.f32 %v2590, %v2663
        %v2679 = vmul.f32 %v2594, %v2663
        %v2680 = vmul.f32 %v2598, %v2663
        %v2681 = vmul.f32 %v2602, %v2663
        %v2682 = vmul.f32 %v2606, %v2663
        %v2683 = vmul.f32 %v2610, %v2663
        %v2684 = vmul.f32 %v2614, %v2663
        %v2685 = vmul.f32 %v2618, %v2663
        %v2686 = vmul.f32 %v2622, %v2663
        %v2687 = vmul.f32 %v2626, %v2663
        %v2688 = vmul.f32 %v2630, %v2663
        %v2689 = vmul.f32 %v2634, %v2663
        %v2690 = vmul.f32 %v2638, %v2663
        %v2691 = vmul.f32 %v2642, %v2663
        %v2692 = vmul.f32 %v2646, %v2663
        %v2693 = vmul.f32 %v2650, %v2663
        %v2694 = vmul.f32 %v2654, %v2663
        %v2695 = vmul.f32 %v2658, %v2663
        %v2696 = vadd.f32 %v2499, %v2664
        %v2697 = vadd.f32 %v2500, %v2665
        %v2698 = vadd.f32 %v2501, %v2666
        %v2699 = vadd.f32 %v2502, %v2667
        %v2700 = vadd.f32 %v2503, %v2668
        %v2701 = vadd.f32 %v2504, %v2669
        %v2702 = vadd.f32 %v2505, %v2670
        %v2703 = vadd.f32 %v2506, %v2671
        %v2704 = vadd.f32 %v2507, %v2672
        %v2705 = vadd.f32 %v2508, %v2673
        %v2706 = vadd.f32 %v2509, %v2674
        %v2707 = vadd.f32 %v2510, %v2675
        %v2708 = vadd.f32 %v2511, %v2676
        %v2709 = vadd.f32 %v2512, %v2677
        %v2710 = vadd.f32 %v2513, %v2678
        %v2711 = vadd.f32 %v2514, %v2679
        %v2712 = vadd.f32 %v2515, %v2680
        %v2713 = vadd.f32 %v2516, %v2681
        %v2714 = vadd.f32 %v2517, %v2682
        %v2715 = vadd.f32 %v2518, %v2683
        %v2716 = vadd.f32 %v2519, %v2684
        %v2717 = vadd.f32 %v2520, %v2685
        %v2718 = vadd.f32 %v2521, %v2686
        %v2719 = vadd.f32 %v2522, %v2687
        %v2720 = vadd.f32 %v2523, %v2688
        %v2721 = vadd.f32 %v2524, %v2689
        %v2722 = vadd.f32 %v2525, %v2690
        %v2723 = vadd.f32 %v2526, %v2691
        %v2724 = vadd.f32 %v2527, %v2692
        %v2725 = vadd.f32 %v2528, %v2693
        %v2726 = vadd.f32 %v2529, %v2694
        %v2727 = vadd.f32 %v2530, %v2695
        %v2728 = vmul.f32 %v2696, %v1908
        %v2729 = vmul.f32 %v2697, %v1909
        %v2730 = vmul.f32 %v2698, %v1910
        %v2731 = vmul.f32 %v2699, %v1911
        %v2732 = vmul.f32 %v2700, %v1912
        %v2733 = vmul.f32 %v2701, %v1913
        %v2734 = vmul.f32 %v2702, %v1914
        %v2735 = vmul.f32 %v2703, %v1915
        %v2736 = vmul.f32 %v2704, %v1916
        %v2737 = vmul.f32 %v2705, %v1917
        %v2738 = vmul.f32 %v2706, %v1918
        %v2739 = vmul.f32 %v2707, %v1919
        %v2740 = vmul.f32 %v2708, %v1920
        %v2741 = vmul.f32 %v2709, %v1921
        %v2742 = vmul.f32 %v2710, %v1922
        %v2743 = vmul.f32 %v2711, %v1923
        %v2744 = vmul.f32 %v2712, %v1924
        %v2745 = vmul.f32 %v2713, %v1925
        %v2746 = vmul.f32 %v2714, %v1926
        %v2747 = vmul.f32 %v2715, %v1927
        %v2748 = vmul.f32 %v2716, %v1928
        %v2749 = vmul.f32 %v2717, %v1929
        %v2750 = vmul.f32 %v2718, %v1930
        %v2751 = vmul.f32 %v2719, %v1931
        %v2752 = vmul.f32 %v2720, %v1932
        %v2753 = vmul.f32 %v2721, %v1933
        %v2754 = vmul.f32 %v2722, %v1934
        %v2755 = vmul.f32 %v2723, %v1935
        %v2756 = vmul.f32 %v2724, %v1936
        %v2757 = vmul.f32 %v2725, %v1937
        %v2758 = vmul.f32 %v2726, %v1938
        %v2759 = vmul.f32 %v2727, %v1939
        %v2760 = vpack.c.bf16 %v2729, %v2728
        %v2761 = vpack.c.bf16 %v2731, %v2730
        %v2762 = vpack.c.bf16 %v2733, %v2732
        %v2763 = vpack.c.bf16 %v2735, %v2734
        %v2764 = vpack.c.bf16 %v2737, %v2736
        %v2765 = vpack.c.bf16 %v2739, %v2738
        %v2766 = vpack.c.bf16 %v2741, %v2740
        %v2767 = vpack.c.bf16 %v2743, %v2742
        %v2768 = vpack.c.bf16 %v2745, %v2744
        %v2769 = vpack.c.bf16 %v2747, %v2746
        %v2770 = vpack.c.bf16 %v2749, %v2748
        %v2771 = vpack.c.bf16 %v2751, %v2750
        %v2772 = vpack.c.bf16 %v2753, %v2752
        %v2773 = vpack.c.bf16 %v2755, %v2754
        %v2774 = vpack.c.bf16 %v2757, %v2756
        %v2775 = vpack.c.bf16 %v2759, %v2758
        %v2776 = vld [vmem:[#allocation8] sm:$0xf]
        %v2777 = vld [vmem:[#allocation8 + $0x4] sm:$0xf]
        %v2778 = vld [vmem:[#allocation8 + $0x8] sm:$0xf]
        %v2779 = vld [vmem:[#allocation8 + $0xc] sm:$0xf]
        %v2780 = vld [vmem:[#allocation8 + $0x10] sm:$0xf]
        %v2781 = vld [vmem:[#allocation8 + $0x14] sm:$0xf]
        %v2782 = vld [vmem:[#allocation8 + $0x18] sm:$0xf]
        %v2783 = vld [vmem:[#allocation8 + $0x1c] sm:$0xf]
        %v2784 = vld [vmem:[#allocation8 + $0x20] sm:$0xf]
        %v2785 = vld [vmem:[#allocation8 + $0x24] sm:$0xf]
        %v2786 = vld [vmem:[#allocation8 + $0x28] sm:$0xf]
        %v2787 = vld [vmem:[#allocation8 + $0x2c] sm:$0xf]
        %v2788 = vld [vmem:[#allocation8 + $0x30] sm:$0xf]
        %v2789 = vld [vmem:[#allocation8 + $0x34] sm:$0xf]
        %v2790 = vld [vmem:[#allocation8 + $0x38] sm:$0xf]
        %v2791 = vld [vmem:[#allocation8 + $0x3c] sm:$0xf]
        %v2792 = vld [vmem:[%s7] sm:$0x1]
        %v2794 = vlaneseq
        %v2795 = vshrl.u32 %v2794, 7
        %v2796 = vsub.s32 0, %v2795
        %v2797 = vrot.slane %v2792, %v2796
        %v2815 = vunpack.c.l.b16 %v2776
        %v2816 = vunpack.c.l.b16 %v2777
        %v2817 = vunpack.c.l.b16 %v2778
        %v2818 = vunpack.c.l.b16 %v2779
        %v2819 = vunpack.c.l.b16 %v2780
        %v2820 = vunpack.c.l.b16 %v2781
        %v2821 = vunpack.c.l.b16 %v2782
        %v2822 = vunpack.c.l.b16 %v2783
        %v2823 = vunpack.c.l.b16 %v2784
        %v2824 = vunpack.c.l.b16 %v2785
        %v2825 = vunpack.c.l.b16 %v2786
        %v2826 = vunpack.c.l.b16 %v2787
        %v2827 = vunpack.c.l.b16 %v2788
        %v2828 = vunpack.c.l.b16 %v2789
        %v2829 = vunpack.c.l.b16 %v2790
        %v2830 = vunpack.c.l.b16 %v2791
        %v2831 = vpack.c.b16 %v2816, %v2815
        %v2832 = vpack.c.b16 %v2818, %v2817
        %v2833 = vpack.c.b16 %v2820, %v2819
        %v2834 = vpack.c.b16 %v2822, %v2821
        %v2835 = vpack.c.b16 %v2824, %v2823
        %v2836 = vpack.c.b16 %v2826, %v2825
        %v2837 = vpack.c.b16 %v2828, %v2827
        %v2838 = vpack.c.b16 %v2830, %v2829
        %2847 = vmatprep.subr.bf16.mxu0 0
        %2848 = vmatpush1.bf16.msra.mxu0 %v2831
        %2849 = vmatprep.subr.bf16.mxu0 0
        %2850 = vmatpush1.bf16.msra.mxu0 %v2832
        %2851 = vmatprep.subr.bf16.mxu0 0
        %2852 = vmatpush1.bf16.msra.mxu0 %v2833
        %2853 = vmatprep.subr.bf16.mxu0 0
        %2854 = vmatpush1.bf16.msra.mxu0 %v2834
        %2855 = vmatprep.subr.bf16.mxu0 0
        %2856 = vmatpush1.bf16.msra.mxu0 %v2835
        %2857 = vmatprep.subr.bf16.mxu0 0
        %2858 = vmatpush1.bf16.msra.mxu0 %v2836
        %2859 = vmatprep.subr.bf16.mxu0 0
        %2860 = vmatpush1.bf16.msra.mxu0 %v2837
        %2861 = vmatprep.subr.bf16.mxu0 0
        %2862 = vmatpush1.bf16.msra.mxu0 %v2838
        %2863 = vmatprep.subr.bf16.mxu0 0
        %2864 = vmatpush1.bf16.msra.mxu0 0
        %2865 = vmatprep.subr.bf16.mxu0 0
        %2866 = vmatpush1.bf16.msra.mxu0 0
        %2867 = vmatprep.subr.bf16.mxu0 0
        %2868 = vmatpush1.bf16.msra.mxu0 0
        %2869 = vmatprep.subr.bf16.mxu0 0
        %2870 = vmatpush1.bf16.msra.mxu0 0
        %2871 = vmatprep.subr.bf16.mxu0 0
        %2872 = vmatpush1.bf16.msra.mxu0 0
        %2873 = vmatprep.subr.bf16.mxu0 0
        %2874 = vmatpush1.bf16.msra.mxu0 0
        %2875 = vmatprep.subr.bf16.mxu0 0
        %2876 = vmatpush1.bf16.msra.mxu0 0
        %2877 = vmatprep.subr.bf16.mxu0 0
        %2878 = vmatpush1.bf16.msra.mxu0 0
        %2879 = vmatprep.mubr.bf16.mxu0 0
        %2880 = vmatmul.mubr.bf16.gmra.mrb[0].mxu0 %v2760
        %v2881 = vpop.f32.mrb[0].mxu0
        %v2882 = vadd.f32 %v2797, %v2881
        %v2883 = vpop.f32.mrb[0].mxu0
        %v2884 = vpop.f32.mrb[0].mxu0
        %v2885 = vadd.f32 %v2797, %v2884
        %v2886 = vpop.f32.mrb[0].mxu0
        %2887 = vmatprep.mubr.bf16.mxu0 0
        %2888 = vmatmul.mubr.bf16.gmra.mrb[0].mxu0 %v2761
        %v2889 = vpop.f32.mrb[0].mxu0
        %v2890 = vadd.f32 %v2797, %v2889
        %v2891 = vpop.f32.mrb[0].mxu0
        %v2892 = vpop.f32.mrb[0].mxu0
        %v2893 = vadd.f32 %v2797, %v2892
        %v2894 = vpop.f32.mrb[0].mxu0
        %2895 = vmatprep.mubr.bf16.mxu0 0
        %2896 = vmatmul.mubr.bf16.gmra.mrb[0].mxu0 %v2762
        %v2897 = vpop.f32.mrb[0].mxu0
        %v2898 = vadd.f32 %v2797, %v2897
        %v2899 = vpop.f32.mrb[0].mxu0
        %v2900 = vpop.f32.mrb[0].mxu0
        %v2901 = vadd.f32 %v2797, %v2900
        %v2902 = vpop.f32.mrb[0].mxu0
        %2903 = vmatprep.mubr.bf16.mxu0 0
        %2904 = vmatmul.mubr.bf16.gmra.mrb[0].mxu0 %v2763
        %v2905 = vpop.f32.mrb[0].mxu0
        %v2906 = vadd.f32 %v2797, %v2905
        %v2907 = vpop.f32.mrb[0].mxu0
        %v2908 = vpop.f32.mrb[0].mxu0
        %v2909 = vadd.f32 %v2797, %v2908
        %v2910 = vpop.f32.mrb[0].mxu0
        %2911 = vmatprep.mubr.bf16.mxu0 0
        %2912 = vmatmul.mubr.bf16.gmra.mrb[0].mxu0 %v2764
        %v2913 = vpop.f32.mrb[0].mxu0
        %v2914 = vadd.f32 %v2797, %v2913
        %v2915 = vpop.f32.mrb[0].mxu0
        %v2916 = vpop.f32.mrb[0].mxu0
        %v2917 = vadd.f32 %v2797, %v2916
        %v2918 = vpop.f32.mrb[0].mxu0
        %2919 = vmatprep.mubr.bf16.mxu0 0
        %2920 = vmatmul.mubr.bf16.gmra.mrb[0].mxu0 %v2765
        %v2921 = vpop.f32.mrb[0].mxu0
        %v2922 = vadd.f32 %v2797, %v2921
        %v2923 = vpop.f32.mrb[0].mxu0
        %v2924 = vpop.f32.mrb[0].mxu0
        %v2925 = vadd.f32 %v2797, %v2924
        %v2926 = vpop.f32.mrb[0].mxu0
        %2927 = vmatprep.mubr.bf16.mxu0 0
        %2928 = vmatmul.mubr.bf16.gmra.mrb[0].mxu0 %v2766
        %v2929 = vpop.f32.mrb[0].mxu0
        %v2930 = vadd.f32 %v2797, %v2929
        %v2931 = vpop.f32.mrb[0].mxu0
        %v2932 = vpop.f32.mrb[0].mxu0
        %v2933 = vadd.f32 %v2797, %v2932
        %v2934 = vpop.f32.mrb[0].mxu0
        %2935 = vmatprep.mubr.bf16.mxu0 0
        %2936 = vmatmul.mubr.bf16.gmra.mrb[0].mxu0 %v2767
        %v2937 = vpop.f32.mrb[0].mxu0
        %v2938 = vadd.f32 %v2797, %v2937
        %v2939 = vpop.f32.mrb[0].mxu0
        %v2940 = vpop.f32.mrb[0].mxu0
        %v2941 = vadd.f32 %v2797, %v2940
        %v2942 = vpop.f32.mrb[0].mxu0
        %2943 = vmatprep.mubr.bf16.mxu0 0
        %2944 = vmatmul.mubr.bf16.gmra.mrb[0].mxu0 %v2768
        %v2945 = vpop.f32.mrb[0].mxu0
        %v2946 = vadd.f32 %v2797, %v2945
        %v2947 = vpop.f32.mrb[0].mxu0
        %v2948 = vpop.f32.mrb[0].mxu0
        %v2949 = vadd.f32 %v2797, %v2948
        %v2950 = vpop.f32.mrb[0].mxu0
        %2951 = vmatprep.mubr.bf16.mxu0 0
        %2952 = vmatmul.mubr.bf16.gmra.mrb[0].mxu0 %v2769
        %v2953 = vpop.f32.mrb[0].mxu0
        %v2954 = vadd.f32 %v2797, %v2953
        %v2955 = vpop.f32.mrb[0].mxu0
        %v2956 = vpop.f32.mrb[0].mxu0
        %v2957 = vadd.f32 %v2797, %v2956
        %v2958 = vpop.f32.mrb[0].mxu0
        %2959 = vmatprep.mubr.bf16.mxu0 0
        %2960 = vmatmul.mubr.bf16.gmra.mrb[0].mxu0 %v2770
        %v2961 = vpop.f32.mrb[0].mxu0
        %v2962 = vadd.f32 %v2797, %v2961
        %v2963 = vpop.f32.mrb[0].mxu0
        %v2964 = vpop.f32.mrb[0].mxu0
        %v2965 = vadd.f32 %v2797, %v2964
        %v2966 = vpop.f32.mrb[0].mxu0
        %2967 = vmatprep.mubr.bf16.mxu0 0
        %2968 = vmatmul.mubr.bf16.gmra.mrb[0].mxu0 %v2771
        %v2969 = vpop.f32.mrb[0].mxu0
        %v2970 = vadd.f32 %v2797, %v2969
        %v2971 = vpop.f32.mrb[0].mxu0
        %v2972 = vpop.f32.mrb[0].mxu0
        %v2973 = vadd.f32 %v2797, %v2972
        %v2974 = vpop.f32.mrb[0].mxu0
        %2975 = vmatprep.mubr.bf16.mxu0 0
        %2976 = vmatmul.mubr.bf16.gmra.mrb[0].mxu0 %v2772
        %v2977 = vpop.f32.mrb[0].mxu0
        %v2978 = vadd.f32 %v2797, %v2977
        %v2979 = vpop.f32.mrb[0].mxu0
        %v2980 = vpop.f32.mrb[0].mxu0
        %v2981 = vadd.f32 %v2797, %v2980
        %v2982 = vpop.f32.mrb[0].mxu0
        %2983 = vmatprep.mubr.bf16.mxu0 0
        %2984 = vmatmul.mubr.bf16.gmra.mrb[0].mxu0 %v2773
        %v2985 = vpop.f32.mrb[0].mxu0
        %v2986 = vadd.f32 %v2797, %v2985
        %v2987 = vpop.f32.mrb[0].mxu0
        %v2988 = vpop.f32.mrb[0].mxu0
        %v2989 = vadd.f32 %v2797, %v2988
        %v2990 = vpop.f32.mrb[0].mxu0
        %2991 = vmatprep.mubr.bf16.mxu0 0
        %2992 = vmatmul.mubr.bf16.gmra.mrb[0].mxu0 %v2774
        %v2993 = vpop.f32.mrb[0].mxu0
        %v2994 = vadd.f32 %v2797, %v2993
        %v2995 = vpop.f32.mrb[0].mxu0
        %v2996 = vpop.f32.mrb[0].mxu0
        %v2997 = vadd.f32 %v2797, %v2996
        %v2998 = vpop.f32.mrb[0].mxu0
        %2999 = vmatprep.mubr.bf16.mxu0 0
        %3000 = vmatmul.mubr.bf16.gmra.mrb[0].mxu0 %v2775
        %v3001 = vpop.f32.mrb[0].mxu0
        %v3002 = vadd.f32 %v2797, %v3001
        %v3003 = vpop.f32.mrb[0].mxu0
        %v3004 = vpop.f32.mrb[0].mxu0
        %v3005 = vadd.f32 %v2797, %v3004
        %v3006 = vpop.f32.mrb[0].mxu0
        %3007 = vdwg.mxu0
        %3008 = vst [vmem:[%s398] sm:$0xff] %v2882
        %3009 = vst [vmem:[%s398 + $0x8] sm:$0xff] %v2885
        %3010 = vst [vmem:[%s398 + $0x10] sm:$0xff] %v2890
        %3011 = vst [vmem:[%s398 + $0x18] sm:$0xff] %v2893
        %3012 = vst [vmem:[%s398 + $0x20] sm:$0xff] %v2898
        %3013 = vst [vmem:[%s398 + $0x28] sm:$0xff] %v2901
        %3014 = vst [vmem:[%s398 + $0x30] sm:$0xff] %v2906
        %3015 = vst [vmem:[%s398 + $0x38] sm:$0xff] %v2909
        %3016 = vst [vmem:[%s398 + $0x40] sm:$0xff] %v2914
        %3017 = vst [vmem:[%s398 + $0x48] sm:$0xff] %v2917
        %3018 = vst [vmem:[%s398 + $0x50] sm:$0xff] %v2922
        %3019 = vst [vmem:[%s398 + $0x58] sm:$0xff] %v2925
        %3020 = vst [vmem:[%s398 + $0x60] sm:$0xff] %v2930
        %3021 = vst [vmem:[%s398 + $0x68] sm:$0xff] %v2933
        %3022 = vst [vmem:[%s398 + $0x70] sm:$0xff] %v2938
        %3023 = vst [vmem:[%s398 + $0x78] sm:$0xff] %v2941
        %3024 = vst [vmem:[%s398 + $0x80] sm:$0xff] %v2946
        %3025 = vst [vmem:[%s398 + $0x88] sm:$0xff] %v2949
        %3026 = vst [vmem:[%s398 + $0x90] sm:$0xff] %v2954
        %3027 = vst [vmem:[%s398 + $0x98] sm:$0xff] %v2957
        %3028 = vst [vmem:[%s398 + $0xa0] sm:$0xff] %v2962
        %3029 = vst [vmem:[%s398 + $0xa8] sm:$0xff] %v2965
        %3030 = vst [vmem:[%s398 + $0xb0] sm:$0xff] %v2970
        %3031 = vst [vmem:[%s398 + $0xb8] sm:$0xff] %v2973
        %3032 = vst [vmem:[%s398 + $0xc0] sm:$0xff] %v2978
        %3033 = vst [vmem:[%s398 + $0xc8] sm:$0xff] %v2981
        %3034 = vst [vmem:[%s398 + $0xd0] sm:$0xff] %v2986
        %3035 = vst [vmem:[%s398 + $0xd8] sm:$0xff] %v2989
        %3036 = vst [vmem:[%s398 + $0xe0] sm:$0xff] %v2994
        %3037 = vst [vmem:[%s398 + $0xe8] sm:$0xff] %v2997
        %3038 = vst [vmem:[%s398 + $0xf0] sm:$0xff] %v3002
        %3039 = vst [vmem:[%s398 + $0xf8] sm:$0xff] %v3005
        %v3040 = vcvt.f32.s32.ties.to.even %v2882
        %v3041 = vcvt.f32.s32.ties.to.even %v2885
        %v3042 = vcvt.f32.s32.ties.to.even %v2890
        %v3043 = vcvt.f32.s32.ties.to.even %v2893
        %v3044 = vcvt.f32.s32.ties.to.even %v2898
        %v3045 = vcvt.f32.s32.ties.to.even %v2901
        %v3046 = vcvt.f32.s32.ties.to.even %v2906
        %v3047 = vcvt.f32.s32.ties.to.even %v2909
        %v3048 = vcvt.f32.s32.ties.to.even %v2914
        %v3049 = vcvt.f32.s32.ties.to.even %v2917
        %v3050 = vcvt.f32.s32.ties.to.even %v2922
        %v3051 = vcvt.f32.s32.ties.to.even %v2925
        %v3052 = vcvt.f32.s32.ties.to.even %v2930
        %v3053 = vcvt.f32.s32.ties.to.even %v2933
        %v3054 = vcvt.f32.s32.ties.to.even %v2938
        %v3055 = vcvt.f32.s32.ties.to.even %v2941
        %v3056 = vcvt.f32.s32.ties.to.even %v2946
        %v3057 = vcvt.f32.s32.ties.to.even %v2949
        %v3058 = vcvt.f32.s32.ties.to.even %v2954
        %v3059 = vcvt.f32.s32.ties.to.even %v2957
        %v3060 = vcvt.f32.s32.ties.to.even %v2962
        %v3061 = vcvt.f32.s32.ties.to.even %v2965
        %v3062 = vcvt.f32.s32.ties.to.even %v2970
        %v3063 = vcvt.f32.s32.ties.to.even %v2973
        %v3064 = vcvt.f32.s32.ties.to.even %v2978
        %v3065 = vcvt.f32.s32.ties.to.even %v2981
        %v3066 = vcvt.f32.s32.ties.to.even %v2986
        %v3067 = vcvt.f32.s32.ties.to.even %v2989
        %v3068 = vcvt.f32.s32.ties.to.even %v2994
        %v3069 = vcvt.f32.s32.ties.to.even %v2997
        %v3070 = vcvt.f32.s32.ties.to.even %v3002
        %v3071 = vcvt.f32.s32.ties.to.even %v3005
        %3072 = vst [vmem:[%s405] sm:$0xff] %v3040
        %3073 = vst [vmem:[%s405 + $0x8] sm:$0xff] %v3041
        %3074 = vst [vmem:[%s405 + $0x10] sm:$0xff] %v3042
        %3075 = vst [vmem:[%s405 + $0x18] sm:$0xff] %v3043
        %3076 = vst [vmem:[%s405 + $0x20] sm:$0xff] %v3044
        %3077 = vst [vmem:[%s405 + $0x28] sm:$0xff] %v3045
        %3078 = vst [vmem:[%s405 + $0x30] sm:$0xff] %v3046
        %3079 = vst [vmem:[%s405 + $0x38] sm:$0xff] %v3047
        %3080 = vst [vmem:[%s405 + $0x40] sm:$0xff] %v3048
        %3081 = vst [vmem:[%s405 + $0x48] sm:$0xff] %v3049
        %3082 = vst [vmem:[%s405 + $0x50] sm:$0xff] %v3050
        %3083 = vst [vmem:[%s405 + $0x58] sm:$0xff] %v3051
        %3084 = vst [vmem:[%s405 + $0x60] sm:$0xff] %v3052
        %3085 = vst [vmem:[%s405 + $0x68] sm:$0xff] %v3053
        %3086 = vst [vmem:[%s405 + $0x70] sm:$0xff] %v3054
        %3087 = vst [vmem:[%s405 + $0x78] sm:$0xff] %v3055
        %3088 = vst [vmem:[%s405 + $0x80] sm:$0xff] %v3056
        %3089 = vst [vmem:[%s405 + $0x88] sm:$0xff] %v3057
        %3090 = vst [vmem:[%s405 + $0x90] sm:$0xff] %v3058
        %3091 = vst [vmem:[%s405 + $0x98] sm:$0xff] %v3059
        %3092 = vst [vmem:[%s405 + $0xa0] sm:$0xff] %v3060
        %3093 = vst [vmem:[%s405 + $0xa8] sm:$0xff] %v3061
        %3094 = vst [vmem:[%s405 + $0xb0] sm:$0xff] %v3062
        %3095 = vst [vmem:[%s405 + $0xb8] sm:$0xff] %v3063
        %3096 = vst [vmem:[%s405 + $0xc0] sm:$0xff] %v3064
        %3097 = vst [vmem:[%s405 + $0xc8] sm:$0xff] %v3065
        %3098 = vst [vmem:[%s405 + $0xd0] sm:$0xff] %v3066
        %3099 = vst [vmem:[%s405 + $0xd8] sm:$0xff] %v3067
        %3100 = vst [vmem:[%s405 + $0xe0] sm:$0xff] %v3068
        %3101 = vst [vmem:[%s405 + $0xe8] sm:$0xff] %v3069
        %3102 = vst [vmem:[%s405 + $0xf0] sm:$0xff] %v3070
        %3103 = vst [vmem:[%s405 + $0xf8] sm:$0xff] %v3071
        %s3104 = sand.u32 %s213, 1
        %s3105 = scalar_lea.sflag [#allocation4], %s3104
        %s3106 = sand.u32 %s213, 1
        %s3107 = smul.addr %s3106, 256
        %s3108 = scalar_lea.vmem [#allocation10], %s3107
        %s3109 = sand.u32 %s239, 1
        %s3110 = scalar_lea.sflag [#allocation12], %s3109
        %s3111 = sand.u32 %s239, 1
        %s3112 = smul.addr %s3111, 256
        %s3113 = scalar_lea.vmem [#allocation11], %s3112
        // Predicated region
        $region69: #{tpu_custom_call.1} parent=51 // pred_check
          %p3114 = pneg %p223
        $region70: #{tpu_custom_call.1} parent=51 // pred_check_branch
          %3116 = sbr.rel (%p3114) target = $region72
        $region71: #{tpu_custom_call.1} parent=51 // pred_region
          %s3117 = smul.u32 32, %s32
          %s3119 = ssub.s32 4096, 4096
          %3120 = vsyncadd %s3105, %s3119
          %s3121 = smul.addr %s3117, 128
          %s3122 = scalar_lea.hbm %s8, %s3121
          %s3123 = sshll.u32 %s3108, 4
          %s3124 = int_to_ptr.vmem [resolvable:$true] %s3123
          %3129 = dma.vmem_to_hbm [thread:$0]  %s3124, 4096, %s3122, %s3105, 128, 128, 8
        $region72: #{tpu_custom_call.1} parent=51 // pred_fallthru
          _
        // Predicated region
        $region73: #{tpu_custom_call.1} parent=51 // pred_check
          %p3130 = pneg %p249
        $region74: #{tpu_custom_call.1} parent=51 // pred_check_branch
          %3132 = sbr.rel (%p3130) target = $region76
        $region75: #{tpu_custom_call.1} parent=51 // pred_region
          %s3133 = smul.u32 32, %s32
          %s3135 = ssub.s32 4096, 4096
          %3136 = vsyncadd %s3110, %s3135
          %s3137 = smul.addr %s3133, 128
          %s3138 = scalar_lea.hbm %s9, %s3137
          %s3139 = sshll.u32 %s3113, 4
          %s3140 = int_to_ptr.vmem [resolvable:$true] %s3139
          %3145 = dma.vmem_to_hbm [thread:$0]  %s3140, 4096, %s3138, %s3110, 128, 128, 8
        $region76: #{tpu_custom_call.1} parent=51 // pred_fallthru
          _
      $region52: #{tpu_custom_call.1} parent=5 // pred_fallthru
        _
      %p3146 = scmp.le.s32.totalorder 2, %s27
      // Predicated region
      $region77: #{tpu_custom_call.1} parent=5 // pred_check
        %p3147 = pneg %p3146
      $region78: #{tpu_custom_call.1} parent=5 // pred_check_branch
        %3149 = sbr.rel (%p3147) target = $region80
      $region79: #{tpu_custom_call.1} parent=5 // pred_region
        %s3150 = ssub.s32 %s27, 2
        // Predicated region
        $region81: #{tpu_custom_call.1} parent=79 // pred_check
          %p3151 = pneg %p229
        $region82: #{tpu_custom_call.1} parent=79 // pred_check_branch
          %3153 = sbr.rel (%p3151) target = $region84
        $region83: #{tpu_custom_call.1} parent=79 // pred_region
          %s3154 = sand.u32 %s214, 1
          %s3155 = scalar_lea.sflag [#allocation4], %s3154
          %s3156 = sand.u32 %s214, 1
          %s3157 = smul.addr %s3156, 256
          %s3158 = scalar_lea.vmem [#allocation10], %s3157
          %3159 = dma.done %s3155, 4096
        $region84: #{tpu_custom_call.1} parent=79 // pred_fallthru
          _
        // Predicated region
        $region85: #{tpu_custom_call.1} parent=79 // pred_check
          %p3160 = pneg %p255
        $region86: #{tpu_custom_call.1} parent=79 // pred_check_branch
          %3162 = sbr.rel (%p3160) target = $region88
        $region87: #{tpu_custom_call.1} parent=79 // pred_region
          %s3163 = sand.u32 %s240, 1
          %s3164 = scalar_lea.sflag [#allocation12], %s3163
          %s3165 = sand.u32 %s240, 1
          %s3166 = smul.addr %s3165, 256
          %s3167 = scalar_lea.vmem [#allocation11], %s3166
          %3168 = dma.done %s3164, 4096
        $region88: #{tpu_custom_call.1} parent=79 // pred_fallthru
          _
      $region80: #{tpu_custom_call.1} parent=5 // pred_fallthru
        _
    $region6: #{tpu_custom_call.1} parent=1 // loop_footer
      %s31 = sadd.s32 1, %s27
    $region7: #{tpu_custom_call.1} parent=1 // loop_footer_branch
      %26 = sbr.rel target = $region3
    $region8: #{tpu_custom_call.1} parent=1 // loop_exit
      _
    %3169 = vsyncpa [#allocation3], 1
    %s3170 = scalar_lea.sflag [#allocation3], 1
    %3171 = vsyncpa %s3170, 1
    %3172 = vsyncpa [#allocation6], 1
    %3173 = vsyncpa [#allocation9], 1
    %3174 = vsyncpa [#allocation4], 1
    %s3175 = scalar_lea.sflag [#allocation4], 1
    %3176 = vsyncpa %s3175, 1
    %3177 = vsyncpa [#allocation12], 1
    %s3178 = scalar_lea.sflag [#allocation12], 1
    %3179 = vsyncpa %s3178, 1

</llo_original>
